<compile_context>
chip_gen: v6e
topology: v6e:2x2x1
jax: 0.10.0
libtpu: 0.0.40
codegen_flags: <defaults>
</compile_context>

<pallas_src>
import math
import numpy as np
import jax
import jax.numpy as jnp
from jax.experimental import pallas as pl
from jax.experimental.pallas import tpu as pltpu


# ----------------------------------------------------------------------------- hps
HPS = dict(
    dim_data=4,
    n_frames_per_step=1,
    encoder_embedding_dim=32,
    attention_rnn_dim=32,
    attention_dim=16,
    attention_location_n_filters=8,
    attention_location_kernel_size=5,
    decoder_rnn_dim=32,
    prenet_dim=16,
    p_prenet_dropout=0.0,
    p_attention_dropout=0.0,
    p_decoder_dropout=0.0,
    output_alignments=False,
)


# ----------------------------------------------------------------------- param init
def _xavier_uniform(key, shape, gain=1.0):
    if len(shape) == 2:
        fan_out, fan_in = shape
    else:  # conv1d weight [out_ch, in_ch, k]
        rf = int(np.prod(shape[2:]))
        fan_out, fan_in = shape[0] * rf, shape[1] * rf
    a = gain * math.sqrt(6.0 / (fan_in + fan_out))
    return jax.random.uniform(key, shape, jnp.float32, minval=-a, maxval=a)


def _lstm_params(key, in_dim, hid):
    k = 1.0 / math.sqrt(hid)
    ks = jax.random.split(key, 4)
    w_ih = jax.random.uniform(ks[0], (4 * hid, in_dim), jnp.float32, -k, k)
    w_hh = jax.random.uniform(ks[1], (4 * hid, hid), jnp.float32, -k, k)
    b_ih = jax.random.uniform(ks[2], (4 * hid,), jnp.float32, -k, k)
    b_hh = jax.random.uniform(ks[3], (4 * hid,), jnp.float32, -k, k)
    return w_ih, w_hh, b_ih, b_hh


def init_decoder_params(key, hps):
    g_tanh, g_sig = 5.0 / 3.0, 1.0
    dim_out = hps['dim_data'] * hps['n_frames_per_step']
    E = hps['encoder_embedding_dim']
    A = hps['attention_rnn_dim']
    AD = hps['attention_dim']
    Floc = hps['attention_location_n_filters']
    K = hps['attention_location_kernel_size']
    Drnn = hps['decoder_rnn_dim']
    P = hps['prenet_dim']

    keys = jax.random.split(key, 13)

    # Prenet: two bias-free LinearNorm layers
    pre_w1 = _xavier_uniform(keys[0], (P, dim_out))
    pre_w2 = _xavier_uniform(keys[1], (P, P))

    # attention_rnn = LSTMCell(P + E, A)
    a_wih, a_whh, a_bih, a_bhh = _lstm_params(keys[2], P + E, A)

    # Attention layer
    w_query = _xavier_uniform(keys[3], (AD, A), g_tanh)       # query_layer
    w_mem = _xavier_uniform(keys[4], (AD, E), g_tanh)         # memory_layer
    w_v = _xavier_uniform(keys[5], (1, AD))                    # v
    w_conv = _xavier_uniform(keys[6], (Floc, 2, K))            # location_conv
    w_dense = _xavier_uniform(keys[7], (AD, Floc), g_tanh)     # location_dense

    # decoder_rnn = LSTMCell(A + E, Drnn)
    d_wih, d_whh, d_bih, d_bhh = _lstm_params(keys[8], A + E, Drnn)

    # linear_projection / gate_layer
    kb = 1.0 / math.sqrt(Drnn + E)
    w_proj = _xavier_uniform(keys[9], (dim_out, Drnn + E))
    b_proj = jax.random.uniform(keys[10], (dim_out,), jnp.float32, -kb, kb)
    w_gate = _xavier_uniform(keys[11], (1, Drnn + E), g_sig)
    b_gate = jax.random.uniform(keys[12], (1,), jnp.float32, -kb, kb)

    # Fold location_dense into the location conv taps:
    #   wloc[c*K + k, a] = sum_f w_dense[a, f] * w_conv[f, c, k]
    # channel 0 = current attention weights, channel 1 = cumulative.
    wloc_ck = jnp.einsum('af,fck->cka', w_dense, w_conv).reshape(2 * K, AD)

    # Fused LSTM input weights (one matmul per cell).
    # attention cell packed activation order: [prenet_out | att_h | att_ctx]
    wa = jnp.concatenate([a_wih[:, :P].T, a_whh.T, a_wih[:, P:].T], axis=0)  # [P+A+E, 4A]
    # decoder cell packed activation order:   [att_h | att_ctx | dec_h]
    wd = jnp.concatenate([d_wih[:, :A].T, d_wih[:, A:].T, d_whh.T], axis=0)  # [A+E+D, 4D]

    # Fused projection + gate columns.
    w_all = jnp.concatenate([w_proj, w_gate], axis=0)   # [dim_out+1, D+E]
    b_all = jnp.concatenate([b_proj, b_gate], axis=0)   # [dim_out+1]

    return dict(
        pre_w1_t=pre_w1.T, pre_w2_t=pre_w2.T,
        wa=wa, a_b=(a_bih + a_bhh).reshape(1, -1),
        wq_t=w_query.T,
        wmem_t=w_mem.T,                                  # used in wrapper (processed_memory)
        v_row=w_v,                                       # [1, AD]
        wloc_t=wloc_ck.T,                                # [AD, 2K]
        wd=wd, d_b=(d_bih + d_bhh).reshape(1, -1),
        wout_h_t=w_all[:, :Drnn].T,                      # [D, dim_out+1]
        wout_c_t=w_all[:, Drnn:].T,                      # [E, dim_out+1]
        b_out=b_all.reshape(1, -1),                      # [1, dim_out+1]
    )


# --------------------------------------------------------------------------- kernel
def decoder_kernel(
    x_ref,                                   # [lg_out, Bp, dim_out] teacher-forced frames
    mem_ref,                                 # [Bp, T, E]   encoder memory
    pm_ref,                                  # [Bp, AD, T]  processed memory (T on lanes)
    ebias_ref,                               # [Bp, T]      0 valid / -1e30 padded
    pre_w1_ref, pre_w2_ref,                  # prenet
    wa_ref, a_b_ref,                         # fused attention LSTMCell weight/bias
    wq_ref,                                  # [A, AD]
    wloc_t_ref,                              # [AD, 2K]  folded location conv x dense (transposed)
    v_ref,                                   # [1, AD]
    wd_ref, d_b_ref,                         # fused decoder LSTMCell weight/bias
    wout_h_ref, wout_c_ref, bout_ref,        # fused projection + gate
    # outputs (written once after the recurrence)
    mel_ref,                                 # [lg_out, Bp, dim_out]
    gate_ref,                                # [lg_out, Bp, 1]
    # scratches
    pre_ref,                                 # [lg_out, Bp, P]  prenet outputs
    dh_ref,                                  # [lg_out, Bp, D]  per-step decoder hidden
    ctx_ref,                                 # [lg_out, Bp, E]  per-step attention context
):
    f32 = jnp.float32
    lg_out, Bp, dim_out = x_ref.shape
    _, T, E = mem_ref.shape
    AD = pm_ref.shape[1]
    A = a_b_ref.shape[1] // 4
    D = d_b_ref.shape[1] // 4
    P = pre_w2_ref.shape[0]
    K2 = wloc_t_ref.shape[1]
    K = K2 // 2
    pad = (K - 1) // 2

    # ---- prenet hoisted out of the recurrence (teacher forcing) ----
    # TODO(synk): prenet dropout p=0.0 (deterministic) -> identity.
    x2 = x_ref[...].reshape(lg_out * Bp, dim_out)
    h1 = jnp.maximum(jnp.dot(x2, pre_w1_ref[...], preferred_element_type=f32), 0.0)
    h2 = jnp.maximum(jnp.dot(h1, pre_w2_ref[...], preferred_element_type=f32), 0.0)
    pre_ref[...] = h2.reshape(lg_out, Bp, P)

    # ---- small loop-invariant weights / broadcasts (hoisted once) ----
    wa = wa_ref[...]
    a_b = a_b_ref[...]
    wq = wq_ref[...]
    wd = wd_ref[...]
    d_b = d_b_ref[...]
    e_bias = ebias_ref[...]
    wloc_b = jnp.broadcast_to(wloc_t_ref[...][None, :, :], (Bp, AD, K2))   # [Bp, AD, 2K]
    v_b = jnp.broadcast_to(v_ref[...][None, :, :], (Bp, 1, AD))            # [Bp, 1, AD]
    zpad = jnp.zeros((Bp, pad), f32) if pad > 0 else None

    # batched matmul over the batch dim: contract lhs[-1] with rhs[1]
    dn_b = (((2,), (1,)), ((0,), (0,)))

    def step(t, carry):
        att_h, att_c, dec_h, dec_c, att_w, att_w_cum, att_ctx = carry

        # ----- attention LSTM cell: one fused matmul -----
        apacked = jnp.concatenate([pre_ref[t], att_h, att_ctx], axis=1)     # [Bp, P+A+E]
        gates = jnp.dot(apacked, wa, preferred_element_type=f32) + a_b
        i_g = jax.nn.sigmoid(gates[:, 0 * A:1 * A])
        f_g = jax.nn.sigmoid(gates[:, 1 * A:2 * A])
        g_g = jnp.tanh(gates[:, 2 * A:3 * A])
        o_g = jax.nn.sigmoid(gates[:, 3 * A:4 * A])
        att_c_n = f_g * att_c + i_g * g_g
        att_h_n = o_g * jnp.tanh(att_c_n)

        # ----- location-sensitive attention, T on the lane axis -----
        pq = jnp.dot(att_h_n, wq, preferred_element_type=f32)               # [Bp, AD]
        if pad > 0:
            aw_pad = jnp.concatenate([zpad, att_w, zpad], axis=1)           # [Bp, T+2p]
            awc_pad = jnp.concatenate([zpad, att_w_cum, zpad], axis=1)
        else:
            aw_pad, awc_pad = att_w, att_w_cum
        # 2K shifted channels of the (current, cumulative) attention weights.
        shifted = jnp.stack(
            [aw_pad[:, k:k + T] for k in range(K)]
            + [awc_pad[:, k:k + T] for k in range(K)], axis=1)              # [Bp, 2K, T]
        # location conv (+ dense) as one batched MXU matmul.
        pa = jax.lax.dot_general(wloc_b, shifted, dn_b,
                                 preferred_element_type=f32)                # [Bp, AD, T]
        s3 = jnp.tanh(pq[:, :, None] + pa + pm_ref[...])                    # [Bp, AD, T]
        # energies: contract AD with v on the MXU.
        e = jax.lax.dot_general(v_b, s3, dn_b,
                                preferred_element_type=f32)[:, 0, :]        # [Bp, T]
        e = e + e_bias                                                      # masked_fill(-inf)
        m = jnp.max(e, axis=-1, keepdims=True)
        p = jnp.exp(e - m)
        att_w_n = p * pl.reciprocal(jnp.sum(p, axis=-1, keepdims=True), approx=True)
        att_w_cum_n = att_w_cum + att_w_n
        # attention_context = bmm(w[b,1,T], memory[b,T,E])
        att_ctx_n = jax.lax.dot_general(att_w_n[:, None, :], mem_ref[...], dn_b,
                                        preferred_element_type=f32)[:, 0, :]  # [Bp, E]

        # ----- decoder LSTM cell: one fused matmul -----
        dpacked = jnp.concatenate([att_h_n, att_ctx_n, dec_h], axis=1)      # [Bp, A+E+D]
        dgates = jnp.dot(dpacked, wd, preferred_element_type=f32) + d_b
        di_g = jax.nn.sigmoid(dgates[:, 0 * D:1 * D])
        df_g = jax.nn.sigmoid(dgates[:, 1 * D:2 * D])
        dg_g = jnp.tanh(dgates[:, 2 * D:3 * D])
        do_g = jax.nn.sigmoid(dgates[:, 3 * D:4 * D])
        dec_c_n = df_g * dec_c + di_g * dg_g
        dec_h_n = do_g * jnp.tanh(dec_c_n)

        # defer linear_projection + gate: stash per-step activations
        dh_ref[t] = dec_h_n
        ctx_ref[t] = att_ctx_n

        return (att_h_n, att_c_n, dec_h_n, dec_c_n, att_w_n, att_w_cum_n, att_ctx_n)

    carry0 = (jnp.zeros((Bp, A), f32), jnp.zeros((Bp, A), f32),
              jnp.zeros((Bp, D), f32), jnp.zeros((Bp, D), f32),
              jnp.zeros((Bp, T), f32), jnp.zeros((Bp, T), f32),
              jnp.zeros((Bp, E), f32))
    jax.lax.fori_loop(0, lg_out, step, carry0)

    # ---- deferred linear_projection + gate: one batched matmul, one write ----
    dh_all = dh_ref[...].reshape(lg_out * Bp, D)
    ctx_all = ctx_ref[...].reshape(lg_out * Bp, E)
    out = (jnp.dot(dh_all, wout_h_ref[...], preferred_element_type=f32)
           + jnp.dot(ctx_all, wout_c_ref[...], preferred_element_type=f32)
           + bout_ref[...])                                                 # [lg_out*Bp, dim_out+1]
    out3 = out.reshape(lg_out, Bp, dim_out + 1)
    mel_ref[...] = out3[:, :, :dim_out]
    gate_ref[...] = out3[:, :, dim_out:dim_out + 1]


# -------------------------------------------------------------------------- wrapper
def _full_spec(x):
    zeros = (0,) * x.ndim
    return pl.BlockSpec(x.shape, lambda i, _z=zeros: _z)


def decoder_forward(params, memory, decoder_inputs, memory_lengths, hps):
    B, T_in, E = memory.shape
    dim_data = hps['dim_data']
    nfs = hps['n_frames_per_step']
    dim_out = dim_data * nfs
    P = hps['prenet_dim']
    D = hps['decoder_rnn_dim']
    T_out_frames = decoder_inputs.shape[2]
    assert T_out_frames % nfs == 0
    lg_out = T_out_frames // nfs

    Bp = ((B + 7) // 8) * 8                 # pad batch to a full sublane group

    # parse_decoder_inputs + prepend go-frame (glue reshapes)
    di = jnp.transpose(decoder_inputs, (0, 2, 1)).reshape(B, lg_out, dim_out)
    di = jnp.transpose(di, (1, 0, 2)).astype(jnp.float32)       # [lg_out, B, dim_out]
    x_seq = jnp.concatenate(
        [jnp.zeros((1, B, dim_out), jnp.float32), di], axis=0)[:lg_out]
    x_seq = jnp.pad(x_seq, ((0, 0), (0, Bp - B), (0, 0)))

    mem3 = jnp.pad(memory.astype(jnp.float32), ((0, Bp - B), (0, 0), (0, 0)))
    # processed_memory = memory_layer(memory), laid out [B, AD, T] (T on lanes)
    pm_t = jnp.einsum('bte,ea->bat', mem3, params['wmem_t'])
    lengths_p = jnp.concatenate(
        [jnp.asarray(memory_lengths, jnp.int32),
         jnp.full((Bp - B,), T_in, jnp.int32)])
    valid = jnp.arange(T_in)[None, :] < lengths_p[:, None]
    e_bias = jnp.where(valid, 0.0, -1e30).astype(jnp.float32)   # additive mask bias

    args = [
        x_seq, mem3, pm_t, e_bias,
        params['pre_w1_t'], params['pre_w2_t'],
        params['wa'], params['a_b'],
        params['wq_t'], params['wloc_t'], params['v_row'],
        params['wd'], params['d_b'],
        params['wout_h_t'], params['wout_c_t'], params['b_out'],
    ]
    in_specs = [_full_spec(a) for a in args]
    out_shape = (jax.ShapeDtypeStruct((lg_out, Bp, dim_out), jnp.float32),
                 jax.ShapeDtypeStruct((lg_out, Bp, 1), jnp.float32))
    out_specs = [pl.BlockSpec((lg_out, Bp, dim_out), lambda i: (0, 0, 0)),
                 pl.BlockSpec((lg_out, Bp, 1), lambda i: (0, 0, 0))]
    scratch_dims = [(lg_out, Bp, P), (lg_out, Bp, D), (lg_out, Bp, E)]
    scratch_shapes = [pltpu.VMEM(s, jnp.float32) for s in scratch_dims]

    # vmem limit sized from the actual working set (double-buffered IO + scratch)
    in_bytes = sum(int(np.prod(a.shape)) * 4 for a in args)
    out_bytes = sum(int(np.prod(s.shape)) * 4 for s in out_shape)
    sc_bytes = sum(int(np.prod(s)) * 4 for s in scratch_dims)
    vmem_limit = int(min(max(2 * (in_bytes + out_bytes) + sc_bytes + (4 << 20),
                             16 << 20), 96 << 20))

    mel_out, gate_out = pl.pallas_call(
        decoder_kernel,
        out_shape=out_shape,
        grid_spec=pltpu.PrefetchScalarGridSpec(
            num_scalar_prefetch=0,
            grid=(1,),                         # single invocation; recurrence in-kernel
            in_specs=in_specs,
            out_specs=out_specs,
            scratch_shapes=scratch_shapes),
        compiler_params=pltpu.CompilerParams(
            dimension_semantics=("arbitrary",),
            vmem_limit_bytes=vmem_limit),
    )(*args)

    # parse_decoder_outputs (glue)
    mel = jnp.transpose(mel_out[:, :B, :], (1, 0, 2))               # [B, lg_out, dim_out]
    mel = mel.reshape(B, lg_out * nfs, dim_data)
    mel = jnp.transpose(mel, (0, 2, 1))                             # [B, dim_data, T_out]
    gate = jnp.transpose(gate_out[:, :B, 0], (1, 0))                # [B, lg_out]
    alignments = []                                                 # output_alignments=False
    return mel, gate, alignments


# ----------------------------------------------------------------------------- main
if __name__ == "__main__":
    hps = HPS
    B, T_in, T_out = 2, 8, 6
    E = hps['encoder_embedding_dim']

    key = jax.random.PRNGKey(0)
    k_mem, k_dec, k_par = jax.random.split(key, 3)
    memory = jax.random.normal(k_mem, (B, T_in, E), jnp.float32)
    decoder_inputs = jax.random.normal(k_dec, (B, hps['dim_data'], T_out), jnp.float32)
    memory_lengths = jnp.array([T_in, 5], dtype=jnp.int32)

    params = init_decoder_params(k_par, hps)

    mel, gate, aln = decoder_forward(params, memory, decoder_inputs,
                                     memory_lengths, hps)
    jax.block_until_ready(mel)
    jax.block_until_ready(gate)

    assert mel.shape == (B, hps['dim_data'], T_out), mel.shape
    assert gate.shape == (B, T_out), gate.shape
    assert bool(jnp.all(jnp.isfinite(mel))) and bool(jnp.all(jnp.isfinite(gate)))
    print("KERNEL_OK")
</pallas_src>

<mosaic_0001>
module attributes {stable_mosaic.version = 11 : i64} {
  func.func @decoder_kernel(%arg0: i32, %arg1: memref<6x8x4xf32, #tpu.memory_space<vmem>>, %arg2: memref<8x8x32xf32, #tpu.memory_space<vmem>>, %arg3: memref<8x16x8xf32, #tpu.memory_space<vmem>>, %arg4: memref<8x8xf32, #tpu.memory_space<vmem>>, %arg5: memref<4x16xf32, #tpu.memory_space<vmem>>, %arg6: memref<16x16xf32, #tpu.memory_space<vmem>>, %arg7: memref<80x128xf32, #tpu.memory_space<vmem>>, %arg8: memref<1x128xf32, #tpu.memory_space<vmem>>, %arg9: memref<32x16xf32, #tpu.memory_space<vmem>>, %arg10: memref<16x10xf32, #tpu.memory_space<vmem>>, %arg11: memref<1x16xf32, #tpu.memory_space<vmem>>, %arg12: memref<96x128xf32, #tpu.memory_space<vmem>>, %arg13: memref<1x128xf32, #tpu.memory_space<vmem>>, %arg14: memref<32x5xf32, #tpu.memory_space<vmem>>, %arg15: memref<32x5xf32, #tpu.memory_space<vmem>>, %arg16: memref<1x5xf32, #tpu.memory_space<vmem>>, %arg17: memref<6x8x4xf32, #tpu.memory_space<vmem>>, %arg18: memref<6x8x1xf32, #tpu.memory_space<vmem>>, %arg19: memref<6x8x16xf32, #tpu.memory_space<vmem>>, %arg20: memref<6x8x32xf32, #tpu.memory_space<vmem>>, %arg21: memref<6x8x32xf32, #tpu.memory_space<vmem>>) attributes {dimension_semantics = [#tpu.dimension_semantics<arbitrary>], iteration_bounds = array<i64: 1>, scalar_prefetch = 0 : i64, scratch_operands = 3 : i64, tpu.core_type = #tpu.core_type<tc>, window_params = [{pipeline_mode = #tpu.pipeline_mode<synchronous>, transform_indices = @transform_0, window_bounds = array<i64: 6, 8, 4>}, {pipeline_mode = #tpu.pipeline_mode<synchronous>, transform_indices = @transform_1, window_bounds = array<i64: 8, 8, 32>}, {pipeline_mode = #tpu.pipeline_mode<synchronous>, transform_indices = @transform_2, window_bounds = array<i64: 8, 16, 8>}, {pipeline_mode = #tpu.pipeline_mode<synchronous>, transform_indices = @transform_3, window_bounds = array<i64: 8, 8>}, {pipeline_mode = #tpu.pipeline_mode<synchronous>, transform_indices = @transform_4, window_bounds = array<i64: 4, 16>}, {pipeline_mode = #tpu.pipeline_mode<synchronous>, transform_indices = @transform_5, window_bounds = array<i64: 16, 16>}, {pipeline_mode = #tpu.pipeline_mode<synchronous>, transform_indices = @transform_6, window_bounds = array<i64: 80, 128>}, {pipeline_mode = #tpu.pipeline_mode<synchronous>, transform_indices = @transform_7, window_bounds = array<i64: 1, 128>}, {pipeline_mode = #tpu.pipeline_mode<synchronous>, transform_indices = @transform_8, window_bounds = array<i64: 32, 16>}, {pipeline_mode = #tpu.pipeline_mode<synchronous>, transform_indices = @transform_9, window_bounds = array<i64: 16, 10>}, {pipeline_mode = #tpu.pipeline_mode<synchronous>, transform_indices = @transform_10, window_bounds = array<i64: 1, 16>}, {pipeline_mode = #tpu.pipeline_mode<synchronous>, transform_indices = @transform_11, window_bounds = array<i64: 96, 128>}, {pipeline_mode = #tpu.pipeline_mode<synchronous>, transform_indices = @transform_12, window_bounds = array<i64: 1, 128>}, {pipeline_mode = #tpu.pipeline_mode<synchronous>, transform_indices = @transform_13, window_bounds = array<i64: 32, 5>}, {pipeline_mode = #tpu.pipeline_mode<synchronous>, transform_indices = @transform_14, window_bounds = array<i64: 32, 5>}, {pipeline_mode = #tpu.pipeline_mode<synchronous>, transform_indices = @transform_15, window_bounds = array<i64: 1, 5>}, {pipeline_mode = #tpu.pipeline_mode<synchronous>, transform_indices = @transform_16, window_bounds = array<i64: 6, 8, 4>}, {pipeline_mode = #tpu.pipeline_mode<synchronous>, transform_indices = @transform_17, window_bounds = array<i64: 6, 8, 1>}]} {
    %c0 = arith.constant 0 : index
    %c0_0 = arith.constant 0 : index
    %c0_1 = arith.constant 0 : index
    %0 = vector.load %arg1[%c0, %c0_0, %c0_1] : memref<6x8x4xf32, #tpu.memory_space<vmem>>, vector<6x8x4xf32>
    %1 = vector.shape_cast %0 : vector<6x8x4xf32> to vector<48x4xf32>
    %c0_2 = arith.constant 0 : index
    %c0_3 = arith.constant 0 : index
    %2 = vector.load %arg5[%c0_2, %c0_3] : memref<4x16xf32, #tpu.memory_space<vmem>>, vector<4x16xf32>
    %cst = arith.constant dense<0.000000e+00> : vector<48x16xf32>
    %3 = tpu.matmul %1, %2, %cst {dimension_numbers = #tpu.dot_dimension_numbers<[1], [0], [0], [1], [0, 0, 1, 1], [], []>} : vector<48x4xf32>, vector<4x16xf32>, vector<48x16xf32> -> vector<48x16xf32>
    %cst_4 = arith.constant 0.000000e+00 : f32
    %4 = vector.broadcast %cst_4 : f32 to vector<48x16xf32>
    %5 = arith.maximumf %3, %4 : vector<48x16xf32>
    %c0_5 = arith.constant 0 : index
    %c0_6 = arith.constant 0 : index
    %6 = vector.load %arg6[%c0_5, %c0_6] : memref<16x16xf32, #tpu.memory_space<vmem>>, vector<16x16xf32>
    %cst_7 = arith.constant dense<0.000000e+00> : vector<48x16xf32>
    %7 = tpu.matmul %5, %6, %cst_7 {dimension_numbers = #tpu.dot_dimension_numbers<[1], [0], [0], [1], [0, 0, 1, 1], [], []>} : vector<48x16xf32>, vector<16x16xf32>, vector<48x16xf32> -> vector<48x16xf32>
    %cst_8 = arith.constant 0.000000e+00 : f32
    %8 = vector.broadcast %cst_8 : f32 to vector<48x16xf32>
    %9 = arith.maximumf %7, %8 : vector<48x16xf32>
    %10 = vector.shape_cast %9 : vector<48x16xf32> to vector<6x8x16xf32>
    %c0_9 = arith.constant 0 : index
    %c0_10 = arith.constant 0 : index
    %c0_11 = arith.constant 0 : index
    %11 = vector.load %arg19[%c0_9, %c0_10, %c0_11] : memref<6x8x16xf32, #tpu.memory_space<vmem>>, vector<6x8x16xf32>
    tpu.vector_store %arg19[%c0_9, %c0_10, %c0_11], %10 {strides = array<i32>} : memref<6x8x16xf32, #tpu.memory_space<vmem>>, vector<6x8x16xf32>,
    %c0_12 = arith.constant 0 : index
    %c0_13 = arith.constant 0 : index
    %12 = vector.load %arg7[%c0_12, %c0_13] : memref<80x128xf32, #tpu.memory_space<vmem>>, vector<80x128xf32>
    %c0_14 = arith.constant 0 : index
    %c0_15 = arith.constant 0 : index
    %13 = vector.load %arg8[%c0_14, %c0_15] : memref<1x128xf32, #tpu.memory_space<vmem>>, vector<1x128xf32>
    %c0_16 = arith.constant 0 : index
    %c0_17 = arith.constant 0 : index
    %14 = vector.load %arg9[%c0_16, %c0_17] : memref<32x16xf32, #tpu.memory_space<vmem>>, vector<32x16xf32>
    %c0_18 = arith.constant 0 : index
    %c0_19 = arith.constant 0 : index
    %15 = vector.load %arg12[%c0_18, %c0_19] : memref<96x128xf32, #tpu.memory_space<vmem>>, vector<96x128xf32>
    %c0_20 = arith.constant 0 : index
    %c0_21 = arith.constant 0 : index
    %16 = vector.load %arg13[%c0_20, %c0_21] : memref<1x128xf32, #tpu.memory_space<vmem>>, vector<1x128xf32>
    %c0_22 = arith.constant 0 : index
    %c0_23 = arith.constant 0 : index
    %17 = vector.load %arg4[%c0_22, %c0_23] : memref<8x8xf32, #tpu.memory_space<vmem>>, vector<8x8xf32>
    %c0_24 = arith.constant 0 : index
    %c0_25 = arith.constant 0 : index
    %18 = vector.load %arg10[%c0_24, %c0_25] : memref<16x10xf32, #tpu.memory_space<vmem>>, vector<16x10xf32>
    %19 = vector.shape_cast %18 : vector<16x10xf32> to vector<1x16x10xf32>
    %20 = vector.shape_cast %19 : vector<1x16x10xf32> to vector<1x16x10xf32>
    %21 = vector.broadcast %20 : vector<1x16x10xf32> to vector<8x16x10xf32>
    %c0_26 = arith.constant 0 : index
    %c0_27 = arith.constant 0 : index
    %22 = vector.load %arg11[%c0_26, %c0_27] : memref<1x16xf32, #tpu.memory_space<vmem>>, vector<1x16xf32>
    %23 = vector.shape_cast %22 : vector<1x16xf32> to vector<1x1x16xf32>
    %24 = vector.shape_cast %23 : vector<1x1x16xf32> to vector<1x1x16xf32>
    %25 = vector.broadcast %24 : vector<1x1x16xf32> to vector<8x1x16xf32>
    %cst_28 = arith.constant 0.000000e+00 : f32
    %26 = vector.broadcast %cst_28 : f32 to vector<8x2xf32>
    %cst_29 = arith.constant 0.000000e+00 : f32
    %27 = vector.broadcast %cst_29 : f32 to vector<8x32xf32>
    %cst_30 = arith.constant 0.000000e+00 : f32
    %28 = vector.broadcast %cst_30 : f32 to vector<8x32xf32>
    %cst_31 = arith.constant 0.000000e+00 : f32
    %29 = vector.broadcast %cst_31 : f32 to vector<8x32xf32>
    %cst_32 = arith.constant 0.000000e+00 : f32
    %30 = vector.broadcast %cst_32 : f32 to vector<8x32xf32>
    %cst_33 = arith.constant 0.000000e+00 : f32
    %31 = vector.broadcast %cst_33 : f32 to vector<8x8xf32>
    %cst_34 = arith.constant 0.000000e+00 : f32
    %32 = vector.broadcast %cst_34 : f32 to vector<8x8xf32>
    %cst_35 = arith.constant 0.000000e+00 : f32
    %33 = vector.broadcast %cst_35 : f32 to vector<8x32xf32>
    %c0_i32 = arith.constant 0 : i32
    %c6_i32 = arith.constant 6 : i32
    %34 = arith.addi %c0_i32, %c6_i32 : i32
    %c1_i32 = arith.constant 1 : i32
    %35:7 = scf.for %arg22 = %c0_i32 to %34 step %c1_i32 iter_args(%arg23 = %27, %arg24 = %28, %arg25 = %29, %arg26 = %30, %arg27 = %31, %arg28 = %32, %arg29 = %33) -> (vector<8x32xf32>, vector<8x32xf32>, vector<8x32xf32>, vector<8x32xf32>, vector<8x8xf32>, vector<8x8xf32>, vector<8x32xf32>)  : i32 {
      %53 = arith.index_cast %arg22 : i32 to index
      %c0_57 = arith.constant 0 : index
      %c0_58 = arith.constant 0 : index
      %54 = vector.load %arg19[%53, %c0_57, %c0_58] : memref<6x8x16xf32, #tpu.memory_space<vmem>>, vector<1x8x16xf32>
      %55 = vector.shape_cast %54 : vector<1x8x16xf32> to vector<8x16xf32>
      %56 = tpu.concatenate %55, %arg23, %arg29 in 1 : vector<8x16xf32>, vector<8x32xf32>, vector<8x32xf32> -> vector<8x80xf32>
      %cst_59 = arith.constant dense<0.000000e+00> : vector<8x128xf32>
      %57 = tpu.matmul %56, %12, %cst_59 {dimension_numbers = #tpu.dot_dimension_numbers<[1], [0], [0], [1], [0, 0, 1, 1], [], []>} : vector<8x80xf32>, vector<80x128xf32>, vector<8x128xf32> -> vector<8x128xf32>
      %58 = vector.broadcast %13 : vector<1x128xf32> to vector<8x128xf32>
      %59 = arith.addf %57, %58 : vector<8x128xf32>
      %60 = vector.extract_strided_slice %59 {offsets = [0, 0], sizes = [8, 32], strides = [1, 1]} : vector<8x128xf32> to vector<8x32xf32>
      %61 = arith.negf %60 : vector<8x32xf32>
      %62 = math.exp %61 : vector<8x32xf32>
      %cst_60 = arith.constant 1.000000e+00 : f32
      %63 = vector.broadcast %cst_60 : f32 to vector<8x32xf32>
      %64 = arith.addf %63, %62 : vector<8x32xf32>
      %65 = arith.divf %63, %64 : vector<8x32xf32>
      %66 = vector.extract_strided_slice %59 {offsets = [0, 32], sizes = [8, 32], strides = [1, 1]} : vector<8x128xf32> to vector<8x32xf32>
      %67 = arith.negf %66 : vector<8x32xf32>
      %68 = math.exp %67 : vector<8x32xf32>
      %cst_61 = arith.constant 1.000000e+00 : f32
      %69 = vector.broadcast %cst_61 : f32 to vector<8x32xf32>
      %70 = arith.addf %69, %68 : vector<8x32xf32>
      %71 = arith.divf %69, %70 : vector<8x32xf32>
      %72 = vector.extract_strided_slice %59 {offsets = [0, 64], sizes = [8, 32], strides = [1, 1]} : vector<8x128xf32> to vector<8x32xf32>
      %73 = math.tanh %72 : vector<8x32xf32>
      %74 = vector.extract_strided_slice %59 {offsets = [0, 96], sizes = [8, 32], strides = [1, 1]} : vector<8x128xf32> to vector<8x32xf32>
      %75 = arith.negf %74 : vector<8x32xf32>
      %76 = math.exp %75 : vector<8x32xf32>
      %cst_62 = arith.constant 1.000000e+00 : f32
      %77 = vector.broadcast %cst_62 : f32 to vector<8x32xf32>
      %78 = arith.addf %77, %76 : vector<8x32xf32>
      %79 = arith.divf %77, %78 : vector<8x32xf32>
      %80 = arith.mulf %71, %arg24 : vector<8x32xf32>
      %81 = arith.mulf %65, %73 : vector<8x32xf32>
      %82 = arith.addf %80, %81 : vector<8x32xf32>
      %83 = math.tanh %82 : vector<8x32xf32>
      %84 = arith.mulf %79, %83 : vector<8x32xf32>
      %cst_63 = arith.constant dense<0.000000e+00> : vector<8x16xf32>
      %85 = tpu.matmul %84, %14, %cst_63 {dimension_numbers = #tpu.dot_dimension_numbers<[1], [0], [0], [1], [0, 0, 1, 1], [], []>} : vector<8x32xf32>, vector<32x16xf32>, vector<8x16xf32> -> vector<8x16xf32>
      %86 = tpu.concatenate %26, %arg27, %26 in 1 : vector<8x2xf32>, vector<8x8xf32>, vector<8x2xf32> -> vector<8x12xf32>
      %87 = tpu.concatenate %26, %arg28, %26 in 1 : vector<8x2xf32>, vector<8x8xf32>, vector<8x2xf32> -> vector<8x12xf32>
      %88 = vector.extract_strided_slice %86 {offsets = [0, 0], sizes = [8, 8], strides = [1, 1]} : vector<8x12xf32> to vector<8x8xf32>
      %89 = vector.extract_strided_slice %86 {offsets = [0, 1], sizes = [8, 8], strides = [1, 1]} : vector<8x12xf32> to vector<8x8xf32>
      %90 = vector.extract_strided_slice %86 {offsets = [0, 2], sizes = [8, 8], strides = [1, 1]} : vector<8x12xf32> to vector<8x8xf32>
      %91 = vector.extract_strided_slice %86 {offsets = [0, 3], sizes = [8, 8], strides = [1, 1]} : vector<8x12xf32> to vector<8x8xf32>
      %92 = vector.extract_strided_slice %86 {offsets = [0, 4], sizes = [8, 8], strides = [1, 1]} : vector<8x12xf32> to vector<8x8xf32>
      %93 = vector.extract_strided_slice %87 {offsets = [0, 0], sizes = [8, 8], strides = [1, 1]} : vector<8x12xf32> to vector<8x8xf32>
      %94 = vector.extract_strided_slice %87 {offsets = [0, 1], sizes = [8, 8], strides = [1, 1]} : vector<8x12xf32> to vector<8x8xf32>
      %95 = vector.extract_strided_slice %87 {offsets = [0, 2], sizes = [8, 8], strides = [1, 1]} : vector<8x12xf32> to vector<8x8xf32>
      %96 = vector.extract_strided_slice %87 {offsets = [0, 3], sizes = [8, 8], strides = [1, 1]} : vector<8x12xf32> to vector<8x8xf32>
      %97 = vector.extract_strided_slice %87 {offsets = [0, 4], sizes = [8, 8], strides = [1, 1]} : vector<8x12xf32> to vector<8x8xf32>
      %98 = vector.shape_cast %88 : vector<8x8xf32> to vector<8x1x8xf32>
      %99 = vector.shape_cast %89 : vector<8x8xf32> to vector<8x1x8xf32>
      %100 = vector.shape_cast %90 : vector<8x8xf32> to vector<8x1x8xf32>
      %101 = vector.shape_cast %91 : vector<8x8xf32> to vector<8x1x8xf32>
      %102 = vector.shape_cast %92 : vector<8x8xf32> to vector<8x1x8xf32>
      %103 = vector.shape_cast %93 : vector<8x8xf32> to vector<8x1x8xf32>
      %104 = vector.shape_cast %94 : vector<8x8xf32> to vector<8x1x8xf32>
      %105 = vector.shape_cast %95 : vector<8x8xf32> to vector<8x1x8xf32>
      %106 = vector.shape_cast %96 : vector<8x8xf32> to vector<8x1x8xf32>
      %107 = vector.shape_cast %97 : vector<8x8xf32> to vector<8x1x8xf32>
      %108 = tpu.concatenate %98, %99, %100, %101, %102, %103, %104, %105, %106, %107 in 1 : vector<8x1x8xf32>, vector<8x1x8xf32>, vector<8x1x8xf32>, vector<8x1x8xf32>, vector<8x1x8xf32>, vector<8x1x8xf32>, vector<8x1x8xf32>, vector<8x1x8xf32>, vector<8x1x8xf32>, vector<8x1x8xf32> -> vector<8x10x8xf32>
      %cst_64 = arith.constant dense<0.000000e+00> : vector<8x16x8xf32>
      %109 = tpu.matmul %21, %108, %cst_64 {dimension_numbers = #tpu.dot_dimension_numbers<[2], [1], [1], [2], [0, 0, 0, 1, 1, 2], [0], [0]>} : vector<8x16x10xf32>, vector<8x10x8xf32>, vector<8x16x8xf32> -> vector<8x16x8xf32>
      %110 = vector.shape_cast %85 : vector<8x16xf32> to vector<8x16x1xf32>
      %111 = vector.broadcast %110 : vector<8x16x1xf32> to vector<8x16x8xf32>
      %112 = arith.addf %111, %109 : vector<8x16x8xf32>
      %c0_65 = arith.constant 0 : index
      %c0_66 = arith.constant 0 : index
      %c0_67 = arith.constant 0 : index
      %113 = vector.load %arg3[%c0_65, %c0_66, %c0_67] : memref<8x16x8xf32, #tpu.memory_space<vmem>>, vector<8x16x8xf32>
      %114 = arith.addf %112, %113 : vector<8x16x8xf32>
      %115 = math.tanh %114 : vector<8x16x8xf32>
      %cst_68 = arith.constant dense<0.000000e+00> : vector<8x1x8xf32>
      %116 = tpu.matmul %25, %115, %cst_68 {dimension_numbers = #tpu.dot_dimension_numbers<[2], [1], [1], [2], [0, 0, 0, 1, 1, 2], [0], [0]>} : vector<8x1x16xf32>, vector<8x16x8xf32>, vector<8x1x8xf32> -> vector<8x1x8xf32>
      %117 = vector.shape_cast %116 : vector<8x1x8xf32> to vector<8x8xf32>
      %118 = arith.addf %117, %17 : vector<8x8xf32>
      %cst_69 = arith.constant dense<0xFF800000> : vector<8xf32>
      %119 = vector.multi_reduction <maximumf>, %118, %cst_69 [1] : vector<8x8xf32> to vector<8xf32>
      %120 = vector.shape_cast %119 : vector<8xf32> to vector<8x1xf32>
      %121 = vector.broadcast %120 : vector<8x1xf32> to vector<8x8xf32>
      %122 = arith.subf %118, %121 : vector<8x8xf32>
      %123 = math.exp %122 : vector<8x8xf32>
      %cst_70 = arith.constant dense<0.000000e+00> : vector<8xf32>
      %124 = vector.multi_reduction <add>, %123, %cst_70 [1] : vector<8x8xf32> to vector<8xf32>
      %125 = vector.shape_cast %124 : vector<8xf32> to vector<8x1xf32>
      %126 = tpu.reciprocal %125 {approx = true} : vector<8x1xf32> -> vector<8x1xf32>
      %127 = vector.broadcast %126 : vector<8x1xf32> to vector<8x8xf32>
      %128 = arith.mulf %123, %127 : vector<8x8xf32>
      %129 = arith.addf %arg28, %128 : vector<8x8xf32>
      %130 = vector.shape_cast %128 : vector<8x8xf32> to vector<8x1x8xf32>
      %c0_71 = arith.constant 0 : index
      %c0_72 = arith.constant 0 : index
      %c0_73 = arith.constant 0 : index
      %131 = vector.load %arg2[%c0_71, %c0_72, %c0_73] : memref<8x8x32xf32, #tpu.memory_space<vmem>>, vector<8x8x32xf32>
      %cst_74 = arith.constant dense<0.000000e+00> : vector<8x1x32xf32>
      %132 = tpu.matmul %130, %131, %cst_74 {dimension_numbers = #tpu.dot_dimension_numbers<[2], [1], [1], [2], [0, 0, 0, 1, 1, 2], [0], [0]>} : vector<8x1x8xf32>, vector<8x8x32xf32>, vector<8x1x32xf32> -> vector<8x1x32xf32>
      %133 = vector.shape_cast %132 : vector<8x1x32xf32> to vector<8x32xf32>
      %134 = tpu.concatenate %84, %133, %arg25 in 1 : vector<8x32xf32>, vector<8x32xf32>, vector<8x32xf32> -> vector<8x96xf32>
      %cst_75 = arith.constant dense<0.000000e+00> : vector<8x128xf32>
      %135 = tpu.matmul %134, %15, %cst_75 {dimension_numbers = #tpu.dot_dimension_numbers<[1], [0], [0], [1], [0, 0, 1, 1], [], []>} : vector<8x96xf32>, vector<96x128xf32>, vector<8x128xf32> -> vector<8x128xf32>
      %136 = vector.broadcast %16 : vector<1x128xf32> to vector<8x128xf32>
      %137 = arith.addf %135, %136 : vector<8x128xf32>
      %138 = vector.extract_strided_slice %137 {offsets = [0, 0], sizes = [8, 32], strides = [1, 1]} : vector<8x128xf32> to vector<8x32xf32>
      %139 = arith.negf %138 : vector<8x32xf32>
      %140 = math.exp %139 : vector<8x32xf32>
      %cst_76 = arith.constant 1.000000e+00 : f32
      %141 = vector.broadcast %cst_76 : f32 to vector<8x32xf32>
      %142 = arith.addf %141, %140 : vector<8x32xf32>
      %143 = arith.divf %141, %142 : vector<8x32xf32>
      %144 = vector.extract_strided_slice %137 {offsets = [0, 32], sizes = [8, 32], strides = [1, 1]} : vector<8x128xf32> to vector<8x32xf32>
      %145 = arith.negf %144 : vector<8x32xf32>
      %146 = math.exp %145 : vector<8x32xf32>
      %cst_77 = arith.constant 1.000000e+00 : f32
      %147 = vector.broadcast %cst_77 : f32 to vector<8x32xf32>
      %148 = arith.addf %147, %146 : vector<8x32xf32>
      %149 = arith.divf %147, %148 : vector<8x32xf32>
      %150 = vector.extract_strided_slice %137 {offsets = [0, 64], sizes = [8, 32], strides = [1, 1]} : vector<8x128xf32> to vector<8x32xf32>
      %151 = math.tanh %150 : vector<8x32xf32>
      %152 = vector.extract_strided_slice %137 {offsets = [0, 96], sizes = [8, 32], strides = [1, 1]} : vector<8x128xf32> to vector<8x32xf32>
      %153 = arith.negf %152 : vector<8x32xf32>
      %154 = math.exp %153 : vector<8x32xf32>
      %cst_78 = arith.constant 1.000000e+00 : f32
      %155 = vector.broadcast %cst_78 : f32 to vector<8x32xf32>
      %156 = arith.addf %155, %154 : vector<8x32xf32>
      %157 = arith.divf %155, %156 : vector<8x32xf32>
      %158 = arith.mulf %149, %arg26 : vector<8x32xf32>
      %159 = arith.mulf %143, %151 : vector<8x32xf32>
      %160 = arith.addf %158, %159 : vector<8x32xf32>
      %161 = math.tanh %160 : vector<8x32xf32>
      %162 = arith.mulf %157, %161 : vector<8x32xf32>
      %163 = arith.index_cast %arg22 : i32 to index
      %c0_79 = arith.constant 0 : index
      %c0_80 = arith.constant 0 : index
      %164 = vector.load %arg20[%163, %c0_79, %c0_80] : memref<6x8x32xf32, #tpu.memory_space<vmem>>, vector<1x8x32xf32>
      %165 = vector.shape_cast %164 : vector<1x8x32xf32> to vector<8x32xf32>
      %166 = vector.shape_cast %162 : vector<8x32xf32> to vector<1x8x32xf32>
      tpu.vector_store %arg20[%163, %c0_79, %c0_80], %166 {strides = array<i32>} : memref<6x8x32xf32, #tpu.memory_space<vmem>>, vector<1x8x32xf32>,
      %167 = arith.index_cast %arg22 : i32 to index
      %c0_81 = arith.constant 0 : index
      %c0_82 = arith.constant 0 : index
      %168 = vector.load %arg21[%167, %c0_81, %c0_82] : memref<6x8x32xf32, #tpu.memory_space<vmem>>, vector<1x8x32xf32>
      %169 = vector.shape_cast %168 : vector<1x8x32xf32> to vector<8x32xf32>
      %170 = vector.shape_cast %133 : vector<8x32xf32> to vector<1x8x32xf32>
      tpu.vector_store %arg21[%167, %c0_81, %c0_82], %170 {strides = array<i32>} : memref<6x8x32xf32, #tpu.memory_space<vmem>>, vector<1x8x32xf32>,
      scf.yield %84, %82, %162, %160, %128, %129, %133 : vector<8x32xf32>, vector<8x32xf32>, vector<8x32xf32>, vector<8x32xf32>, vector<8x8xf32>, vector<8x8xf32>, vector<8x32xf32>
    }
    %c6_i32_36 = arith.constant 6 : i32
    %c0_37 = arith.constant 0 : index
    %c0_38 = arith.constant 0 : index
    %c0_39 = arith.constant 0 : index
    %36 = vector.load %arg20[%c0_37, %c0_38, %c0_39] : memref<6x8x32xf32, #tpu.memory_space<vmem>>, vector<6x8x32xf32>
    %37 = vector.shape_cast %36 : vector<6x8x32xf32> to vector<48x32xf32>
    %c0_40 = arith.constant 0 : index
    %c0_41 = arith.constant 0 : index
    %c0_42 = arith.constant 0 : index
    %38 = vector.load %arg21[%c0_40, %c0_41, %c0_42] : memref<6x8x32xf32, #tpu.memory_space<vmem>>, vector<6x8x32xf32>
    %39 = vector.shape_cast %38 : vector<6x8x32xf32> to vector<48x32xf32>
    %c0_43 = arith.constant 0 : index
    %c0_44 = arith.constant 0 : index
    %40 = vector.load %arg14[%c0_43, %c0_44] : memref<32x5xf32, #tpu.memory_space<vmem>>, vector<32x5xf32>
    %cst_45 = arith.constant dense<0.000000e+00> : vector<48x5xf32>
    %41 = tpu.matmul %37, %40, %cst_45 {dimension_numbers = #tpu.dot_dimension_numbers<[1], [0], [0], [1], [0, 0, 1, 1], [], []>} : vector<48x32xf32>, vector<32x5xf32>, vector<48x5xf32> -> vector<48x5xf32>
    %c0_46 = arith.constant 0 : index
    %c0_47 = arith.constant 0 : index
    %42 = vector.load %arg15[%c0_46, %c0_47] : memref<32x5xf32, #tpu.memory_space<vmem>>, vector<32x5xf32>
    %cst_48 = arith.constant dense<0.000000e+00> : vector<48x5xf32>
    %43 = tpu.matmul %39, %42, %cst_48 {dimension_numbers = #tpu.dot_dimension_numbers<[1], [0], [0], [1], [0, 0, 1, 1], [], []>} : vector<48x32xf32>, vector<32x5xf32>, vector<48x5xf32> -> vector<48x5xf32>
    %44 = arith.addf %41, %43 : vector<48x5xf32>
    %c0_49 = arith.constant 0 : index
    %c0_50 = arith.constant 0 : index
    %45 = vector.load %arg16[%c0_49, %c0_50] : memref<1x5xf32, #tpu.memory_space<vmem>>, vector<1x5xf32>
    %46 = vector.broadcast %45 : vector<1x5xf32> to vector<48x5xf32>
    %47 = arith.addf %44, %46 : vector<48x5xf32>
    %48 = vector.shape_cast %47 : vector<48x5xf32> to vector<6x8x5xf32>
    %49 = vector.extract_strided_slice %48 {offsets = [0, 0, 0], sizes = [6, 8, 4], strides = [1, 1, 1]} : vector<6x8x5xf32> to vector<6x8x4xf32>
    %c0_51 = arith.constant 0 : index
    %c0_52 = arith.constant 0 : index
    %c0_53 = arith.constant 0 : index
    %50 = vector.load %arg17[%c0_51, %c0_52, %c0_53] : memref<6x8x4xf32, #tpu.memory_space<vmem>>, vector<6x8x4xf32>
    tpu.vector_store %arg17[%c0_51, %c0_52, %c0_53], %49 {strides = array<i32>} : memref<6x8x4xf32, #tpu.memory_space<vmem>>, vector<6x8x4xf32>,
    %51 = vector.extract_strided_slice %48 {offsets = [0, 0, 4], sizes = [6, 8, 1], strides = [1, 1, 1]} : vector<6x8x5xf32> to vector<6x8x1xf32>
    %c0_54 = arith.constant 0 : index
    %c0_55 = arith.constant 0 : index
    %c0_56 = arith.constant 0 : index
    %52 = vector.load %arg18[%c0_54, %c0_55, %c0_56] : memref<6x8x1xf32, #tpu.memory_space<vmem>>, vector<6x8x1xf32>
    tpu.vector_store %arg18[%c0_54, %c0_55, %c0_56], %51 {strides = array<i32>} : memref<6x8x1xf32, #tpu.memory_space<vmem>>, vector<6x8x1xf32>,
    return
  }
  func.func @transform_0(%arg0: i32) -> (i32, i32, i32) {
    %c0_i32 = arith.constant 0 : i32
    %c0_i32_0 = arith.constant 0 : i32
    %c0_i32_1 = arith.constant 0 : i32
    %c0_i32_2 = arith.constant 0 : i32
    return %c0_i32, %c0_i32_0, %c0_i32_1 : i32, i32, i32
  }
  func.func @transform_1(%arg0: i32) -> (i32, i32, i32) {
    %c0_i32 = arith.constant 0 : i32
    %c0_i32_0 = arith.constant 0 : i32
    %c0_i32_1 = arith.constant 0 : i32
    %c0_i32_2 = arith.constant 0 : i32
    return %c0_i32, %c0_i32_0, %c0_i32_1 : i32, i32, i32
  }
  func.func @transform_2(%arg0: i32) -> (i32, i32, i32) {
    %c0_i32 = arith.constant 0 : i32
    %c0_i32_0 = arith.constant 0 : i32
    %c0_i32_1 = arith.constant 0 : i32
    %c0_i32_2 = arith.constant 0 : i32
    return %c0_i32, %c0_i32_0, %c0_i32_1 : i32, i32, i32
  }
  func.func @transform_3(%arg0: i32) -> (i32, i32) {
    %c0_i32 = arith.constant 0 : i32
    %c0_i32_0 = arith.constant 0 : i32
    %c0_i32_1 = arith.constant 0 : i32
    return %c0_i32, %c0_i32_0 : i32, i32
  }
  func.func @transform_4(%arg0: i32) -> (i32, i32) {
    %c0_i32 = arith.constant 0 : i32
    %c0_i32_0 = arith.constant 0 : i32
    %c0_i32_1 = arith.constant 0 : i32
    return %c0_i32, %c0_i32_0 : i32, i32
  }
  func.func @transform_5(%arg0: i32) -> (i32, i32) {
    %c0_i32 = arith.constant 0 : i32
    %c0_i32_0 = arith.constant 0 : i32
    %c0_i32_1 = arith.constant 0 : i32
    return %c0_i32, %c0_i32_0 : i32, i32
  }
  func.func @transform_6(%arg0: i32) -> (i32, i32) {
    %c0_i32 = arith.constant 0 : i32
    %c0_i32_0 = arith.constant 0 : i32
    %c0_i32_1 = arith.constant 0 : i32
    return %c0_i32, %c0_i32_0 : i32, i32
  }
  func.func @transform_7(%arg0: i32) -> (i32, i32) {
    %c0_i32 = arith.constant 0 : i32
    %c0_i32_0 = arith.constant 0 : i32
    %c0_i32_1 = arith.constant 0 : i32
    return %c0_i32, %c0_i32_0 : i32, i32
  }
  func.func @transform_8(%arg0: i32) -> (i32, i32) {
    %c0_i32 = arith.constant 0 : i32
    %c0_i32_0 = arith.constant 0 : i32
    %c0_i32_1 = arith.constant 0 : i32
    return %c0_i32, %c0_i32_0 : i32, i32
  }
  func.func @transform_9(%arg0: i32) -> (i32, i32) {
    %c0_i32 = arith.constant 0 : i32
    %c0_i32_0 = arith.constant 0 : i32
    %c0_i32_1 = arith.constant 0 : i32
    return %c0_i32, %c0_i32_0 : i32, i32
  }
  func.func @transform_10(%arg0: i32) -> (i32, i32) {
    %c0_i32 = arith.constant 0 : i32
    %c0_i32_0 = arith.constant 0 : i32
    %c0_i32_1 = arith.constant 0 : i32
    return %c0_i32, %c0_i32_0 : i32, i32
  }
  func.func @transform_11(%arg0: i32) -> (i32, i32) {
    %c0_i32 = arith.constant 0 : i32
    %c0_i32_0 = arith.constant 0 : i32
    %c0_i32_1 = arith.constant 0 : i32
    return %c0_i32, %c0_i32_0 : i32, i32
  }
  func.func @transform_12(%arg0: i32) -> (i32, i32) {
    %c0_i32 = arith.constant 0 : i32
    %c0_i32_0 = arith.constant 0 : i32
    %c0_i32_1 = arith.constant 0 : i32
    return %c0_i32, %c0_i32_0 : i32, i32
  }
  func.func @transform_13(%arg0: i32) -> (i32, i32) {
    %c0_i32 = arith.constant 0 : i32
    %c0_i32_0 = arith.constant 0 : i32
    %c0_i32_1 = arith.constant 0 : i32
    return %c0_i32, %c0_i32_0 : i32, i32
  }
  func.func @transform_14(%arg0: i32) -> (i32, i32) {
    %c0_i32 = arith.constant 0 : i32
    %c0_i32_0 = arith.constant 0 : i32
    %c0_i32_1 = arith.constant 0 : i32
    return %c0_i32, %c0_i32_0 : i32, i32
  }
  func.func @transform_15(%arg0: i32) -> (i32, i32) {
    %c0_i32 = arith.constant 0 : i32
    %c0_i32_0 = arith.constant 0 : i32
    %c0_i32_1 = arith.constant 0 : i32
    return %c0_i32, %c0_i32_0 : i32, i32
  }
  func.func @transform_16(%arg0: i32) -> (i32, i32, i32) {
    %c0_i32 = arith.constant 0 : i32
    %c0_i32_0 = arith.constant 0 : i32
    %c0_i32_1 = arith.constant 0 : i32
    %c0_i32_2 = arith.constant 0 : i32
    return %c0_i32, %c0_i32_0, %c0_i32_1 : i32, i32, i32
  }
  func.func @transform_17(%arg0: i32) -> (i32, i32, i32) {
    %c0_i32 = arith.constant 0 : i32
    %c0_i32_0 = arith.constant 0 : i32
    %c0_i32_1 = arith.constant 0 : i32
    %c0_i32_2 = arith.constant 0 : i32
    return %c0_i32, %c0_i32_0, %c0_i32_1 : i32, i32, i32
  }
}

</mosaic_0001>

<llo_original>
// kernel: tpu_custom_call.1
$region0: #{tpu_custom_call.1}
  #allocation0 [shape = 'u32[]', space=smem, size = 0x4, offset = 0x4, fixed_abs, tag = 'smem constant byte address 0x4 - core index']
  #allocation1 [shape = 'u32[144,128]{1,0:T(1,128)}', space=vmem, size = 0x12000, scoped, tag = 'internal scratch']
  #allocation2 [shape = 'f32[6,8,16]{2,1,0:T(8,128)}', space=vmem, size = 0x6000, scoped, tag = 'scratch operand']
  #allocation3 [shape = 'f32[6,8,32]{2,1,0:T(8,128)}', space=vmem, size = 0x6000, scoped, tag = 'scratch operand']
  #allocation4 [shape = 'f32[6,8,32]{2,1,0:T(8,128)}', space=vmem, size = 0x6000, scoped, tag = 'scratch operand']
  %s0 = inlined_call_operand.vmem [shape: f32[6,8,4], index: 0, kind: input, shape index: {}]
  %s1 = inlined_call_operand.vmem [shape: f32[8,8,32], index: 1, kind: input, shape index: {}]
  %s2 = inlined_call_operand.vmem [shape: f32[8,16,8], index: 2, kind: input, shape index: {}]
  %s3 = inlined_call_operand.vmem [shape: f32[8,8], index: 3, kind: input, shape index: {}]
  %s4 = inlined_call_operand.vmem [shape: f32[4,16], index: 4, kind: input, shape index: {}]
  %s5 = inlined_call_operand.vmem [shape: f32[16,16], index: 5, kind: input, shape index: {}]
  %s6 = inlined_call_operand.vmem [shape: f32[80,128], index: 6, kind: input, shape index: {}]
  %s7 = inlined_call_operand.vmem [shape: f32[1,128], index: 7, kind: input, shape index: {}]
  %s8 = inlined_call_operand.vmem [shape: f32[32,16], index: 8, kind: input, shape index: {}]
  %s9 = inlined_call_operand.vmem [shape: f32[16,10], index: 9, kind: input, shape index: {}]
  %s10 = inlined_call_operand.vmem [shape: f32[1,16], index: 10, kind: input, shape index: {}]
  %s11 = inlined_call_operand.vmem [shape: f32[96,128], index: 11, kind: input, shape index: {}]
  %s12 = inlined_call_operand.vmem [shape: f32[1,128], index: 12, kind: input, shape index: {}]
  %s13 = inlined_call_operand.vmem [shape: f32[32,5], index: 13, kind: input, shape index: {}]
  %s14 = inlined_call_operand.vmem [shape: f32[32,5], index: 14, kind: input, shape index: {}]
  %s15 = inlined_call_operand.vmem [shape: f32[1,5], index: 15, kind: input, shape index: {}]
  %s16 = inlined_call_operand.vmem [shape: f32[6,8,4], index: 16, kind: output, shape index: {0}]
  %s17 = inlined_call_operand.vmem [shape: f32[6,8,1], index: 17, kind: output, shape index: {1}]
  %18 = xla_tuple %s16, %s17
  %s19 = sld [smem:[#allocation0]]
  $region89: #{tpu_custom_call.1} parent=0
    _
  %s21 = ssub.s32 1, %s19
  %s22 = scalar_select 0, %s21, %s19
  // Predicated region
  $region2: #{tpu_custom_call.1} parent=0 // pred_check
    _
  $region3: #{tpu_custom_call.1} parent=0 // pred_check_branch
    %24 = sbr.rel (0) target = $region5
  $region4: #{tpu_custom_call.1} parent=0 // pred_region
    _
  $region5: #{tpu_custom_call.1} parent=0 // pred_fallthru
    _
  // Predicated region
  $region6: #{tpu_custom_call.1} parent=0 // pred_check
    _
  $region7: #{tpu_custom_call.1} parent=0 // pred_check_branch
    %26 = sbr.rel (0) target = $region9
  $region8: #{tpu_custom_call.1} parent=0 // pred_region
    _
  $region9: #{tpu_custom_call.1} parent=0 // pred_fallthru
    _
  // Predicated region
  $region10: #{tpu_custom_call.1} parent=0 // pred_check
    _
  $region11: #{tpu_custom_call.1} parent=0 // pred_check_branch
    %28 = sbr.rel (0) target = $region13
  $region12: #{tpu_custom_call.1} parent=0 // pred_region
    _
  $region13: #{tpu_custom_call.1} parent=0 // pred_fallthru
    _
  // Predicated region
  $region14: #{tpu_custom_call.1} parent=0 // pred_check
    _
  $region15: #{tpu_custom_call.1} parent=0 // pred_check_branch
    %30 = sbr.rel (0) target = $region17
  $region16: #{tpu_custom_call.1} parent=0 // pred_region
    _
  $region17: #{tpu_custom_call.1} parent=0 // pred_fallthru
    _
  // Predicated region
  $region18: #{tpu_custom_call.1} parent=0 // pred_check
    _
  $region19: #{tpu_custom_call.1} parent=0 // pred_check_branch
    %32 = sbr.rel (0) target = $region21
  $region20: #{tpu_custom_call.1} parent=0 // pred_region
    _
  $region21: #{tpu_custom_call.1} parent=0 // pred_fallthru
    _
  // Predicated region
  $region22: #{tpu_custom_call.1} parent=0 // pred_check
    _
  $region23: #{tpu_custom_call.1} parent=0 // pred_check_branch
    %34 = sbr.rel (0) target = $region25
  $region24: #{tpu_custom_call.1} parent=0 // pred_region
    _
  $region25: #{tpu_custom_call.1} parent=0 // pred_fallthru
    _
  // Predicated region
  $region26: #{tpu_custom_call.1} parent=0 // pred_check
    _
  $region27: #{tpu_custom_call.1} parent=0 // pred_check_branch
    %36 = sbr.rel (0) target = $region29
  $region28: #{tpu_custom_call.1} parent=0 // pred_region
    _
  $region29: #{tpu_custom_call.1} parent=0 // pred_fallthru
    _
  // Predicated region
  $region30: #{tpu_custom_call.1} parent=0 // pred_check
    _
  $region31: #{tpu_custom_call.1} parent=0 // pred_check_branch
    %38 = sbr.rel (0) target = $region33
  $region32: #{tpu_custom_call.1} parent=0 // pred_region
    _
  $region33: #{tpu_custom_call.1} parent=0 // pred_fallthru
    _
  // Predicated region
  $region34: #{tpu_custom_call.1} parent=0 // pred_check
    _
  $region35: #{tpu_custom_call.1} parent=0 // pred_check_branch
    %40 = sbr.rel (0) target = $region37
  $region36: #{tpu_custom_call.1} parent=0 // pred_region
    _
  $region37: #{tpu_custom_call.1} parent=0 // pred_fallthru
    _
  // Predicated region
  $region38: #{tpu_custom_call.1} parent=0 // pred_check
    _
  $region39: #{tpu_custom_call.1} parent=0 // pred_check_branch
    %42 = sbr.rel (0) target = $region41
  $region40: #{tpu_custom_call.1} parent=0 // pred_region
    _
  $region41: #{tpu_custom_call.1} parent=0 // pred_fallthru
    _
  // Predicated region
  $region42: #{tpu_custom_call.1} parent=0 // pred_check
    _
  $region43: #{tpu_custom_call.1} parent=0 // pred_check_branch
    %44 = sbr.rel (0) target = $region45
  $region44: #{tpu_custom_call.1} parent=0 // pred_region
    _
  $region45: #{tpu_custom_call.1} parent=0 // pred_fallthru
    _
  // Predicated region
  $region46: #{tpu_custom_call.1} parent=0 // pred_check
    _
  $region47: #{tpu_custom_call.1} parent=0 // pred_check_branch
    %46 = sbr.rel (0) target = $region49
  $region48: #{tpu_custom_call.1} parent=0 // pred_region
    _
  $region49: #{tpu_custom_call.1} parent=0 // pred_fallthru
    _
  // Predicated region
  $region50: #{tpu_custom_call.1} parent=0 // pred_check
    _
  $region51: #{tpu_custom_call.1} parent=0 // pred_check_branch
    %48 = sbr.rel (0) target = $region53
  $region52: #{tpu_custom_call.1} parent=0 // pred_region
    _
  $region53: #{tpu_custom_call.1} parent=0 // pred_fallthru
    _
  // Predicated region
  $region54: #{tpu_custom_call.1} parent=0 // pred_check
    _
  $region55: #{tpu_custom_call.1} parent=0 // pred_check_branch
    %50 = sbr.rel (0) target = $region57
  $region56: #{tpu_custom_call.1} parent=0 // pred_region
    _
  $region57: #{tpu_custom_call.1} parent=0 // pred_fallthru
    _
  // Predicated region
  $region58: #{tpu_custom_call.1} parent=0 // pred_check
    _
  $region59: #{tpu_custom_call.1} parent=0 // pred_check_branch
    %52 = sbr.rel (0) target = $region61
  $region60: #{tpu_custom_call.1} parent=0 // pred_region
    _
  $region61: #{tpu_custom_call.1} parent=0 // pred_fallthru
    _
  // Predicated region
  $region62: #{tpu_custom_call.1} parent=0 // pred_check
    _
  $region63: #{tpu_custom_call.1} parent=0 // pred_check_branch
    %54 = sbr.rel (0) target = $region65
  $region64: #{tpu_custom_call.1} parent=0 // pred_region
    _
  $region65: #{tpu_custom_call.1} parent=0 // pred_fallthru
    _
  %v55 = vld [vmem:[%s0] sm:$0xff]
  %v56 = vld [vmem:[%s0 + $0x8] sm:$0xff]
  %v57 = vld [vmem:[%s0 + $0x10] sm:$0xff]
  %v58 = vld [vmem:[%s0 + $0x18] sm:$0xff]
  %v59 = vld [vmem:[%s0 + $0x20] sm:$0xff]
  %v60 = vld [vmem:[%s0 + $0x28] sm:$0xff]
  %v61 = vld [vmem:[%s4] sm:$0xf]
  %vm62 = vcmask 31744
  %v64 = vsel %vm62, %v55, 0
  %v67 = vsel %vm62, %v56, 0
  %v70 = vsel %vm62, %v57, 0
  %v73 = vsel %vm62, %v58, 0
  %v76 = vsel %vm62, %v59, 0
  %v79 = vsel %vm62, %v60, 0
  %vm81 = vcmask 1043456
  %v83 = vsel %vm81, %v61, 0
  %85 = vmatprep.subr.mxu0 0.0
  %86 = vmatpush1.msra.mxu0 0.0
  %87 = vmatprep.subr.mxu0 0.0
  %88 = vmatpush1.msra.mxu0 0.0
  %89 = vmatprep.subr.mxu0 0.0
  %90 = vmatpush1.msra.mxu0 0.0
  %91 = vmatprep.subr.mxu0 0.0
  %92 = vmatpush1.msra.mxu0 0.0
  %93 = vmatprep.subr.mxu0 0.0
  %94 = vmatpush1.msra.mxu0 0.0
  %95 = vmatprep.subr.mxu0 0.0
  %96 = vmatpush1.msra.mxu0 0.0
  %97 = vmatprep.subr.mxu0 0.0
  %98 = vmatpush1.msra.mxu0 0.0
  %99 = vmatprep.subr.mxu0 0.0
  %100 = vmatpush1.msra.mxu0 0.0
  %101 = vmatprep.subr.mxu0 0.0
  %102 = vmatpush1.msra.mxu0 0.0
  %103 = vmatprep.subr.mxu0 0.0
  %104 = vmatpush1.msra.mxu0 0.0
  %105 = vmatprep.subr.mxu0 0.0
  %106 = vmatpush1.msra.mxu0 0.0
  %107 = vmatprep.subr.mxu0 0.0
  %108 = vmatpush1.msra.mxu0 0.0
  %109 = vmatprep.subr.mxu0 0.0
  %110 = vmatpush1.msra.mxu0 0.0
  %111 = vmatprep.subr.mxu0 0.0
  %112 = vmatpush1.msra.mxu0 0.0
  %113 = vmatprep.subr.mxu0 0.0
  %114 = vmatpush1.msra.mxu0 0.0
  %115 = vmatprep.subr.mxu0 0.0
  %116 = vmatpush1.msra.mxu0 %v83
  %117 = vmatprep.subr.mxu0 0.0
  %118 = vmatpush2.msra.mxu0 0.0
  %119 = vmatprep.subr.mxu0 0.0
  %120 = vmatpush2.msra.mxu0 0.0
  %121 = vmatprep.subr.mxu0 0.0
  %122 = vmatpush2.msra.mxu0 0.0
  %123 = vmatprep.subr.mxu0 0.0
  %124 = vmatpush2.msra.mxu0 0.0
  %125 = vmatprep.subr.mxu0 0.0
  %126 = vmatpush2.msra.mxu0 0.0
  %127 = vmatprep.subr.mxu0 0.0
  %128 = vmatpush2.msra.mxu0 0.0
  %129 = vmatprep.subr.mxu0 0.0
  %130 = vmatpush2.msra.mxu0 0.0
  %131 = vmatprep.subr.mxu0 0.0
  %132 = vmatpush2.msra.mxu0 0.0
  %133 = vmatprep.subr.mxu0 0.0
  %134 = vmatpush2.msra.mxu0 0.0
  %135 = vmatprep.subr.mxu0 0.0
  %136 = vmatpush2.msra.mxu0 0.0
  %137 = vmatprep.subr.mxu0 0.0
  %138 = vmatpush2.msra.mxu0 0.0
  %139 = vmatprep.subr.mxu0 0.0
  %140 = vmatpush2.msra.mxu0 0.0
  %141 = vmatprep.subr.mxu0 0.0
  %142 = vmatpush2.msra.mxu0 0.0
  %143 = vmatprep.subr.mxu0 0.0
  %144 = vmatpush2.msra.mxu0 0.0
  %145 = vmatprep.subr.mxu0 0.0
  %146 = vmatpush2.msra.mxu0 0.0
  %147 = vmatprep.subr.mxu0 0.0
  %148 = vmatpush2.msra.mxu0 0.0
  %149 = vmatprep.mubr.f32.mxu0 0.0
  %150 = vmatmul.mubr.f32.gmra.mxu0 %v64
  %v151 = vpop.f32.mrf.mxu0
  %v152 = vadd.f32 0.0, %v151
  %v153 = vpop.f32.mrf.mxu0
  %154 = vmatprep.mubr.f32.mxu0 0.0
  %155 = vmatmul.mubr.f32.gmra.mxu0 %v67
  %v156 = vpop.f32.mrf.mxu0
  %v157 = vadd.f32 0.0, %v156
  %v158 = vpop.f32.mrf.mxu0
  %159 = vmatprep.mubr.f32.mxu0 0.0
  %160 = vmatmul.mubr.f32.gmra.mxu0 %v70
  %v161 = vpop.f32.mrf.mxu0
  %v162 = vadd.f32 0.0, %v161
  %v163 = vpop.f32.mrf.mxu0
  %164 = vmatprep.mubr.f32.mxu0 0.0
  %165 = vmatmul.mubr.f32.gmra.mxu0 %v73
  %v166 = vpop.f32.mrf.mxu0
  %v167 = vadd.f32 0.0, %v166
  %v168 = vpop.f32.mrf.mxu0
  %169 = vmatprep.mubr.f32.mxu0 0.0
  %170 = vmatmul.mubr.f32.gmra.mxu0 %v76
  %v171 = vpop.f32.mrf.mxu0
  %v172 = vadd.f32 0.0, %v171
  %v173 = vpop.f32.mrf.mxu0
  %174 = vmatprep.mubr.f32.mxu0 0.0
  %175 = vmatmul.mubr.f32.gmra.mxu0 %v79
  %v176 = vpop.f32.mrf.mxu0
  %v177 = vadd.f32 0.0, %v176
  %v178 = vpop.f32.mrf.mxu0
  %179 = vdwg.mxu0
  %v180 = vmax.f32 %v152, 0.0
  %v181 = vmax.f32 %v157, 0.0
  %v182 = vmax.f32 %v162, 0.0
  %v183 = vmax.f32 %v167, 0.0
  %v184 = vmax.f32 %v172, 0.0
  %v185 = vmax.f32 %v177, 0.0
  %v186 = vld [vmem:[%s5] sm:$0xff]
  %v187 = vld [vmem:[%s5 + $0x8] sm:$0xff]
  %vm188 = vcmask 130048
  %v190 = vsel %vm188, %v180, 0
  %v193 = vsel %vm188, %v181, 0
  %v196 = vsel %vm188, %v182, 0
  %v199 = vsel %vm188, %v183, 0
  %v202 = vsel %vm188, %v184, 0
  %v205 = vsel %vm188, %v185, 0
  %207 = vmatprep.subr.mxu0 0.0
  %208 = vmatpush1.msra.mxu0 0.0
  %209 = vmatprep.subr.mxu0 0.0
  %210 = vmatpush1.msra.mxu0 0.0
  %211 = vmatprep.subr.mxu0 0.0
  %212 = vmatpush1.msra.mxu0 0.0
  %213 = vmatprep.subr.mxu0 0.0
  %214 = vmatpush1.msra.mxu0 0.0
  %215 = vmatprep.subr.mxu0 0.0
  %216 = vmatpush1.msra.mxu0 0.0
  %217 = vmatprep.subr.mxu0 0.0
  %218 = vmatpush1.msra.mxu0 0.0
  %219 = vmatprep.subr.mxu0 0.0
  %220 = vmatpush1.msra.mxu0 0.0
  %221 = vmatprep.subr.mxu0 0.0
  %222 = vmatpush1.msra.mxu0 0.0
  %223 = vmatprep.subr.mxu0 0.0
  %224 = vmatpush1.msra.mxu0 0.0
  %225 = vmatprep.subr.mxu0 0.0
  %226 = vmatpush1.msra.mxu0 0.0
  %227 = vmatprep.subr.mxu0 0.0
  %228 = vmatpush1.msra.mxu0 0.0
  %229 = vmatprep.subr.mxu0 0.0
  %230 = vmatpush1.msra.mxu0 0.0
  %231 = vmatprep.subr.mxu0 0.0
  %232 = vmatpush1.msra.mxu0 0.0
  %233 = vmatprep.subr.mxu0 0.0
  %234 = vmatpush1.msra.mxu0 0.0
  %235 = vmatprep.subr.mxu0 0.0
  %236 = vmatpush1.msra.mxu0 %v187
  %237 = vmatprep.subr.mxu0 0.0
  %238 = vmatpush1.msra.mxu0 %v186
  %239 = vmatprep.subr.mxu0 0.0
  %240 = vmatpush2.msra.mxu0 0.0
  %241 = vmatprep.subr.mxu0 0.0
  %242 = vmatpush2.msra.mxu0 0.0
  %243 = vmatprep.subr.mxu0 0.0
  %244 = vmatpush2.msra.mxu0 0.0
  %245 = vmatprep.subr.mxu0 0.0
  %246 = vmatpush2.msra.mxu0 0.0
  %247 = vmatprep.subr.mxu0 0.0
  %248 = vmatpush2.msra.mxu0 0.0
  %249 = vmatprep.subr.mxu0 0.0
  %250 = vmatpush2.msra.mxu0 0.0
  %251 = vmatprep.subr.mxu0 0.0
  %252 = vmatpush2.msra.mxu0 0.0
  %253 = vmatprep.subr.mxu0 0.0
  %254 = vmatpush2.msra.mxu0 0.0
  %255 = vmatprep.subr.mxu0 0.0
  %256 = vmatpush2.msra.mxu0 0.0
  %257 = vmatprep.subr.mxu0 0.0
  %258 = vmatpush2.msra.mxu0 0.0
  %259 = vmatprep.subr.mxu0 0.0
  %260 = vmatpush2.msra.mxu0 0.0
  %261 = vmatprep.subr.mxu0 0.0
  %262 = vmatpush2.msra.mxu0 0.0
  %263 = vmatprep.subr.mxu0 0.0
  %264 = vmatpush2.msra.mxu0 0.0
  %265 = vmatprep.subr.mxu0 0.0
  %266 = vmatpush2.msra.mxu0 0.0
  %267 = vmatprep.subr.mxu0 0.0
  %268 = vmatpush2.msra.mxu0 0.0
  %269 = vmatprep.subr.mxu0 0.0
  %270 = vmatpush2.msra.mxu0 0.0
  %271 = vmatprep.mubr.f32.mxu0 0.0
  %272 = vmatmul.mubr.f32.gmra.mxu0 %v190
  %v273 = vpop.f32.mrf.mxu0
  %v274 = vadd.f32 0.0, %v273
  %v275 = vpop.f32.mrf.mxu0
  %276 = vmatprep.mubr.f32.mxu0 0.0
  %277 = vmatmul.mubr.f32.gmra.mxu0 %v193
  %v278 = vpop.f32.mrf.mxu0
  %v279 = vadd.f32 0.0, %v278
  %v280 = vpop.f32.mrf.mxu0
  %281 = vmatprep.mubr.f32.mxu0 0.0
  %282 = vmatmul.mubr.f32.gmra.mxu0 %v196
  %v283 = vpop.f32.mrf.mxu0
  %v284 = vadd.f32 0.0, %v283
  %v285 = vpop.f32.mrf.mxu0
  %286 = vmatprep.mubr.f32.mxu0 0.0
  %287 = vmatmul.mubr.f32.gmra.mxu0 %v199
  %v288 = vpop.f32.mrf.mxu0
  %v289 = vadd.f32 0.0, %v288
  %v290 = vpop.f32.mrf.mxu0
  %291 = vmatprep.mubr.f32.mxu0 0.0
  %292 = vmatmul.mubr.f32.gmra.mxu0 %v202
  %v293 = vpop.f32.mrf.mxu0
  %v294 = vadd.f32 0.0, %v293
  %v295 = vpop.f32.mrf.mxu0
  %296 = vmatprep.mubr.f32.mxu0 0.0
  %297 = vmatmul.mubr.f32.gmra.mxu0 %v205
  %v298 = vpop.f32.mrf.mxu0
  %v299 = vadd.f32 0.0, %v298
  %v300 = vpop.f32.mrf.mxu0
  %301 = vdwg.mxu0
  %v302 = vmax.f32 %v274, 0.0
  %v303 = vmax.f32 %v279, 0.0
  %v304 = vmax.f32 %v284, 0.0
  %v305 = vmax.f32 %v289, 0.0
  %v306 = vmax.f32 %v294, 0.0
  %v307 = vmax.f32 %v299, 0.0
  %308 = vst.msk [vmem:[#allocation2] sm:$0xff] %vm188, %v302
  %309 = vst.msk [vmem:[#allocation2 + $0x8] sm:$0xff] %vm188, %v303
  %310 = vst.msk [vmem:[#allocation2 + $0x10] sm:$0xff] %vm188, %v304
  %311 = vst.msk [vmem:[#allocation2 + $0x18] sm:$0xff] %vm188, %v305
  %312 = vst.msk [vmem:[#allocation2 + $0x20] sm:$0xff] %vm188, %v306
  %313 = vst.msk [vmem:[#allocation2 + $0x28] sm:$0xff] %vm188, %v307
  %v314 = vld [vmem:[%s6] sm:$0xff]
  %v315 = vld [vmem:[%s6 + $0x8] sm:$0xff]
  %v316 = vld [vmem:[%s6 + $0x10] sm:$0xff]
  %v317 = vld [vmem:[%s6 + $0x18] sm:$0xff]
  %v318 = vld [vmem:[%s6 + $0x20] sm:$0xff]
  %v319 = vld [vmem:[%s6 + $0x28] sm:$0xff]
  %v320 = vld [vmem:[%s6 + $0x30] sm:$0xff]
  %v321 = vld [vmem:[%s6 + $0x38] sm:$0xff]
  %v322 = vld [vmem:[%s6 + $0x40] sm:$0xff]
  %v323 = vld [vmem:[%s6 + $0x48] sm:$0xff]
  %v324 = vld [vmem:[%s7] sm:$0x1]
  %v325 = vld [vmem:[%s8] sm:$0xff]
  %v326 = vld [vmem:[%s8 + $0x8] sm:$0xff]
  %v327 = vld [vmem:[%s8 + $0x10] sm:$0xff]
  %v328 = vld [vmem:[%s8 + $0x18] sm:$0xff]
  %v329 = vld [vmem:[%s11] sm:$0xff]
  %v330 = vld [vmem:[%s11 + $0x8] sm:$0xff]
  %v331 = vld [vmem:[%s11 + $0x10] sm:$0xff]
  %v332 = vld [vmem:[%s11 + $0x18] sm:$0xff]
  %v333 = vld [vmem:[%s11 + $0x20] sm:$0xff]
  %v334 = vld [vmem:[%s11 + $0x28] sm:$0xff]
  %v335 = vld [vmem:[%s11 + $0x30] sm:$0xff]
  %v336 = vld [vmem:[%s11 + $0x38] sm:$0xff]
  %v337 = vld [vmem:[%s11 + $0x40] sm:$0xff]
  %v338 = vld [vmem:[%s11 + $0x48] sm:$0xff]
  %v339 = vld [vmem:[%s11 + $0x50] sm:$0xff]
  %v340 = vld [vmem:[%s11 + $0x58] sm:$0xff]
  %v341 = vld [vmem:[%s12] sm:$0x1]
  %v342 = vld [vmem:[%s3] sm:$0xff]
  %v343 = vld [vmem:[%s9] sm:$0xff]
  %v344 = vld [vmem:[%s9 + $0x8] sm:$0xff]
  %v345 = vld [vmem:[%s10] sm:$0x1]
  loop: start=0, step=1, limit=6
  $region66: #{tpu_custom_call.1} parent=0 // loop_pre_header
    _
  $region67: #{tpu_custom_call.1} parent=0 // loop_header
    %s347 = sphi 0, %s351
    %p348 = scmp.ge.s32.totalorder %s347, 6
    %v352 = vphi 0.0, %v525
    %v353 = vphi 0.0, %v519
    %v354 = vphi 0.0, %v3323
    %v355 = vphi 0.0, %v3317
    %v356 = vphi 0.0, %v2579
    %v357 = vphi 0.0, %v2580
    %v358 = vphi 0.0, %v2581
    %v359 = vphi 0.0, %v2582
    %v360 = vphi 0.0, %v2583
    %v361 = vphi 0.0, %v2584
    %v362 = vphi 0.0, %v2585
    %v363 = vphi 0.0, %v2586
    %v364 = vphi 0.0, %v2587
    %v365 = vphi 0.0, %v2588
    %v366 = vphi 0.0, %v2589
    %v367 = vphi 0.0, %v2590
    %v368 = vphi 0.0, %v2591
    %v369 = vphi 0.0, %v2592
    %v370 = vphi 0.0, %v2593
    %v371 = vphi 0.0, %v2594
    %v372 = vphi 0.0, %v2673
    %v373 = vphi 0.0, %v2746
    %v374 = vphi 0.0, %v2819
    %v375 = vphi 0.0, %v2892
    %v376 = vphi 0.0, %v2965
    %v377 = vphi 0.0, %v3038
    %v378 = vphi 0.0, %v3111
    %v379 = vphi 0.0, %v3184
  $region68: #{tpu_custom_call.1} parent=0 // loop_header_branch
    %350 = sbr.rel (%p348) target = $region72
  $region69: #{tpu_custom_call.1} parent=0 // loop_body
    %s380 = smul.u32 %s347, 8
    %s381 = scalar_lea.vmem [#allocation2], %s380
    %v382 = vld [vmem:[%s381] sm:$0xff]
    %384 = vrot.lane.b32.xlu0 %v352, 48
    %v385 = vpop.permute.xlu0 %384
    %v395 = vrot.slane %v373, 7
    %vm396 = vcmask 1041409
    %v397 = vsel %vm396, %v395, %v372
    %v398 = vrot.slane %v374, 6
    %vm399 = vcmask 1042434
    %v400 = vsel %vm399, %v398, %v397
    %v401 = vrot.slane %v375, 5
    %vm402 = vcmask 1043459
    %v403 = vsel %vm402, %v401, %v400
    %v404 = vrot.slane %v376, 4
    %vm405 = vcmask 1044484
    %v406 = vsel %vm405, %v404, %v403
    %v407 = vrot.slane %v377, 3
    %vm408 = vcmask 1045509
    %v409 = vsel %vm408, %v407, %v406
    %v410 = vrot.slane %v378, 2
    %vm411 = vcmask 1046534
    %v412 = vsel %vm411, %v410, %v409
    %v413 = vrot.slane %v379, 1
    %vm414 = vcmask 1047559
    %v415 = vsel %vm414, %v413, %v412
    %416 = vrot.lane.b32.xlu0 %v415, 48
    %v417 = vpop.permute.xlu0 %416
    %v419 = vsel %vm188, %v382, %v385
    %vm420 = vcmask 392192
    %v421 = vsel %vm420, %v419, %v417
    %v423 = vlaneseq
    %v424 = vshrl.u32 %v423, 7
    %v425 = vsub.s32 0, %v424
    %v426 = vrot.slane %v324, %v425
    %vm428 = vcmask 654336
    %v430 = vsel %vm428, %v421, 0
    %432 = vmatprep.subr.mxu0 0.0
    %433 = vmatpush1.msra.mxu0 0.0
    %434 = vmatprep.subr.mxu0 0.0
    %435 = vmatpush1.msra.mxu0 0.0
    %436 = vmatprep.subr.mxu0 0.0
    %437 = vmatpush1.msra.mxu0 0.0
    %438 = vmatprep.subr.mxu0 0.0
    %439 = vmatpush1.msra.mxu0 0.0
    %440 = vmatprep.subr.mxu0 0.0
    %441 = vmatpush1.msra.mxu0 0.0
    %442 = vmatprep.subr.mxu0 0.0
    %443 = vmatpush1.msra.mxu0 0.0
    %444 = vmatprep.subr.mxu0 0.0
    %445 = vmatpush1.msra.mxu0 %v323
    %446 = vmatprep.subr.mxu0 0.0
    %447 = vmatpush1.msra.mxu0 %v322
    %448 = vmatprep.subr.mxu0 0.0
    %449 = vmatpush1.msra.mxu0 %v321
    %450 = vmatprep.subr.mxu0 0.0
    %451 = vmatpush1.msra.mxu0 %v320
    %452 = vmatprep.subr.mxu0 0.0
    %453 = vmatpush1.msra.mxu0 %v319
    %454 = vmatprep.subr.mxu0 0.0
    %455 = vmatpush1.msra.mxu0 %v318
    %456 = vmatprep.subr.mxu0 0.0
    %457 = vmatpush1.msra.mxu0 %v317
    %458 = vmatprep.subr.mxu0 0.0
    %459 = vmatpush1.msra.mxu0 %v316
    %460 = vmatprep.subr.mxu0 0.0
    %461 = vmatpush1.msra.mxu0 %v315
    %462 = vmatprep.subr.mxu0 0.0
    %463 = vmatpush1.msra.mxu0 %v314
    %464 = vmatprep.subr.mxu0 0.0
    %465 = vmatpush2.msra.mxu0 0.0
    %466 = vmatprep.subr.mxu0 0.0
    %467 = vmatpush2.msra.mxu0 0.0
    %468 = vmatprep.subr.mxu0 0.0
    %469 = vmatpush2.msra.mxu0 0.0
    %470 = vmatprep.subr.mxu0 0.0
    %471 = vmatpush2.msra.mxu0 0.0
    %472 = vmatprep.subr.mxu0 0.0
    %473 = vmatpush2.msra.mxu0 0.0
    %474 = vmatprep.subr.mxu0 0.0
    %475 = vmatpush2.msra.mxu0 0.0
    %476 = vmatprep.subr.mxu0 0.0
    %477 = vmatpush2.msra.mxu0 0.0
    %478 = vmatprep.subr.mxu0 0.0
    %479 = vmatpush2.msra.mxu0 0.0
    %480 = vmatprep.subr.mxu0 0.0
    %481 = vmatpush2.msra.mxu0 0.0
    %482 = vmatprep.subr.mxu0 0.0
    %483 = vmatpush2.msra.mxu0 0.0
    %484 = vmatprep.subr.mxu0 0.0
    %485 = vmatpush2.msra.mxu0 0.0
    %486 = vmatprep.subr.mxu0 0.0
    %487 = vmatpush2.msra.mxu0 0.0
    %488 = vmatprep.subr.mxu0 0.0
    %489 = vmatpush2.msra.mxu0 0.0
    %490 = vmatprep.subr.mxu0 0.0
    %491 = vmatpush2.msra.mxu0 0.0
    %492 = vmatprep.subr.mxu0 0.0
    %493 = vmatpush2.msra.mxu0 0.0
    %494 = vmatprep.subr.mxu0 0.0
    %495 = vmatpush2.msra.mxu0 0.0
    %496 = vmatprep.mubr.f32.mxu0 0.0
    %497 = vmatmul.mubr.f32.gmra.mxu0 %v430
    %v498 = vpop.f32.mrf.mxu0
    %v499 = vadd.f32 %v426, %v498
    %v500 = vpop.f32.mrf.mxu0
    %501 = vdwg.mxu0
    %v502 = vxor.u32 %v499, 2147483648
    %v503 = vmul.f32 %v502, 1.442695
    %v504 = vpow.pop %v503
    %v505 = vadd.f32 %v504, 1.0
    %v506 = vrcp.pop %v505
    %v507 = vmul.f32 1.0, %v506
    %v508 = vtanh.pop %v499
    %v509 = vmul.f32 %v507, %v353
    %511 = vrot.lane.b32.xlu0 %v508, 64
    %v512 = vpop.permute.xlu0 %511
    %v514 = vmul.f32 %v507, %v512
    %516 = vrot.lane.b32.xlu0 %v514, 32
    %v517 = vpop.permute.xlu0 %516
    %v519 = vadd.f32 %v509, %v517
    %v520 = vtanh.pop %v519
    %522 = vrot.lane.b32.xlu0 %v520, 64
    %v523 = vpop.permute.xlu0 %522
    %v525 = vmul.f32 %v507, %v523
    %527 = vrot.lane.b32.xlu0 %v525, 32
    %v528 = vpop.permute.xlu0 %527
    %vm529 = vcmask 261120
    %v530 = vsel %vm529, %v528, 0
    %532 = vmatprep.subr.mxu0 0.0
    %533 = vmatpush1.msra.mxu0 0.0
    %534 = vmatprep.subr.mxu0 0.0
    %535 = vmatpush1.msra.mxu0 0.0
    %536 = vmatprep.subr.mxu0 0.0
    %537 = vmatpush1.msra.mxu0 0.0
    %538 = vmatprep.subr.mxu0 0.0
    %539 = vmatpush1.msra.mxu0 0.0
    %540 = vmatprep.subr.mxu0 0.0
    %541 = vmatpush1.msra.mxu0 0.0
    %542 = vmatprep.subr.mxu0 0.0
    %543 = vmatpush1.msra.mxu0 0.0
    %544 = vmatprep.subr.mxu0 0.0
    %545 = vmatpush1.msra.mxu0 0.0
    %546 = vmatprep.subr.mxu0 0.0
    %547 = vmatpush1.msra.mxu0 0.0
    %548 = vmatprep.subr.mxu0 0.0
    %549 = vmatpush1.msra.mxu0 0.0
    %550 = vmatprep.subr.mxu0 0.0
    %551 = vmatpush1.msra.mxu0 0.0
    %552 = vmatprep.subr.mxu0 0.0
    %553 = vmatpush1.msra.mxu0 0.0
    %554 = vmatprep.subr.mxu0 0.0
    %555 = vmatpush1.msra.mxu0 0.0
    %556 = vmatprep.subr.mxu0 0.0
    %557 = vmatpush1.msra.mxu0 %v328
    %558 = vmatprep.subr.mxu0 0.0
    %559 = vmatpush1.msra.mxu0 %v327
    %560 = vmatprep.subr.mxu0 0.0
    %561 = vmatpush1.msra.mxu0 %v326
    %562 = vmatprep.subr.mxu0 0.0
    %563 = vmatpush1.msra.mxu0 %v325
    %564 = vmatprep.subr.mxu0 0.0
    %565 = vmatpush2.msra.mxu0 0.0
    %566 = vmatprep.subr.mxu0 0.0
    %567 = vmatpush2.msra.mxu0 0.0
    %568 = vmatprep.subr.mxu0 0.0
    %569 = vmatpush2.msra.mxu0 0.0
    %570 = vmatprep.subr.mxu0 0.0
    %571 = vmatpush2.msra.mxu0 0.0
    %572 = vmatprep.subr.mxu0 0.0
    %573 = vmatpush2.msra.mxu0 0.0
    %574 = vmatprep.subr.mxu0 0.0
    %575 = vmatpush2.msra.mxu0 0.0
    %576 = vmatprep.subr.mxu0 0.0
    %577 = vmatpush2.msra.mxu0 0.0
    %578 = vmatprep.subr.mxu0 0.0
    %579 = vmatpush2.msra.mxu0 0.0
    %580 = vmatprep.subr.mxu0 0.0
    %581 = vmatpush2.msra.mxu0 0.0
    %582 = vmatprep.subr.mxu0 0.0
    %583 = vmatpush2.msra.mxu0 0.0
    %584 = vmatprep.subr.mxu0 0.0
    %585 = vmatpush2.msra.mxu0 0.0
    %586 = vmatprep.subr.mxu0 0.0
    %587 = vmatpush2.msra.mxu0 0.0
    %588 = vmatprep.subr.mxu0 0.0
    %589 = vmatpush2.msra.mxu0 0.0
    %590 = vmatprep.subr.mxu0 0.0
    %591 = vmatpush2.msra.mxu0 0.0
    %592 = vmatprep.subr.mxu0 0.0
    %593 = vmatpush2.msra.mxu0 0.0
    %594 = vmatprep.subr.mxu0 0.0
    %595 = vmatpush2.msra.mxu0 0.0
    %596 = vmatprep.mubr.f32.mxu0 0.0
    %597 = vmatmul.mubr.f32.gmra.mxu0 %v530
    %v598 = vpop.f32.mrf.mxu0
    %v599 = vadd.f32 0.0, %v598
    %v600 = vpop.f32.mrf.mxu0
    %601 = vdwg.mxu0
    %v610 = vrot.slane %v357, 7
    %v611 = vsel %vm396, %v610, %v356
    %v612 = vrot.slane %v358, 6
    %v613 = vsel %vm399, %v612, %v611
    %v614 = vrot.slane %v359, 5
    %v615 = vsel %vm402, %v614, %v613
    %v616 = vrot.slane %v360, 4
    %v617 = vsel %vm405, %v616, %v615
    %v618 = vrot.slane %v361, 3
    %v619 = vsel %vm408, %v618, %v617
    %v620 = vrot.slane %v362, 2
    %v621 = vsel %vm411, %v620, %v619
    %v622 = vrot.slane %v363, 1
    %v623 = vsel %vm414, %v622, %v621
    %624 = vrot.lane.b32.xlu0 %v623, 2
    %v625 = vpop.permute.xlu0 %624
    %vm627 = vcmask 15360
    %v628 = vsel %vm627, 0.0, %v625
    %vm629 = vcmask 80896
    %v630 = vsel %vm629, %v628, 0.0
    %v639 = vrot.slane %v365, 7
    %v640 = vsel %vm396, %v639, %v364
    %v641 = vrot.slane %v366, 6
    %v642 = vsel %vm399, %v641, %v640
    %v643 = vrot.slane %v367, 5
    %v644 = vsel %vm402, %v643, %v642
    %v645 = vrot.slane %v368, 4
    %v646 = vsel %vm405, %v645, %v644
    %v647 = vrot.slane %v369, 3
    %v648 = vsel %vm408, %v647, %v646
    %v649 = vrot.slane %v370, 2
    %v650 = vsel %vm411, %v649, %v648
    %v651 = vrot.slane %v371, 1
    %v652 = vsel %vm414, %v651, %v650
    %653 = vrot.lane.b32.xlu0 %v652, 2
    %v654 = vpop.permute.xlu0 %653
    %v656 = vsel %vm627, 0.0, %v654
    %v657 = vsel %vm629, %v656, 0.0
    %v659 = vcombine.high %v630, %v630
    %v661 = vunpack.c.l.s4 1966171168
    %v662 = vunpack.c.0.s8 %v661
    %v663 = vlaneseq
    %v664 = vshrl.u32 %v663, 7
    %v665 = vsub.s32 %v662, %v664
    %v666 = vrot.slane %v630, %v665
    %v668 = vunpack.c.l.s4 1966171168
    %v669 = vunpack.c.0.s8 %v668
    %v670 = vlaneseq
    %v671 = vshrl.u32 %v670, 7
    %v672 = vsub.s32 %v669, %v671
    %v673 = vrot.slane %v659, %v672
    %v674 = vcombine.high %v666, %v666
    %v675 = vcombine.high %v673, %v673
    %v677 = vunpack.c.l.s4 1966171168
    %v678 = vunpack.c.0.s8 %v677
    %v679 = vlaneseq
    %v680 = vshrl.u32 %v679, 7
    %v681 = vsub.s32 %v678, %v680
    %v682 = vrot.slane %v666, %v681
    %v684 = vunpack.c.l.s4 1966171168
    %v685 = vunpack.c.0.s8 %v684
    %v686 = vlaneseq
    %v687 = vshrl.u32 %v686, 7
    %v688 = vsub.s32 %v685, %v687
    %v689 = vrot.slane %v673, %v688
    %v691 = vunpack.c.l.s4 1966171168
    %v692 = vunpack.c.0.s8 %v691
    %v693 = vlaneseq
    %v694 = vshrl.u32 %v693, 7
    %v695 = vsub.s32 %v692, %v694
    %v696 = vrot.slane %v674, %v695
    %v698 = vunpack.c.l.s4 1966171168
    %v699 = vunpack.c.0.s8 %v698
    %v700 = vlaneseq
    %v701 = vshrl.u32 %v700, 7
    %v702 = vsub.s32 %v699, %v701
    %v703 = vrot.slane %v675, %v702
    %v704 = vcombine.high %v682, %v682
    %v705 = vcombine.high %v689, %v689
    %v706 = vcombine.high %v696, %v696
    %v707 = vcombine.high %v703, %v703
    %v717 = vcombine.high %v657, %v657
    %v719 = vunpack.c.l.s4 1966171168
    %v720 = vunpack.c.0.s8 %v719
    %v721 = vlaneseq
    %v722 = vshrl.u32 %v721, 7
    %v723 = vsub.s32 %v720, %v722
    %v724 = vrot.slane %v657, %v723
    %v726 = vunpack.c.l.s4 1966171168
    %v727 = vunpack.c.0.s8 %v726
    %v728 = vlaneseq
    %v729 = vshrl.u32 %v728, 7
    %v730 = vsub.s32 %v727, %v729
    %v731 = vrot.slane %v717, %v730
    %v732 = vcombine.high %v724, %v724
    %v733 = vcombine.high %v731, %v731
    %v735 = vunpack.c.l.s4 1966171168
    %v736 = vunpack.c.0.s8 %v735
    %v737 = vlaneseq
    %v738 = vshrl.u32 %v737, 7
    %v739 = vsub.s32 %v736, %v738
    %v740 = vrot.slane %v724, %v739
    %v742 = vunpack.c.l.s4 1966171168
    %v743 = vunpack.c.0.s8 %v742
    %v744 = vlaneseq
    %v745 = vshrl.u32 %v744, 7
    %v746 = vsub.s32 %v743, %v745
    %v747 = vrot.slane %v731, %v746
    %v749 = vunpack.c.l.s4 1966171168
    %v750 = vunpack.c.0.s8 %v749
    %v751 = vlaneseq
    %v752 = vshrl.u32 %v751, 7
    %v753 = vsub.s32 %v750, %v752
    %v754 = vrot.slane %v732, %v753
    %v756 = vunpack.c.l.s4 1966171168
    %v757 = vunpack.c.0.s8 %v756
    %v758 = vlaneseq
    %v759 = vshrl.u32 %v758, 7
    %v760 = vsub.s32 %v757, %v759
    %v761 = vrot.slane %v733, %v760
    %v762 = vcombine.high %v740, %v740
    %v763 = vcombine.high %v747, %v747
    %v764 = vcombine.high %v754, %v754
    %v765 = vcombine.high %v761, %v761
    %v766 = vlaneseq
    %v767 = vshrl.u32 %v766, 7
    %v768 = vsub.s32 0, %v767
    %v769 = vrot.slane %v682, %v768
    %v770 = vlaneseq
    %v771 = vshrl.u32 %v770, 7
    %v772 = vsub.s32 0, %v771
    %v773 = vrot.slane %v696, %v772
    %v774 = vlaneseq
    %v775 = vshrl.u32 %v774, 7
    %v776 = vsub.s32 0, %v775
    %v777 = vrot.slane %v704, %v776
    %v778 = vlaneseq
    %v779 = vshrl.u32 %v778, 7
    %v780 = vsub.s32 0, %v779
    %v781 = vrot.slane %v706, %v780
    %v782 = vlaneseq
    %v783 = vshrl.u32 %v782, 7
    %v784 = vsub.s32 0, %v783
    %v785 = vrot.slane %v689, %v784
    %v786 = vlaneseq
    %v787 = vshrl.u32 %v786, 7
    %v788 = vsub.s32 0, %v787
    %v789 = vrot.slane %v703, %v788
    %v790 = vlaneseq
    %v791 = vshrl.u32 %v790, 7
    %v792 = vsub.s32 0, %v791
    %v793 = vrot.slane %v705, %v792
    %v794 = vlaneseq
    %v795 = vshrl.u32 %v794, 7
    %v796 = vsub.s32 0, %v795
    %v797 = vrot.slane %v707, %v796
    %798 = vrot.lane.b32.xlu0 %v769, 127
    %v799 = vpop.permute.xlu0 %798
    %800 = vrot.lane.b32.xlu0 %v773, 127
    %v801 = vpop.permute.xlu0 %800
    %802 = vrot.lane.b32.xlu0 %v777, 127
    %v803 = vpop.permute.xlu0 %802
    %804 = vrot.lane.b32.xlu0 %v781, 127
    %v805 = vpop.permute.xlu0 %804
    %806 = vrot.lane.b32.xlu0 %v785, 127
    %v807 = vpop.permute.xlu0 %806
    %808 = vrot.lane.b32.xlu0 %v789, 127
    %v809 = vpop.permute.xlu0 %808
    %810 = vrot.lane.b32.xlu0 %v793, 127
    %v811 = vpop.permute.xlu0 %810
    %812 = vrot.lane.b32.xlu0 %v797, 127
    %v813 = vpop.permute.xlu0 %812
    %822 = vrot.lane.b32.xlu0 %v769, 126
    %v823 = vpop.permute.xlu0 %822
    %824 = vrot.lane.b32.xlu0 %v773, 126
    %v825 = vpop.permute.xlu0 %824
    %826 = vrot.lane.b32.xlu0 %v777, 126
    %v827 = vpop.permute.xlu0 %826
    %828 = vrot.lane.b32.xlu0 %v781, 126
    %v829 = vpop.permute.xlu0 %828
    %830 = vrot.lane.b32.xlu0 %v785, 126
    %v831 = vpop.permute.xlu0 %830
    %832 = vrot.lane.b32.xlu0 %v789, 126
    %v833 = vpop.permute.xlu0 %832
    %834 = vrot.lane.b32.xlu0 %v793, 126
    %v835 = vpop.permute.xlu0 %834
    %836 = vrot.lane.b32.xlu0 %v797, 126
    %v837 = vpop.permute.xlu0 %836
    %846 = vrot.lane.b32.xlu0 %v769, 125
    %v847 = vpop.permute.xlu0 %846
    %848 = vrot.lane.b32.xlu0 %v773, 125
    %v849 = vpop.permute.xlu0 %848
    %850 = vrot.lane.b32.xlu0 %v777, 125
    %v851 = vpop.permute.xlu0 %850
    %852 = vrot.lane.b32.xlu0 %v781, 125
    %v853 = vpop.permute.xlu0 %852
    %854 = vrot.lane.b32.xlu0 %v785, 125
    %v855 = vpop.permute.xlu0 %854
    %856 = vrot.lane.b32.xlu0 %v789, 125
    %v857 = vpop.permute.xlu0 %856
    %858 = vrot.lane.b32.xlu0 %v793, 125
    %v859 = vpop.permute.xlu0 %858
    %860 = vrot.lane.b32.xlu0 %v797, 125
    %v861 = vpop.permute.xlu0 %860
    %870 = vrot.lane.b32.xlu0 %v769, 124
    %v871 = vpop.permute.xlu0 %870
    %872 = vrot.lane.b32.xlu0 %v773, 124
    %v873 = vpop.permute.xlu0 %872
    %874 = vrot.lane.b32.xlu0 %v777, 124
    %v875 = vpop.permute.xlu0 %874
    %876 = vrot.lane.b32.xlu0 %v781, 124
    %v877 = vpop.permute.xlu0 %876
    %878 = vrot.lane.b32.xlu0 %v785, 124
    %v879 = vpop.permute.xlu0 %878
    %880 = vrot.lane.b32.xlu0 %v789, 124
    %v881 = vpop.permute.xlu0 %880
    %882 = vrot.lane.b32.xlu0 %v793, 124
    %v883 = vpop.permute.xlu0 %882
    %884 = vrot.lane.b32.xlu0 %v797, 124
    %v885 = vpop.permute.xlu0 %884
    %v894 = vlaneseq
    %v895 = vshrl.u32 %v894, 7
    %v896 = vsub.s32 0, %v895
    %v897 = vrot.slane %v740, %v896
    %v898 = vlaneseq
    %v899 = vshrl.u32 %v898, 7
    %v900 = vsub.s32 0, %v899
    %v901 = vrot.slane %v754, %v900
    %v902 = vlaneseq
    %v903 = vshrl.u32 %v902, 7
    %v904 = vsub.s32 0, %v903
    %v905 = vrot.slane %v762, %v904
    %v906 = vlaneseq
    %v907 = vshrl.u32 %v906, 7
    %v908 = vsub.s32 0, %v907
    %v909 = vrot.slane %v764, %v908
    %v910 = vlaneseq
    %v911 = vshrl.u32 %v910, 7
    %v912 = vsub.s32 0, %v911
    %v913 = vrot.slane %v747, %v912
    %v914 = vlaneseq
    %v915 = vshrl.u32 %v914, 7
    %v916 = vsub.s32 0, %v915
    %v917 = vrot.slane %v761, %v916
    %v918 = vlaneseq
    %v919 = vshrl.u32 %v918, 7
    %v920 = vsub.s32 0, %v919
    %v921 = vrot.slane %v763, %v920
    %v922 = vlaneseq
    %v923 = vshrl.u32 %v922, 7
    %v924 = vsub.s32 0, %v923
    %v925 = vrot.slane %v765, %v924
    %934 = vrot.lane.b32.xlu0 %v897, 127
    %v935 = vpop.permute.xlu0 %934
    %936 = vrot.lane.b32.xlu0 %v901, 127
    %v937 = vpop.permute.xlu0 %936
    %938 = vrot.lane.b32.xlu0 %v905, 127
    %v939 = vpop.permute.xlu0 %938
    %940 = vrot.lane.b32.xlu0 %v909, 127
    %v941 = vpop.permute.xlu0 %940
    %942 = vrot.lane.b32.xlu0 %v913, 127
    %v943 = vpop.permute.xlu0 %942
    %944 = vrot.lane.b32.xlu0 %v917, 127
    %v945 = vpop.permute.xlu0 %944
    %946 = vrot.lane.b32.xlu0 %v921, 127
    %v947 = vpop.permute.xlu0 %946
    %948 = vrot.lane.b32.xlu0 %v925, 127
    %v949 = vpop.permute.xlu0 %948
    %958 = vrot.lane.b32.xlu0 %v897, 126
    %v959 = vpop.permute.xlu0 %958
    %960 = vrot.lane.b32.xlu0 %v901, 126
    %v961 = vpop.permute.xlu0 %960
    %962 = vrot.lane.b32.xlu0 %v905, 126
    %v963 = vpop.permute.xlu0 %962
    %964 = vrot.lane.b32.xlu0 %v909, 126
    %v965 = vpop.permute.xlu0 %964
    %966 = vrot.lane.b32.xlu0 %v913, 126
    %v967 = vpop.permute.xlu0 %966
    %968 = vrot.lane.b32.xlu0 %v917, 126
    %v969 = vpop.permute.xlu0 %968
    %970 = vrot.lane.b32.xlu0 %v921, 126
    %v971 = vpop.permute.xlu0 %970
    %972 = vrot.lane.b32.xlu0 %v925, 126
    %v973 = vpop.permute.xlu0 %972
    %982 = vrot.lane.b32.xlu0 %v897, 125
    %v983 = vpop.permute.xlu0 %982
    %984 = vrot.lane.b32.xlu0 %v901, 125
    %v985 = vpop.permute.xlu0 %984
    %986 = vrot.lane.b32.xlu0 %v905, 125
    %v987 = vpop.permute.xlu0 %986
    %988 = vrot.lane.b32.xlu0 %v909, 125
    %v989 = vpop.permute.xlu0 %988
    %990 = vrot.lane.b32.xlu0 %v913, 125
    %v991 = vpop.permute.xlu0 %990
    %992 = vrot.lane.b32.xlu0 %v917, 125
    %v993 = vpop.permute.xlu0 %992
    %994 = vrot.lane.b32.xlu0 %v921, 125
    %v995 = vpop.permute.xlu0 %994
    %996 = vrot.lane.b32.xlu0 %v925, 125
    %v997 = vpop.permute.xlu0 %996
    %1006 = vrot.lane.b32.xlu0 %v897, 124
    %v1007 = vpop.permute.xlu0 %1006
    %1008 = vrot.lane.b32.xlu0 %v901, 124
    %v1009 = vpop.permute.xlu0 %1008
    %1010 = vrot.lane.b32.xlu0 %v905, 124
    %v1011 = vpop.permute.xlu0 %1010
    %1012 = vrot.lane.b32.xlu0 %v909, 124
    %v1013 = vpop.permute.xlu0 %1012
    %1014 = vrot.lane.b32.xlu0 %v913, 124
    %v1015 = vpop.permute.xlu0 %1014
    %1016 = vrot.lane.b32.xlu0 %v917, 124
    %v1017 = vpop.permute.xlu0 %1016
    %1018 = vrot.lane.b32.xlu0 %v921, 124
    %v1019 = vpop.permute.xlu0 %1018
    %1020 = vrot.lane.b32.xlu0 %v925, 124
    %v1021 = vpop.permute.xlu0 %1020
    %vm1030 = vcmask 1040384
    %v1031 = vsel %vm1030, %v682, %v799
    %v1032 = vsel %vm1030, %v696, %v801
    %v1033 = vsel %vm1030, %v704, %v803
    %v1034 = vsel %vm1030, %v706, %v805
    %v1035 = vsel %vm1030, %v689, %v807
    %v1036 = vsel %vm1030, %v703, %v809
    %v1037 = vsel %vm1030, %v705, %v811
    %v1038 = vsel %vm1030, %v707, %v813
    %vm1039 = vcmask 1041408
    %v1040 = vsel %vm1039, %v1031, %v823
    %v1041 = vsel %vm1039, %v1032, %v825
    %v1042 = vsel %vm1039, %v1033, %v827
    %v1043 = vsel %vm1039, %v1034, %v829
    %v1044 = vsel %vm1039, %v1035, %v831
    %v1045 = vsel %vm1039, %v1036, %v833
    %v1046 = vsel %vm1039, %v1037, %v835
    %v1047 = vsel %vm1039, %v1038, %v837
    %vm1048 = vcmask 1042432
    %v1049 = vsel %vm1048, %v1040, %v847
    %v1050 = vsel %vm1048, %v1041, %v849
    %v1051 = vsel %vm1048, %v1042, %v851
    %v1052 = vsel %vm1048, %v1043, %v853
    %v1053 = vsel %vm1048, %v1044, %v855
    %v1054 = vsel %vm1048, %v1045, %v857
    %v1055 = vsel %vm1048, %v1046, %v859
    %v1056 = vsel %vm1048, %v1047, %v861
    %v1057 = vsel %vm81, %v1049, %v871
    %v1058 = vsel %vm81, %v1050, %v873
    %v1059 = vsel %vm81, %v1051, %v875
    %v1060 = vsel %vm81, %v1052, %v877
    %v1061 = vsel %vm81, %v1053, %v879
    %v1062 = vsel %vm81, %v1054, %v881
    %v1063 = vsel %vm81, %v1055, %v883
    %v1064 = vsel %vm81, %v1056, %v885
    %vm1065 = vcmask 1044480
    %v1066 = vsel %vm1065, %v1057, %v897
    %v1067 = vsel %vm1065, %v1058, %v901
    %v1068 = vsel %vm1065, %v1059, %v905
    %v1069 = vsel %vm1065, %v1060, %v909
    %v1070 = vsel %vm1065, %v1061, %v913
    %v1071 = vsel %vm1065, %v1062, %v917
    %v1072 = vsel %vm1065, %v1063, %v921
    %v1073 = vsel %vm1065, %v1064, %v925
    %vm1074 = vcmask 1045504
    %v1075 = vsel %vm1074, %v1066, %v935
    %v1076 = vsel %vm1074, %v1067, %v937
    %v1077 = vsel %vm1074, %v1068, %v939
    %v1078 = vsel %vm1074, %v1069, %v941
    %v1079 = vsel %vm1074, %v1070, %v943
    %v1080 = vsel %vm1074, %v1071, %v945
    %v1081 = vsel %vm1074, %v1072, %v947
    %v1082 = vsel %vm1074, %v1073, %v949
    %vm1083 = vcmask 1046528
    %v1084 = vsel %vm1083, %v1075, %v959
    %v1085 = vsel %vm1083, %v1076, %v961
    %v1086 = vsel %vm1083, %v1077, %v963
    %v1087 = vsel %vm1083, %v1078, %v965
    %v1088 = vsel %vm1083, %v1079, %v967
    %v1089 = vsel %vm1083, %v1080, %v969
    %v1090 = vsel %vm1083, %v1081, %v971
    %v1091 = vsel %vm1083, %v1082, %v973
    %v1092 = vsel %vm1030, %v983, %v1007
    %v1093 = vsel %vm1030, %v985, %v1009
    %v1094 = vsel %vm1030, %v987, %v1011
    %v1095 = vsel %vm1030, %v989, %v1013
    %v1096 = vsel %vm1030, %v991, %v1015
    %v1097 = vsel %vm1030, %v993, %v1017
    %v1098 = vsel %vm1030, %v995, %v1019
    %v1099 = vsel %vm1030, %v997, %v1021
    %v1101 = vsel %vm629, %v343, 0
    %v1104 = vsel %vm629, %v344, 0
    %v1107 = vsel %vm1039, %v1092, 0
    %1109 = vmatprep.subr.mxu0 0.0
    %1110 = vmatpush1.msra.mxu0 0.0
    %1111 = vmatprep.subr.mxu0 0.0
    %1112 = vmatpush1.msra.mxu0 0.0
    %1113 = vmatprep.subr.mxu0 0.0
    %1114 = vmatpush1.msra.mxu0 0.0
    %1115 = vmatprep.subr.mxu0 0.0
    %1116 = vmatpush1.msra.mxu0 0.0
    %1117 = vmatprep.subr.mxu0 0.0
    %1118 = vmatpush1.msra.mxu0 0.0
    %1119 = vmatprep.subr.mxu0 0.0
    %1120 = vmatpush1.msra.mxu0 0.0
    %1121 = vmatprep.subr.mxu0 0.0
    %1122 = vmatpush1.msra.mxu0 0.0
    %1123 = vmatprep.subr.mxu0 0.0
    %1124 = vmatpush1.msra.mxu0 0.0
    %1125 = vmatprep.subr.mxu0 0.0
    %1126 = vmatpush1.msra.mxu0 0.0
    %1127 = vmatprep.subr.mxu0 0.0
    %1128 = vmatpush1.msra.mxu0 0.0
    %1129 = vmatprep.subr.mxu0 0.0
    %1130 = vmatpush1.msra.mxu0 0.0
    %1131 = vmatprep.subr.mxu0 0.0
    %1132 = vmatpush1.msra.mxu0 0.0
    %1133 = vmatprep.subr.mxu0 0.0
    %1134 = vmatpush1.msra.mxu0 0.0
    %1135 = vmatprep.subr.mxu0 0.0
    %1136 = vmatpush1.msra.mxu0 0.0
    %1137 = vmatprep.subr.mxu0 0.0
    %1138 = vmatpush1.msra.mxu0 %v1107
    %1139 = vmatprep.subr.mxu0 0.0
    %1140 = vmatpush1.msra.mxu0 %v1084
    %1141 = vmatprep.subr.mxu0 0.0
    %1142 = vmatpush2.msra.mxu0 0.0
    %1143 = vmatprep.subr.mxu0 0.0
    %1144 = vmatpush2.msra.mxu0 0.0
    %1145 = vmatprep.subr.mxu0 0.0
    %1146 = vmatpush2.msra.mxu0 0.0
    %1147 = vmatprep.subr.mxu0 0.0
    %1148 = vmatpush2.msra.mxu0 0.0
    %1149 = vmatprep.subr.mxu0 0.0
    %1150 = vmatpush2.msra.mxu0 0.0
    %1151 = vmatprep.subr.mxu0 0.0
    %1152 = vmatpush2.msra.mxu0 0.0
    %1153 = vmatprep.subr.mxu0 0.0
    %1154 = vmatpush2.msra.mxu0 0.0
    %1155 = vmatprep.subr.mxu0 0.0
    %1156 = vmatpush2.msra.mxu0 0.0
    %1157 = vmatprep.subr.mxu0 0.0
    %1158 = vmatpush2.msra.mxu0 0.0
    %1159 = vmatprep.subr.mxu0 0.0
    %1160 = vmatpush2.msra.mxu0 0.0
    %1161 = vmatprep.subr.mxu0 0.0
    %1162 = vmatpush2.msra.mxu0 0.0
    %1163 = vmatprep.subr.mxu0 0.0
    %1164 = vmatpush2.msra.mxu0 0.0
    %1165 = vmatprep.subr.mxu0 0.0
    %1166 = vmatpush2.msra.mxu0 0.0
    %1167 = vmatprep.subr.mxu0 0.0
    %1168 = vmatpush2.msra.mxu0 0.0
    %1169 = vmatprep.subr.mxu0 0.0
    %1170 = vmatpush2.msra.mxu0 0.0
    %1171 = vmatprep.subr.mxu0 0.0
    %1172 = vmatpush2.msra.mxu0 0.0
    %1173 = vmatprep.mubr.f32.mxu0 0.0
    %1174 = vmatmul.mubr.f32.gmra.mxu0 %v1101
    %v1175 = vpop.f32.mrf.mxu0
    %v1176 = vadd.f32 0.0, %v1175
    %v1177 = vpop.f32.mrf.mxu0
    %1178 = vmatprep.mubr.f32.mxu0 0.0
    %1179 = vmatmul.mubr.f32.gmra.mxu0 %v1104
    %v1180 = vpop.f32.mrf.mxu0
    %v1181 = vadd.f32 0.0, %v1180
    %v1182 = vpop.f32.mrf.mxu0
    %1183 = vdwg.mxu0
    %v1185 = vsel %vm1039, %v1093, 0
    %1187 = vmatprep.subr.mxu0 0.0
    %1188 = vmatpush1.msra.mxu0 0.0
    %1189 = vmatprep.subr.mxu0 0.0
    %1190 = vmatpush1.msra.mxu0 0.0
    %1191 = vmatprep.subr.mxu0 0.0
    %1192 = vmatpush1.msra.mxu0 0.0
    %1193 = vmatprep.subr.mxu0 0.0
    %1194 = vmatpush1.msra.mxu0 0.0
    %1195 = vmatprep.subr.mxu0 0.0
    %1196 = vmatpush1.msra.mxu0 0.0
    %1197 = vmatprep.subr.mxu0 0.0
    %1198 = vmatpush1.msra.mxu0 0.0
    %1199 = vmatprep.subr.mxu0 0.0
    %1200 = vmatpush1.msra.mxu0 0.0
    %1201 = vmatprep.subr.mxu0 0.0
    %1202 = vmatpush1.msra.mxu0 0.0
    %1203 = vmatprep.subr.mxu0 0.0
    %1204 = vmatpush1.msra.mxu0 0.0
    %1205 = vmatprep.subr.mxu0 0.0
    %1206 = vmatpush1.msra.mxu0 0.0
    %1207 = vmatprep.subr.mxu0 0.0
    %1208 = vmatpush1.msra.mxu0 0.0
    %1209 = vmatprep.subr.mxu0 0.0
    %1210 = vmatpush1.msra.mxu0 0.0
    %1211 = vmatprep.subr.mxu0 0.0
    %1212 = vmatpush1.msra.mxu0 0.0
    %1213 = vmatprep.subr.mxu0 0.0
    %1214 = vmatpush1.msra.mxu0 0.0
    %1215 = vmatprep.subr.mxu0 0.0
    %1216 = vmatpush1.msra.mxu0 %v1185
    %1217 = vmatprep.subr.mxu0 0.0
    %1218 = vmatpush1.msra.mxu0 %v1085
    %1219 = vmatprep.subr.mxu0 0.0
    %1220 = vmatpush2.msra.mxu0 0.0
    %1221 = vmatprep.subr.mxu0 0.0
    %1222 = vmatpush2.msra.mxu0 0.0
    %1223 = vmatprep.subr.mxu0 0.0
    %1224 = vmatpush2.msra.mxu0 0.0
    %1225 = vmatprep.subr.mxu0 0.0
    %1226 = vmatpush2.msra.mxu0 0.0
    %1227 = vmatprep.subr.mxu0 0.0
    %1228 = vmatpush2.msra.mxu0 0.0
    %1229 = vmatprep.subr.mxu0 0.0
    %1230 = vmatpush2.msra.mxu0 0.0
    %1231 = vmatprep.subr.mxu0 0.0
    %1232 = vmatpush2.msra.mxu0 0.0
    %1233 = vmatprep.subr.mxu0 0.0
    %1234 = vmatpush2.msra.mxu0 0.0
    %1235 = vmatprep.subr.mxu0 0.0
    %1236 = vmatpush2.msra.mxu0 0.0
    %1237 = vmatprep.subr.mxu0 0.0
    %1238 = vmatpush2.msra.mxu0 0.0
    %1239 = vmatprep.subr.mxu0 0.0
    %1240 = vmatpush2.msra.mxu0 0.0
    %1241 = vmatprep.subr.mxu0 0.0
    %1242 = vmatpush2.msra.mxu0 0.0
    %1243 = vmatprep.subr.mxu0 0.0
    %1244 = vmatpush2.msra.mxu0 0.0
    %1245 = vmatprep.subr.mxu0 0.0
    %1246 = vmatpush2.msra.mxu0 0.0
    %1247 = vmatprep.subr.mxu0 0.0
    %1248 = vmatpush2.msra.mxu0 0.0
    %1249 = vmatprep.subr.mxu0 0.0
    %1250 = vmatpush2.msra.mxu0 0.0
    %1251 = vmatprep.mubr.f32.mxu0 0.0
    %1252 = vmatmul.mubr.f32.gmra.mxu0 %v1101
    %v1253 = vpop.f32.mrf.mxu0
    %v1254 = vadd.f32 0.0, %v1253
    %v1255 = vpop.f32.mrf.mxu0
    %1256 = vmatprep.mubr.f32.mxu0 0.0
    %1257 = vmatmul.mubr.f32.gmra.mxu0 %v1104
    %v1258 = vpop.f32.mrf.mxu0
    %v1259 = vadd.f32 0.0, %v1258
    %v1260 = vpop.f32.mrf.mxu0
    %1261 = vdwg.mxu0
    %v1263 = vsel %vm1039, %v1094, 0
    %1265 = vmatprep.subr.mxu0 0.0
    %1266 = vmatpush1.msra.mxu0 0.0
    %1267 = vmatprep.subr.mxu0 0.0
    %1268 = vmatpush1.msra.mxu0 0.0
    %1269 = vmatprep.subr.mxu0 0.0
    %1270 = vmatpush1.msra.mxu0 0.0
    %1271 = vmatprep.subr.mxu0 0.0
    %1272 = vmatpush1.msra.mxu0 0.0
    %1273 = vmatprep.subr.mxu0 0.0
    %1274 = vmatpush1.msra.mxu0 0.0
    %1275 = vmatprep.subr.mxu0 0.0
    %1276 = vmatpush1.msra.mxu0 0.0
    %1277 = vmatprep.subr.mxu0 0.0
    %1278 = vmatpush1.msra.mxu0 0.0
    %1279 = vmatprep.subr.mxu0 0.0
    %1280 = vmatpush1.msra.mxu0 0.0
    %1281 = vmatprep.subr.mxu0 0.0
    %1282 = vmatpush1.msra.mxu0 0.0
    %1283 = vmatprep.subr.mxu0 0.0
    %1284 = vmatpush1.msra.mxu0 0.0
    %1285 = vmatprep.subr.mxu0 0.0
    %1286 = vmatpush1.msra.mxu0 0.0
    %1287 = vmatprep.subr.mxu0 0.0
    %1288 = vmatpush1.msra.mxu0 0.0
    %1289 = vmatprep.subr.mxu0 0.0
    %1290 = vmatpush1.msra.mxu0 0.0
    %1291 = vmatprep.subr.mxu0 0.0
    %1292 = vmatpush1.msra.mxu0 0.0
    %1293 = vmatprep.subr.mxu0 0.0
    %1294 = vmatpush1.msra.mxu0 %v1263
    %1295 = vmatprep.subr.mxu0 0.0
    %1296 = vmatpush1.msra.mxu0 %v1086
    %1297 = vmatprep.subr.mxu0 0.0
    %1298 = vmatpush2.msra.mxu0 0.0
    %1299 = vmatprep.subr.mxu0 0.0
    %1300 = vmatpush2.msra.mxu0 0.0
    %1301 = vmatprep.subr.mxu0 0.0
    %1302 = vmatpush2.msra.mxu0 0.0
    %1303 = vmatprep.subr.mxu0 0.0
    %1304 = vmatpush2.msra.mxu0 0.0
    %1305 = vmatprep.subr.mxu0 0.0
    %1306 = vmatpush2.msra.mxu0 0.0
    %1307 = vmatprep.subr.mxu0 0.0
    %1308 = vmatpush2.msra.mxu0 0.0
    %1309 = vmatprep.subr.mxu0 0.0
    %1310 = vmatpush2.msra.mxu0 0.0
    %1311 = vmatprep.subr.mxu0 0.0
    %1312 = vmatpush2.msra.mxu0 0.0
    %1313 = vmatprep.subr.mxu0 0.0
    %1314 = vmatpush2.msra.mxu0 0.0
    %1315 = vmatprep.subr.mxu0 0.0
    %1316 = vmatpush2.msra.mxu0 0.0
    %1317 = vmatprep.subr.mxu0 0.0
    %1318 = vmatpush2.msra.mxu0 0.0
    %1319 = vmatprep.subr.mxu0 0.0
    %1320 = vmatpush2.msra.mxu0 0.0
    %1321 = vmatprep.subr.mxu0 0.0
    %1322 = vmatpush2.msra.mxu0 0.0
    %1323 = vmatprep.subr.mxu0 0.0
    %1324 = vmatpush2.msra.mxu0 0.0
    %1325 = vmatprep.subr.mxu0 0.0
    %1326 = vmatpush2.msra.mxu0 0.0
    %1327 = vmatprep.subr.mxu0 0.0
    %1328 = vmatpush2.msra.mxu0 0.0
    %1329 = vmatprep.mubr.f32.mxu0 0.0
    %1330 = vmatmul.mubr.f32.gmra.mxu0 %v1101
    %v1331 = vpop.f32.mrf.mxu0
    %v1332 = vadd.f32 0.0, %v1331
    %v1333 = vpop.f32.mrf.mxu0
    %1334 = vmatprep.mubr.f32.mxu0 0.0
    %1335 = vmatmul.mubr.f32.gmra.mxu0 %v1104
    %v1336 = vpop.f32.mrf.mxu0
    %v1337 = vadd.f32 0.0, %v1336
    %v1338 = vpop.f32.mrf.mxu0
    %1339 = vdwg.mxu0
    %v1341 = vsel %vm1039, %v1095, 0
    %1343 = vmatprep.subr.mxu0 0.0
    %1344 = vmatpush1.msra.mxu0 0.0
    %1345 = vmatprep.subr.mxu0 0.0
    %1346 = vmatpush1.msra.mxu0 0.0
    %1347 = vmatprep.subr.mxu0 0.0
    %1348 = vmatpush1.msra.mxu0 0.0
    %1349 = vmatprep.subr.mxu0 0.0
    %1350 = vmatpush1.msra.mxu0 0.0
    %1351 = vmatprep.subr.mxu0 0.0
    %1352 = vmatpush1.msra.mxu0 0.0
    %1353 = vmatprep.subr.mxu0 0.0
    %1354 = vmatpush1.msra.mxu0 0.0
    %1355 = vmatprep.subr.mxu0 0.0
    %1356 = vmatpush1.msra.mxu0 0.0
    %1357 = vmatprep.subr.mxu0 0.0
    %1358 = vmatpush1.msra.mxu0 0.0
    %1359 = vmatprep.subr.mxu0 0.0
    %1360 = vmatpush1.msra.mxu0 0.0
    %1361 = vmatprep.subr.mxu0 0.0
    %1362 = vmatpush1.msra.mxu0 0.0
    %1363 = vmatprep.subr.mxu0 0.0
    %1364 = vmatpush1.msra.mxu0 0.0
    %1365 = vmatprep.subr.mxu0 0.0
    %1366 = vmatpush1.msra.mxu0 0.0
    %1367 = vmatprep.subr.mxu0 0.0
    %1368 = vmatpush1.msra.mxu0 0.0
    %1369 = vmatprep.subr.mxu0 0.0
    %1370 = vmatpush1.msra.mxu0 0.0
    %1371 = vmatprep.subr.mxu0 0.0
    %1372 = vmatpush1.msra.mxu0 %v1341
    %1373 = vmatprep.subr.mxu0 0.0
    %1374 = vmatpush1.msra.mxu0 %v1087
    %1375 = vmatprep.subr.mxu0 0.0
    %1376 = vmatpush2.msra.mxu0 0.0
    %1377 = vmatprep.subr.mxu0 0.0
    %1378 = vmatpush2.msra.mxu0 0.0
    %1379 = vmatprep.subr.mxu0 0.0
    %1380 = vmatpush2.msra.mxu0 0.0
    %1381 = vmatprep.subr.mxu0 0.0
    %1382 = vmatpush2.msra.mxu0 0.0
    %1383 = vmatprep.subr.mxu0 0.0
    %1384 = vmatpush2.msra.mxu0 0.0
    %1385 = vmatprep.subr.mxu0 0.0
    %1386 = vmatpush2.msra.mxu0 0.0
    %1387 = vmatprep.subr.mxu0 0.0
    %1388 = vmatpush2.msra.mxu0 0.0
    %1389 = vmatprep.subr.mxu0 0.0
    %1390 = vmatpush2.msra.mxu0 0.0
    %1391 = vmatprep.subr.mxu0 0.0
    %1392 = vmatpush2.msra.mxu0 0.0
    %1393 = vmatprep.subr.mxu0 0.0
    %1394 = vmatpush2.msra.mxu0 0.0
    %1395 = vmatprep.subr.mxu0 0.0
    %1396 = vmatpush2.msra.mxu0 0.0
    %1397 = vmatprep.subr.mxu0 0.0
    %1398 = vmatpush2.msra.mxu0 0.0
    %1399 = vmatprep.subr.mxu0 0.0
    %1400 = vmatpush2.msra.mxu0 0.0
    %1401 = vmatprep.subr.mxu0 0.0
    %1402 = vmatpush2.msra.mxu0 0.0
    %1403 = vmatprep.subr.mxu0 0.0
    %1404 = vmatpush2.msra.mxu0 0.0
    %1405 = vmatprep.subr.mxu0 0.0
    %1406 = vmatpush2.msra.mxu0 0.0
    %1407 = vmatprep.mubr.f32.mxu0 0.0
    %1408 = vmatmul.mubr.f32.gmra.mxu0 %v1101
    %v1409 = vpop.f32.mrf.mxu0
    %v1410 = vadd.f32 0.0, %v1409
    %v1411 = vpop.f32.mrf.mxu0
    %1412 = vmatprep.mubr.f32.mxu0 0.0
    %1413 = vmatmul.mubr.f32.gmra.mxu0 %v1104
    %v1414 = vpop.f32.mrf.mxu0
    %v1415 = vadd.f32 0.0, %v1414
    %v1416 = vpop.f32.mrf.mxu0
    %1417 = vdwg.mxu0
    %v1419 = vsel %vm1039, %v1096, 0
    %1421 = vmatprep.subr.mxu0 0.0
    %1422 = vmatpush1.msra.mxu0 0.0
    %1423 = vmatprep.subr.mxu0 0.0
    %1424 = vmatpush1.msra.mxu0 0.0
    %1425 = vmatprep.subr.mxu0 0.0
    %1426 = vmatpush1.msra.mxu0 0.0
    %1427 = vmatprep.subr.mxu0 0.0
    %1428 = vmatpush1.msra.mxu0 0.0
    %1429 = vmatprep.subr.mxu0 0.0
    %1430 = vmatpush1.msra.mxu0 0.0
    %1431 = vmatprep.subr.mxu0 0.0
    %1432 = vmatpush1.msra.mxu0 0.0
    %1433 = vmatprep.subr.mxu0 0.0
    %1434 = vmatpush1.msra.mxu0 0.0
    %1435 = vmatprep.subr.mxu0 0.0
    %1436 = vmatpush1.msra.mxu0 0.0
    %1437 = vmatprep.subr.mxu0 0.0
    %1438 = vmatpush1.msra.mxu0 0.0
    %1439 = vmatprep.subr.mxu0 0.0
    %1440 = vmatpush1.msra.mxu0 0.0
    %1441 = vmatprep.subr.mxu0 0.0
    %1442 = vmatpush1.msra.mxu0 0.0
    %1443 = vmatprep.subr.mxu0 0.0
    %1444 = vmatpush1.msra.mxu0 0.0
    %1445 = vmatprep.subr.mxu0 0.0
    %1446 = vmatpush1.msra.mxu0 0.0
    %1447 = vmatprep.subr.mxu0 0.0
    %1448 = vmatpush1.msra.mxu0 0.0
    %1449 = vmatprep.subr.mxu0 0.0
    %1450 = vmatpush1.msra.mxu0 %v1419
    %1451 = vmatprep.subr.mxu0 0.0
    %1452 = vmatpush1.msra.mxu0 %v1088
    %1453 = vmatprep.subr.mxu0 0.0
    %1454 = vmatpush2.msra.mxu0 0.0
    %1455 = vmatprep.subr.mxu0 0.0
    %1456 = vmatpush2.msra.mxu0 0.0
    %1457 = vmatprep.subr.mxu0 0.0
    %1458 = vmatpush2.msra.mxu0 0.0
    %1459 = vmatprep.subr.mxu0 0.0
    %1460 = vmatpush2.msra.mxu0 0.0
    %1461 = vmatprep.subr.mxu0 0.0
    %1462 = vmatpush2.msra.mxu0 0.0
    %1463 = vmatprep.subr.mxu0 0.0
    %1464 = vmatpush2.msra.mxu0 0.0
    %1465 = vmatprep.subr.mxu0 0.0
    %1466 = vmatpush2.msra.mxu0 0.0
    %1467 = vmatprep.subr.mxu0 0.0
    %1468 = vmatpush2.msra.mxu0 0.0
    %1469 = vmatprep.subr.mxu0 0.0
    %1470 = vmatpush2.msra.mxu0 0.0
    %1471 = vmatprep.subr.mxu0 0.0
    %1472 = vmatpush2.msra.mxu0 0.0
    %1473 = vmatprep.subr.mxu0 0.0
    %1474 = vmatpush2.msra.mxu0 0.0
    %1475 = vmatprep.subr.mxu0 0.0
    %1476 = vmatpush2.msra.mxu0 0.0
    %1477 = vmatprep.subr.mxu0 0.0
    %1478 = vmatpush2.msra.mxu0 0.0
    %1479 = vmatprep.subr.mxu0 0.0
    %1480 = vmatpush2.msra.mxu0 0.0
    %1481 = vmatprep.subr.mxu0 0.0
    %1482 = vmatpush2.msra.mxu0 0.0
    %1483 = vmatprep.subr.mxu0 0.0
    %1484 = vmatpush2.msra.mxu0 0.0
    %1485 = vmatprep.mubr.f32.mxu0 0.0
    %1486 = vmatmul.mubr.f32.gmra.mxu0 %v1101
    %v1487 = vpop.f32.mrf.mxu0
    %v1488 = vadd.f32 0.0, %v1487
    %v1489 = vpop.f32.mrf.mxu0
    %1490 = vmatprep.mubr.f32.mxu0 0.0
    %1491 = vmatmul.mubr.f32.gmra.mxu0 %v1104
    %v1492 = vpop.f32.mrf.mxu0
    %v1493 = vadd.f32 0.0, %v1492
    %v1494 = vpop.f32.mrf.mxu0
    %1495 = vdwg.mxu0
    %v1497 = vsel %vm1039, %v1097, 0
    %1499 = vmatprep.subr.mxu0 0.0
    %1500 = vmatpush1.msra.mxu0 0.0
    %1501 = vmatprep.subr.mxu0 0.0
    %1502 = vmatpush1.msra.mxu0 0.0
    %1503 = vmatprep.subr.mxu0 0.0
    %1504 = vmatpush1.msra.mxu0 0.0
    %1505 = vmatprep.subr.mxu0 0.0
    %1506 = vmatpush1.msra.mxu0 0.0
    %1507 = vmatprep.subr.mxu0 0.0
    %1508 = vmatpush1.msra.mxu0 0.0
    %1509 = vmatprep.subr.mxu0 0.0
    %1510 = vmatpush1.msra.mxu0 0.0
    %1511 = vmatprep.subr.mxu0 0.0
    %1512 = vmatpush1.msra.mxu0 0.0
    %1513 = vmatprep.subr.mxu0 0.0
    %1514 = vmatpush1.msra.mxu0 0.0
    %1515 = vmatprep.subr.mxu0 0.0
    %1516 = vmatpush1.msra.mxu0 0.0
    %1517 = vmatprep.subr.mxu0 0.0
    %1518 = vmatpush1.msra.mxu0 0.0
    %1519 = vmatprep.subr.mxu0 0.0
    %1520 = vmatpush1.msra.mxu0 0.0
    %1521 = vmatprep.subr.mxu0 0.0
    %1522 = vmatpush1.msra.mxu0 0.0
    %1523 = vmatprep.subr.mxu0 0.0
    %1524 = vmatpush1.msra.mxu0 0.0
    %1525 = vmatprep.subr.mxu0 0.0
    %1526 = vmatpush1.msra.mxu0 0.0
    %1527 = vmatprep.subr.mxu0 0.0
    %1528 = vmatpush1.msra.mxu0 %v1497
    %1529 = vmatprep.subr.mxu0 0.0
    %1530 = vmatpush1.msra.mxu0 %v1089
    %1531 = vmatprep.subr.mxu0 0.0
    %1532 = vmatpush2.msra.mxu0 0.0
    %1533 = vmatprep.subr.mxu0 0.0
    %1534 = vmatpush2.msra.mxu0 0.0
    %1535 = vmatprep.subr.mxu0 0.0
    %1536 = vmatpush2.msra.mxu0 0.0
    %1537 = vmatprep.subr.mxu0 0.0
    %1538 = vmatpush2.msra.mxu0 0.0
    %1539 = vmatprep.subr.mxu0 0.0
    %1540 = vmatpush2.msra.mxu0 0.0
    %1541 = vmatprep.subr.mxu0 0.0
    %1542 = vmatpush2.msra.mxu0 0.0
    %1543 = vmatprep.subr.mxu0 0.0
    %1544 = vmatpush2.msra.mxu0 0.0
    %1545 = vmatprep.subr.mxu0 0.0
    %1546 = vmatpush2.msra.mxu0 0.0
    %1547 = vmatprep.subr.mxu0 0.0
    %1548 = vmatpush2.msra.mxu0 0.0
    %1549 = vmatprep.subr.mxu0 0.0
    %1550 = vmatpush2.msra.mxu0 0.0
    %1551 = vmatprep.subr.mxu0 0.0
    %1552 = vmatpush2.msra.mxu0 0.0
    %1553 = vmatprep.subr.mxu0 0.0
    %1554 = vmatpush2.msra.mxu0 0.0
    %1555 = vmatprep.subr.mxu0 0.0
    %1556 = vmatpush2.msra.mxu0 0.0
    %1557 = vmatprep.subr.mxu0 0.0
    %1558 = vmatpush2.msra.mxu0 0.0
    %1559 = vmatprep.subr.mxu0 0.0
    %1560 = vmatpush2.msra.mxu0 0.0
    %1561 = vmatprep.subr.mxu0 0.0
    %1562 = vmatpush2.msra.mxu0 0.0
    %1563 = vmatprep.mubr.f32.mxu0 0.0
    %1564 = vmatmul.mubr.f32.gmra.mxu0 %v1101
    %v1565 = vpop.f32.mrf.mxu0
    %v1566 = vadd.f32 0.0, %v1565
    %v1567 = vpop.f32.mrf.mxu0
    %1568 = vmatprep.mubr.f32.mxu0 0.0
    %1569 = vmatmul.mubr.f32.gmra.mxu0 %v1104
    %v1570 = vpop.f32.mrf.mxu0
    %v1571 = vadd.f32 0.0, %v1570
    %v1572 = vpop.f32.mrf.mxu0
    %1573 = vdwg.mxu0
    %v1575 = vsel %vm1039, %v1098, 0
    %1577 = vmatprep.subr.mxu0 0.0
    %1578 = vmatpush1.msra.mxu0 0.0
    %1579 = vmatprep.subr.mxu0 0.0
    %1580 = vmatpush1.msra.mxu0 0.0
    %1581 = vmatprep.subr.mxu0 0.0
    %1582 = vmatpush1.msra.mxu0 0.0
    %1583 = vmatprep.subr.mxu0 0.0
    %1584 = vmatpush1.msra.mxu0 0.0
    %1585 = vmatprep.subr.mxu0 0.0
    %1586 = vmatpush1.msra.mxu0 0.0
    %1587 = vmatprep.subr.mxu0 0.0
    %1588 = vmatpush1.msra.mxu0 0.0
    %1589 = vmatprep.subr.mxu0 0.0
    %1590 = vmatpush1.msra.mxu0 0.0
    %1591 = vmatprep.subr.mxu0 0.0
    %1592 = vmatpush1.msra.mxu0 0.0
    %1593 = vmatprep.subr.mxu0 0.0
    %1594 = vmatpush1.msra.mxu0 0.0
    %1595 = vmatprep.subr.mxu0 0.0
    %1596 = vmatpush1.msra.mxu0 0.0
    %1597 = vmatprep.subr.mxu0 0.0
    %1598 = vmatpush1.msra.mxu0 0.0
    %1599 = vmatprep.subr.mxu0 0.0
    %1600 = vmatpush1.msra.mxu0 0.0
    %1601 = vmatprep.subr.mxu0 0.0
    %1602 = vmatpush1.msra.mxu0 0.0
    %1603 = vmatprep.subr.mxu0 0.0
    %1604 = vmatpush1.msra.mxu0 0.0
    %1605 = vmatprep.subr.mxu0 0.0
    %1606 = vmatpush1.msra.mxu0 %v1575
    %1607 = vmatprep.subr.mxu0 0.0
    %1608 = vmatpush1.msra.mxu0 %v1090
    %1609 = vmatprep.subr.mxu0 0.0
    %1610 = vmatpush2.msra.mxu0 0.0
    %1611 = vmatprep.subr.mxu0 0.0
    %1612 = vmatpush2.msra.mxu0 0.0
    %1613 = vmatprep.subr.mxu0 0.0
    %1614 = vmatpush2.msra.mxu0 0.0
    %1615 = vmatprep.subr.mxu0 0.0
    %1616 = vmatpush2.msra.mxu0 0.0
    %1617 = vmatprep.subr.mxu0 0.0
    %1618 = vmatpush2.msra.mxu0 0.0
    %1619 = vmatprep.subr.mxu0 0.0
    %1620 = vmatpush2.msra.mxu0 0.0
    %1621 = vmatprep.subr.mxu0 0.0
    %1622 = vmatpush2.msra.mxu0 0.0
    %1623 = vmatprep.subr.mxu0 0.0
    %1624 = vmatpush2.msra.mxu0 0.0
    %1625 = vmatprep.subr.mxu0 0.0
    %1626 = vmatpush2.msra.mxu0 0.0
    %1627 = vmatprep.subr.mxu0 0.0
    %1628 = vmatpush2.msra.mxu0 0.0
    %1629 = vmatprep.subr.mxu0 0.0
    %1630 = vmatpush2.msra.mxu0 0.0
    %1631 = vmatprep.subr.mxu0 0.0
    %1632 = vmatpush2.msra.mxu0 0.0
    %1633 = vmatprep.subr.mxu0 0.0
    %1634 = vmatpush2.msra.mxu0 0.0
    %1635 = vmatprep.subr.mxu0 0.0
    %1636 = vmatpush2.msra.mxu0 0.0
    %1637 = vmatprep.subr.mxu0 0.0
    %1638 = vmatpush2.msra.mxu0 0.0
    %1639 = vmatprep.subr.mxu0 0.0
    %1640 = vmatpush2.msra.mxu0 0.0
    %1641 = vmatprep.mubr.f32.mxu0 0.0
    %1642 = vmatmul.mubr.f32.gmra.mxu0 %v1101
    %v1643 = vpop.f32.mrf.mxu0
    %v1644 = vadd.f32 0.0, %v1643
    %v1645 = vpop.f32.mrf.mxu0
    %1646 = vmatprep.mubr.f32.mxu0 0.0
    %1647 = vmatmul.mubr.f32.gmra.mxu0 %v1104
    %v1648 = vpop.f32.mrf.mxu0
    %v1649 = vadd.f32 0.0, %v1648
    %v1650 = vpop.f32.mrf.mxu0
    %1651 = vdwg.mxu0
    %v1653 = vsel %vm1039, %v1099, 0
    %1655 = vmatprep.subr.mxu0 0.0
    %1656 = vmatpush1.msra.mxu0 0.0
    %1657 = vmatprep.subr.mxu0 0.0
    %1658 = vmatpush1.msra.mxu0 0.0
    %1659 = vmatprep.subr.mxu0 0.0
    %1660 = vmatpush1.msra.mxu0 0.0
    %1661 = vmatprep.subr.mxu0 0.0
    %1662 = vmatpush1.msra.mxu0 0.0
    %1663 = vmatprep.subr.mxu0 0.0
    %1664 = vmatpush1.msra.mxu0 0.0
    %1665 = vmatprep.subr.mxu0 0.0
    %1666 = vmatpush1.msra.mxu0 0.0
    %1667 = vmatprep.subr.mxu0 0.0
    %1668 = vmatpush1.msra.mxu0 0.0
    %1669 = vmatprep.subr.mxu0 0.0
    %1670 = vmatpush1.msra.mxu0 0.0
    %1671 = vmatprep.subr.mxu0 0.0
    %1672 = vmatpush1.msra.mxu0 0.0
    %1673 = vmatprep.subr.mxu0 0.0
    %1674 = vmatpush1.msra.mxu0 0.0
    %1675 = vmatprep.subr.mxu0 0.0
    %1676 = vmatpush1.msra.mxu0 0.0
    %1677 = vmatprep.subr.mxu0 0.0
    %1678 = vmatpush1.msra.mxu0 0.0
    %1679 = vmatprep.subr.mxu0 0.0
    %1680 = vmatpush1.msra.mxu0 0.0
    %1681 = vmatprep.subr.mxu0 0.0
    %1682 = vmatpush1.msra.mxu0 0.0
    %1683 = vmatprep.subr.mxu0 0.0
    %1684 = vmatpush1.msra.mxu0 %v1653
    %1685 = vmatprep.subr.mxu0 0.0
    %1686 = vmatpush1.msra.mxu0 %v1091
    %1687 = vmatprep.subr.mxu0 0.0
    %1688 = vmatpush2.msra.mxu0 0.0
    %1689 = vmatprep.subr.mxu0 0.0
    %1690 = vmatpush2.msra.mxu0 0.0
    %1691 = vmatprep.subr.mxu0 0.0
    %1692 = vmatpush2.msra.mxu0 0.0
    %1693 = vmatprep.subr.mxu0 0.0
    %1694 = vmatpush2.msra.mxu0 0.0
    %1695 = vmatprep.subr.mxu0 0.0
    %1696 = vmatpush2.msra.mxu0 0.0
    %1697 = vmatprep.subr.mxu0 0.0
    %1698 = vmatpush2.msra.mxu0 0.0
    %1699 = vmatprep.subr.mxu0 0.0
    %1700 = vmatpush2.msra.mxu0 0.0
    %1701 = vmatprep.subr.mxu0 0.0
    %1702 = vmatpush2.msra.mxu0 0.0
    %1703 = vmatprep.subr.mxu0 0.0
    %1704 = vmatpush2.msra.mxu0 0.0
    %1705 = vmatprep.subr.mxu0 0.0
    %1706 = vmatpush2.msra.mxu0 0.0
    %1707 = vmatprep.subr.mxu0 0.0
    %1708 = vmatpush2.msra.mxu0 0.0
    %1709 = vmatprep.subr.mxu0 0.0
    %1710 = vmatpush2.msra.mxu0 0.0
    %1711 = vmatprep.subr.mxu0 0.0
    %1712 = vmatpush2.msra.mxu0 0.0
    %1713 = vmatprep.subr.mxu0 0.0
    %1714 = vmatpush2.msra.mxu0 0.0
    %1715 = vmatprep.subr.mxu0 0.0
    %1716 = vmatpush2.msra.mxu0 0.0
    %1717 = vmatprep.subr.mxu0 0.0
    %1718 = vmatpush2.msra.mxu0 0.0
    %1719 = vmatprep.mubr.f32.mxu0 0.0
    %1720 = vmatmul.mubr.f32.gmra.mxu0 %v1101
    %v1721 = vpop.f32.mrf.mxu0
    %v1722 = vadd.f32 0.0, %v1721
    %v1723 = vpop.f32.mrf.mxu0
    %1724 = vmatprep.mubr.f32.mxu0 0.0
    %1725 = vmatmul.mubr.f32.gmra.mxu0 %v1104
    %v1726 = vpop.f32.mrf.mxu0
    %v1727 = vadd.f32 0.0, %v1726
    %v1728 = vpop.f32.mrf.mxu0
    %1729 = vdwg.mxu0
    %v1730 = vlaneseq
    %v1731 = vshrl.u32 %v1730, 7
    %v1732 = vsub.s32 0, %v1731
    %v1733 = vrot.slane %v599, %v1732
    %1735 = vbcast.lane.b32.xlu0 %v1733, 256
    %v1736 = vpop.permute.xlu0 %1735
    %s1738 = sor.u32 256, 8
    %1739 = vbcast.lane.b32.xlu0 %v1733, %s1738
    %v1740 = vpop.permute.xlu0 %1739
    %v1741 = vlaneseq
    %v1742 = vshrl.u32 %v1741, 7
    %v1743 = vsub.s32 1, %v1742
    %v1744 = vrot.slane %v599, %v1743
    %1746 = vbcast.lane.b32.xlu0 %v1744, 256
    %v1747 = vpop.permute.xlu0 %1746
    %s1749 = sor.u32 256, 8
    %1750 = vbcast.lane.b32.xlu0 %v1744, %s1749
    %v1751 = vpop.permute.xlu0 %1750
    %v1752 = vlaneseq
    %v1753 = vshrl.u32 %v1752, 7
    %v1754 = vsub.s32 2, %v1753
    %v1755 = vrot.slane %v599, %v1754
    %1757 = vbcast.lane.b32.xlu0 %v1755, 256
    %v1758 = vpop.permute.xlu0 %1757
    %s1760 = sor.u32 256, 8
    %1761 = vbcast.lane.b32.xlu0 %v1755, %s1760
    %v1762 = vpop.permute.xlu0 %1761
    %v1763 = vlaneseq
    %v1764 = vshrl.u32 %v1763, 7
    %v1765 = vsub.s32 3, %v1764
    %v1766 = vrot.slane %v599, %v1765
    %1768 = vbcast.lane.b32.xlu0 %v1766, 256
    %v1769 = vpop.permute.xlu0 %1768
    %s1771 = sor.u32 256, 8
    %1772 = vbcast.lane.b32.xlu0 %v1766, %s1771
    %v1773 = vpop.permute.xlu0 %1772
    %v1774 = vlaneseq
    %v1775 = vshrl.u32 %v1774, 7
    %v1776 = vsub.s32 4, %v1775
    %v1777 = vrot.slane %v599, %v1776
    %1779 = vbcast.lane.b32.xlu0 %v1777, 256
    %v1780 = vpop.permute.xlu0 %1779
    %s1782 = sor.u32 256, 8
    %1783 = vbcast.lane.b32.xlu0 %v1777, %s1782
    %v1784 = vpop.permute.xlu0 %1783
    %v1785 = vlaneseq
    %v1786 = vshrl.u32 %v1785, 7
    %v1787 = vsub.s32 5, %v1786
    %v1788 = vrot.slane %v599, %v1787
    %1790 = vbcast.lane.b32.xlu0 %v1788, 256
    %v1791 = vpop.permute.xlu0 %1790
    %s1793 = sor.u32 256, 8
    %1794 = vbcast.lane.b32.xlu0 %v1788, %s1793
    %v1795 = vpop.permute.xlu0 %1794
    %v1796 = vlaneseq
    %v1797 = vshrl.u32 %v1796, 7
    %v1798 = vsub.s32 6, %v1797
    %v1799 = vrot.slane %v599, %v1798
    %1801 = vbcast.lane.b32.xlu0 %v1799, 256
    %v1802 = vpop.permute.xlu0 %1801
    %s1804 = sor.u32 256, 8
    %1805 = vbcast.lane.b32.xlu0 %v1799, %s1804
    %v1806 = vpop.permute.xlu0 %1805
    %v1807 = vlaneseq
    %v1808 = vshrl.u32 %v1807, 7
    %v1809 = vsub.s32 7, %v1808
    %v1810 = vrot.slane %v599, %v1809
    %1812 = vbcast.lane.b32.xlu0 %v1810, 256
    %v1813 = vpop.permute.xlu0 %1812
    %s1815 = sor.u32 256, 8
    %1816 = vbcast.lane.b32.xlu0 %v1810, %s1815
    %v1817 = vpop.permute.xlu0 %1816
    %v1818 = vadd.f32 %v1736, %v1176
    %v1819 = vadd.f32 %v1740, %v1181
    %v1820 = vadd.f32 %v1747, %v1254
    %v1821 = vadd.f32 %v1751, %v1259
    %v1822 = vadd.f32 %v1758, %v1332
    %v1823 = vadd.f32 %v1762, %v1337
    %v1824 = vadd.f32 %v1769, %v1410
    %v1825 = vadd.f32 %v1773, %v1415
    %v1826 = vadd.f32 %v1780, %v1488
    %v1827 = vadd.f32 %v1784, %v1493
    %v1828 = vadd.f32 %v1791, %v1566
    %v1829 = vadd.f32 %v1795, %v1571
    %v1830 = vadd.f32 %v1802, %v1644
    %v1831 = vadd.f32 %v1806, %v1649
    %v1832 = vadd.f32 %v1813, %v1722
    %v1833 = vadd.f32 %v1817, %v1727
    %v1834 = vld [vmem:[%s2] sm:$0xff]
    %v1835 = vld [vmem:[%s2 + $0x8] sm:$0xff]
    %v1836 = vld [vmem:[%s2 + $0x10] sm:$0xff]
    %v1837 = vld [vmem:[%s2 + $0x18] sm:$0xff]
    %v1838 = vld [vmem:[%s2 + $0x20] sm:$0xff]
    %v1839 = vld [vmem:[%s2 + $0x28] sm:$0xff]
    %v1840 = vld [vmem:[%s2 + $0x30] sm:$0xff]
    %v1841 = vld [vmem:[%s2 + $0x38] sm:$0xff]
    %v1842 = vld [vmem:[%s2 + $0x40] sm:$0xff]
    %v1843 = vld [vmem:[%s2 + $0x48] sm:$0xff]
    %v1844 = vld [vmem:[%s2 + $0x50] sm:$0xff]
    %v1845 = vld [vmem:[%s2 + $0x58] sm:$0xff]
    %v1846 = vld [vmem:[%s2 + $0x60] sm:$0xff]
    %v1847 = vld [vmem:[%s2 + $0x68] sm:$0xff]
    %v1848 = vld [vmem:[%s2 + $0x70] sm:$0xff]
    %v1849 = vld [vmem:[%s2 + $0x78] sm:$0xff]
    %v1850 = vadd.f32 %v1818, %v1834
    %v1851 = vadd.f32 %v1819, %v1835
    %v1852 = vadd.f32 %v1820, %v1836
    %v1853 = vadd.f32 %v1821, %v1837
    %v1854 = vadd.f32 %v1822, %v1838
    %v1855 = vadd.f32 %v1823, %v1839
    %v1856 = vadd.f32 %v1824, %v1840
    %v1857 = vadd.f32 %v1825, %v1841
    %v1858 = vadd.f32 %v1826, %v1842
    %v1859 = vadd.f32 %v1827, %v1843
    %v1860 = vadd.f32 %v1828, %v1844
    %v1861 = vadd.f32 %v1829, %v1845
    %v1862 = vadd.f32 %v1830, %v1846
    %v1863 = vadd.f32 %v1831, %v1847
    %v1864 = vadd.f32 %v1832, %v1848
    %v1865 = vadd.f32 %v1833, %v1849
    %v1866 = vtanh.pop %v1850
    %v1867 = vtanh.pop %v1851
    %v1868 = vtanh.pop %v1852
    %v1869 = vtanh.pop %v1853
    %v1870 = vtanh.pop %v1854
    %v1871 = vtanh.pop %v1855
    %v1872 = vtanh.pop %v1856
    %v1873 = vtanh.pop %v1857
    %v1874 = vtanh.pop %v1858
    %v1875 = vtanh.pop %v1859
    %v1876 = vtanh.pop %v1860
    %v1877 = vtanh.pop %v1861
    %v1878 = vtanh.pop %v1862
    %v1879 = vtanh.pop %v1863
    %v1880 = vtanh.pop %v1864
    %v1881 = vtanh.pop %v1865
    %v1883 = vsel %vm188, %v345, 0
    %1885 = vmatprep.subr.mxu0 0.0
    %1886 = vmatpush1.msra.mxu0 0.0
    %1887 = vmatprep.subr.mxu0 0.0
    %1888 = vmatpush1.msra.mxu0 0.0
    %1889 = vmatprep.subr.mxu0 0.0
    %1890 = vmatpush1.msra.mxu0 0.0
    %1891 = vmatprep.subr.mxu0 0.0
    %1892 = vmatpush1.msra.mxu0 0.0
    %1893 = vmatprep.subr.mxu0 0.0
    %1894 = vmatpush1.msra.mxu0 0.0
    %1895 = vmatprep.subr.mxu0 0.0
    %1896 = vmatpush1.msra.mxu0 0.0
    %1897 = vmatprep.subr.mxu0 0.0
    %1898 = vmatpush1.msra.mxu0 0.0
    %1899 = vmatprep.subr.mxu0 0.0
    %1900 = vmatpush1.msra.mxu0 0.0
    %1901 = vmatprep.subr.mxu0 0.0
    %1902 = vmatpush1.msra.mxu0 0.0
    %1903 = vmatprep.subr.mxu0 0.0
    %1904 = vmatpush1.msra.mxu0 0.0
    %1905 = vmatprep.subr.mxu0 0.0
    %1906 = vmatpush1.msra.mxu0 0.0
    %1907 = vmatprep.subr.mxu0 0.0
    %1908 = vmatpush1.msra.mxu0 0.0
    %1909 = vmatprep.subr.mxu0 0.0
    %1910 = vmatpush1.msra.mxu0 0.0
    %1911 = vmatprep.subr.mxu0 0.0
    %1912 = vmatpush1.msra.mxu0 0.0
    %1913 = vmatprep.subr.mxu0 0.0
    %1914 = vmatpush1.msra.mxu0 %v1867
    %1915 = vmatprep.subr.mxu0 0.0
    %1916 = vmatpush1.msra.mxu0 %v1866
    %1917 = vmatprep.subr.mxu0 0.0
    %1918 = vmatpush2.msra.mxu0 0.0
    %1919 = vmatprep.subr.mxu0 0.0
    %1920 = vmatpush2.msra.mxu0 0.0
    %1921 = vmatprep.subr.mxu0 0.0
    %1922 = vmatpush2.msra.mxu0 0.0
    %1923 = vmatprep.subr.mxu0 0.0
    %1924 = vmatpush2.msra.mxu0 0.0
    %1925 = vmatprep.subr.mxu0 0.0
    %1926 = vmatpush2.msra.mxu0 0.0
    %1927 = vmatprep.subr.mxu0 0.0
    %1928 = vmatpush2.msra.mxu0 0.0
    %1929 = vmatprep.subr.mxu0 0.0
    %1930 = vmatpush2.msra.mxu0 0.0
    %1931 = vmatprep.subr.mxu0 0.0
    %1932 = vmatpush2.msra.mxu0 0.0
    %1933 = vmatprep.subr.mxu0 0.0
    %1934 = vmatpush2.msra.mxu0 0.0
    %1935 = vmatprep.subr.mxu0 0.0
    %1936 = vmatpush2.msra.mxu0 0.0
    %1937 = vmatprep.subr.mxu0 0.0
    %1938 = vmatpush2.msra.mxu0 0.0
    %1939 = vmatprep.subr.mxu0 0.0
    %1940 = vmatpush2.msra.mxu0 0.0
    %1941 = vmatprep.subr.mxu0 0.0
    %1942 = vmatpush2.msra.mxu0 0.0
    %1943 = vmatprep.subr.mxu0 0.0
    %1944 = vmatpush2.msra.mxu0 0.0
    %1945 = vmatprep.subr.mxu0 0.0
    %1946 = vmatpush2.msra.mxu0 0.0
    %1947 = vmatprep.subr.mxu0 0.0
    %1948 = vmatpush2.msra.mxu0 0.0
    %1949 = vmatprep.mubr.f32.mxu0 0.0
    %1950 = vmatmul.mubr.f32.gmra.mxu0 %v1883
    %v1951 = vpop.f32.mrf.mxu0
    %v1952 = vadd.f32 0.0, %v1951
    %v1953 = vpop.f32.mrf.mxu0
    %1954 = vdwg.mxu0
    %1955 = vmatprep.subr.mxu0 0.0
    %1956 = vmatpush1.msra.mxu0 0.0
    %1957 = vmatprep.subr.mxu0 0.0
    %1958 = vmatpush1.msra.mxu0 0.0
    %1959 = vmatprep.subr.mxu0 0.0
    %1960 = vmatpush1.msra.mxu0 0.0
    %1961 = vmatprep.subr.mxu0 0.0
    %1962 = vmatpush1.msra.mxu0 0.0
    %1963 = vmatprep.subr.mxu0 0.0
    %1964 = vmatpush1.msra.mxu0 0.0
    %1965 = vmatprep.subr.mxu0 0.0
    %1966 = vmatpush1.msra.mxu0 0.0
    %1967 = vmatprep.subr.mxu0 0.0
    %1968 = vmatpush1.msra.mxu0 0.0
    %1969 = vmatprep.subr.mxu0 0.0
    %1970 = vmatpush1.msra.mxu0 0.0
    %1971 = vmatprep.subr.mxu0 0.0
    %1972 = vmatpush1.msra.mxu0 0.0
    %1973 = vmatprep.subr.mxu0 0.0
    %1974 = vmatpush1.msra.mxu0 0.0
    %1975 = vmatprep.subr.mxu0 0.0
    %1976 = vmatpush1.msra.mxu0 0.0
    %1977 = vmatprep.subr.mxu0 0.0
    %1978 = vmatpush1.msra.mxu0 0.0
    %1979 = vmatprep.subr.mxu0 0.0
    %1980 = vmatpush1.msra.mxu0 0.0
    %1981 = vmatprep.subr.mxu0 0.0
    %1982 = vmatpush1.msra.mxu0 0.0
    %1983 = vmatprep.subr.mxu0 0.0
    %1984 = vmatpush1.msra.mxu0 %v1869
    %1985 = vmatprep.subr.mxu0 0.0
    %1986 = vmatpush1.msra.mxu0 %v1868
    %1987 = vmatprep.subr.mxu0 0.0
    %1988 = vmatpush2.msra.mxu0 0.0
    %1989 = vmatprep.subr.mxu0 0.0
    %1990 = vmatpush2.msra.mxu0 0.0
    %1991 = vmatprep.subr.mxu0 0.0
    %1992 = vmatpush2.msra.mxu0 0.0
    %1993 = vmatprep.subr.mxu0 0.0
    %1994 = vmatpush2.msra.mxu0 0.0
    %1995 = vmatprep.subr.mxu0 0.0
    %1996 = vmatpush2.msra.mxu0 0.0
    %1997 = vmatprep.subr.mxu0 0.0
    %1998 = vmatpush2.msra.mxu0 0.0
    %1999 = vmatprep.subr.mxu0 0.0
    %2000 = vmatpush2.msra.mxu0 0.0
    %2001 = vmatprep.subr.mxu0 0.0
    %2002 = vmatpush2.msra.mxu0 0.0
    %2003 = vmatprep.subr.mxu0 0.0
    %2004 = vmatpush2.msra.mxu0 0.0
    %2005 = vmatprep.subr.mxu0 0.0
    %2006 = vmatpush2.msra.mxu0 0.0
    %2007 = vmatprep.subr.mxu0 0.0
    %2008 = vmatpush2.msra.mxu0 0.0
    %2009 = vmatprep.subr.mxu0 0.0
    %2010 = vmatpush2.msra.mxu0 0.0
    %2011 = vmatprep.subr.mxu0 0.0
    %2012 = vmatpush2.msra.mxu0 0.0
    %2013 = vmatprep.subr.mxu0 0.0
    %2014 = vmatpush2.msra.mxu0 0.0
    %2015 = vmatprep.subr.mxu0 0.0
    %2016 = vmatpush2.msra.mxu0 0.0
    %2017 = vmatprep.subr.mxu0 0.0
    %2018 = vmatpush2.msra.mxu0 0.0
    %2019 = vmatprep.mubr.f32.mxu0 0.0
    %2020 = vmatmul.mubr.f32.gmra.mxu0 %v1883
    %v2021 = vpop.f32.mrf.mxu0
    %v2022 = vadd.f32 0.0, %v2021
    %v2023 = vpop.f32.mrf.mxu0
    %2024 = vdwg.mxu0
    %2025 = vmatprep.subr.mxu0 0.0
    %2026 = vmatpush1.msra.mxu0 0.0
    %2027 = vmatprep.subr.mxu0 0.0
    %2028 = vmatpush1.msra.mxu0 0.0
    %2029 = vmatprep.subr.mxu0 0.0
    %2030 = vmatpush1.msra.mxu0 0.0
    %2031 = vmatprep.subr.mxu0 0.0
    %2032 = vmatpush1.msra.mxu0 0.0
    %2033 = vmatprep.subr.mxu0 0.0
    %2034 = vmatpush1.msra.mxu0 0.0
    %2035 = vmatprep.subr.mxu0 0.0
    %2036 = vmatpush1.msra.mxu0 0.0
    %2037 = vmatprep.subr.mxu0 0.0
    %2038 = vmatpush1.msra.mxu0 0.0
    %2039 = vmatprep.subr.mxu0 0.0
    %2040 = vmatpush1.msra.mxu0 0.0
    %2041 = vmatprep.subr.mxu0 0.0
    %2042 = vmatpush1.msra.mxu0 0.0
    %2043 = vmatprep.subr.mxu0 0.0
    %2044 = vmatpush1.msra.mxu0 0.0
    %2045 = vmatprep.subr.mxu0 0.0
    %2046 = vmatpush1.msra.mxu0 0.0
    %2047 = vmatprep.subr.mxu0 0.0
    %2048 = vmatpush1.msra.mxu0 0.0
    %2049 = vmatprep.subr.mxu0 0.0
    %2050 = vmatpush1.msra.mxu0 0.0
    %2051 = vmatprep.subr.mxu0 0.0
    %2052 = vmatpush1.msra.mxu0 0.0
    %2053 = vmatprep.subr.mxu0 0.0
    %2054 = vmatpush1.msra.mxu0 %v1871
    %2055 = vmatprep.subr.mxu0 0.0
    %2056 = vmatpush1.msra.mxu0 %v1870
    %2057 = vmatprep.subr.mxu0 0.0
    %2058 = vmatpush2.msra.mxu0 0.0
    %2059 = vmatprep.subr.mxu0 0.0
    %2060 = vmatpush2.msra.mxu0 0.0
    %2061 = vmatprep.subr.mxu0 0.0
    %2062 = vmatpush2.msra.mxu0 0.0
    %2063 = vmatprep.subr.mxu0 0.0
    %2064 = vmatpush2.msra.mxu0 0.0
    %2065 = vmatprep.subr.mxu0 0.0
    %2066 = vmatpush2.msra.mxu0 0.0
    %2067 = vmatprep.subr.mxu0 0.0
    %2068 = vmatpush2.msra.mxu0 0.0
    %2069 = vmatprep.subr.mxu0 0.0
    %2070 = vmatpush2.msra.mxu0 0.0
    %2071 = vmatprep.subr.mxu0 0.0
    %2072 = vmatpush2.msra.mxu0 0.0
    %2073 = vmatprep.subr.mxu0 0.0
    %2074 = vmatpush2.msra.mxu0 0.0
    %2075 = vmatprep.subr.mxu0 0.0
    %2076 = vmatpush2.msra.mxu0 0.0
    %2077 = vmatprep.subr.mxu0 0.0
    %2078 = vmatpush2.msra.mxu0 0.0
    %2079 = vmatprep.subr.mxu0 0.0
    %2080 = vmatpush2.msra.mxu0 0.0
    %2081 = vmatprep.subr.mxu0 0.0
    %2082 = vmatpush2.msra.mxu0 0.0
    %2083 = vmatprep.subr.mxu0 0.0
    %2084 = vmatpush2.msra.mxu0 0.0
    %2085 = vmatprep.subr.mxu0 0.0
    %2086 = vmatpush2.msra.mxu0 0.0
    %2087 = vmatprep.subr.mxu0 0.0
    %2088 = vmatpush2.msra.mxu0 0.0
    %2089 = vmatprep.mubr.f32.mxu0 0.0
    %2090 = vmatmul.mubr.f32.gmra.mxu0 %v1883
    %v2091 = vpop.f32.mrf.mxu0
    %v2092 = vadd.f32 0.0, %v2091
    %v2093 = vpop.f32.mrf.mxu0
    %2094 = vdwg.mxu0
    %2095 = vmatprep.subr.mxu0 0.0
    %2096 = vmatpush1.msra.mxu0 0.0
    %2097 = vmatprep.subr.mxu0 0.0
    %2098 = vmatpush1.msra.mxu0 0.0
    %2099 = vmatprep.subr.mxu0 0.0
    %2100 = vmatpush1.msra.mxu0 0.0
    %2101 = vmatprep.subr.mxu0 0.0
    %2102 = vmatpush1.msra.mxu0 0.0
    %2103 = vmatprep.subr.mxu0 0.0
    %2104 = vmatpush1.msra.mxu0 0.0
    %2105 = vmatprep.subr.mxu0 0.0
    %2106 = vmatpush1.msra.mxu0 0.0
    %2107 = vmatprep.subr.mxu0 0.0
    %2108 = vmatpush1.msra.mxu0 0.0
    %2109 = vmatprep.subr.mxu0 0.0
    %2110 = vmatpush1.msra.mxu0 0.0
    %2111 = vmatprep.subr.mxu0 0.0
    %2112 = vmatpush1.msra.mxu0 0.0
    %2113 = vmatprep.subr.mxu0 0.0
    %2114 = vmatpush1.msra.mxu0 0.0
    %2115 = vmatprep.subr.mxu0 0.0
    %2116 = vmatpush1.msra.mxu0 0.0
    %2117 = vmatprep.subr.mxu0 0.0
    %2118 = vmatpush1.msra.mxu0 0.0
    %2119 = vmatprep.subr.mxu0 0.0
    %2120 = vmatpush1.msra.mxu0 0.0
    %2121 = vmatprep.subr.mxu0 0.0
    %2122 = vmatpush1.msra.mxu0 0.0
    %2123 = vmatprep.subr.mxu0 0.0
    %2124 = vmatpush1.msra.mxu0 %v1873
    %2125 = vmatprep.subr.mxu0 0.0
    %2126 = vmatpush1.msra.mxu0 %v1872
    %2127 = vmatprep.subr.mxu0 0.0
    %2128 = vmatpush2.msra.mxu0 0.0
    %2129 = vmatprep.subr.mxu0 0.0
    %2130 = vmatpush2.msra.mxu0 0.0
    %2131 = vmatprep.subr.mxu0 0.0
    %2132 = vmatpush2.msra.mxu0 0.0
    %2133 = vmatprep.subr.mxu0 0.0
    %2134 = vmatpush2.msra.mxu0 0.0
    %2135 = vmatprep.subr.mxu0 0.0
    %2136 = vmatpush2.msra.mxu0 0.0
    %2137 = vmatprep.subr.mxu0 0.0
    %2138 = vmatpush2.msra.mxu0 0.0
    %2139 = vmatprep.subr.mxu0 0.0
    %2140 = vmatpush2.msra.mxu0 0.0
    %2141 = vmatprep.subr.mxu0 0.0
    %2142 = vmatpush2.msra.mxu0 0.0
    %2143 = vmatprep.subr.mxu0 0.0
    %2144 = vmatpush2.msra.mxu0 0.0
    %2145 = vmatprep.subr.mxu0 0.0
    %2146 = vmatpush2.msra.mxu0 0.0
    %2147 = vmatprep.subr.mxu0 0.0
    %2148 = vmatpush2.msra.mxu0 0.0
    %2149 = vmatprep.subr.mxu0 0.0
    %2150 = vmatpush2.msra.mxu0 0.0
    %2151 = vmatprep.subr.mxu0 0.0
    %2152 = vmatpush2.msra.mxu0 0.0
    %2153 = vmatprep.subr.mxu0 0.0
    %2154 = vmatpush2.msra.mxu0 0.0
    %2155 = vmatprep.subr.mxu0 0.0
    %2156 = vmatpush2.msra.mxu0 0.0
    %2157 = vmatprep.subr.mxu0 0.0
    %2158 = vmatpush2.msra.mxu0 0.0
    %2159 = vmatprep.mubr.f32.mxu0 0.0
    %2160 = vmatmul.mubr.f32.gmra.mxu0 %v1883
    %v2161 = vpop.f32.mrf.mxu0
    %v2162 = vadd.f32 0.0, %v2161
    %v2163 = vpop.f32.mrf.mxu0
    %2164 = vdwg.mxu0
    %2165 = vmatprep.subr.mxu0 0.0
    %2166 = vmatpush1.msra.mxu0 0.0
    %2167 = vmatprep.subr.mxu0 0.0
    %2168 = vmatpush1.msra.mxu0 0.0
    %2169 = vmatprep.subr.mxu0 0.0
    %2170 = vmatpush1.msra.mxu0 0.0
    %2171 = vmatprep.subr.mxu0 0.0
    %2172 = vmatpush1.msra.mxu0 0.0
    %2173 = vmatprep.subr.mxu0 0.0
    %2174 = vmatpush1.msra.mxu0 0.0
    %2175 = vmatprep.subr.mxu0 0.0
    %2176 = vmatpush1.msra.mxu0 0.0
    %2177 = vmatprep.subr.mxu0 0.0
    %2178 = vmatpush1.msra.mxu0 0.0
    %2179 = vmatprep.subr.mxu0 0.0
    %2180 = vmatpush1.msra.mxu0 0.0
    %2181 = vmatprep.subr.mxu0 0.0
    %2182 = vmatpush1.msra.mxu0 0.0
    %2183 = vmatprep.subr.mxu0 0.0
    %2184 = vmatpush1.msra.mxu0 0.0
    %2185 = vmatprep.subr.mxu0 0.0
    %2186 = vmatpush1.msra.mxu0 0.0
    %2187 = vmatprep.subr.mxu0 0.0
    %2188 = vmatpush1.msra.mxu0 0.0
    %2189 = vmatprep.subr.mxu0 0.0
    %2190 = vmatpush1.msra.mxu0 0.0
    %2191 = vmatprep.subr.mxu0 0.0
    %2192 = vmatpush1.msra.mxu0 0.0
    %2193 = vmatprep.subr.mxu0 0.0
    %2194 = vmatpush1.msra.mxu0 %v1875
    %2195 = vmatprep.subr.mxu0 0.0
    %2196 = vmatpush1.msra.mxu0 %v1874
    %2197 = vmatprep.subr.mxu0 0.0
    %2198 = vmatpush2.msra.mxu0 0.0
    %2199 = vmatprep.subr.mxu0 0.0
    %2200 = vmatpush2.msra.mxu0 0.0
    %2201 = vmatprep.subr.mxu0 0.0
    %2202 = vmatpush2.msra.mxu0 0.0
    %2203 = vmatprep.subr.mxu0 0.0
    %2204 = vmatpush2.msra.mxu0 0.0
    %2205 = vmatprep.subr.mxu0 0.0
    %2206 = vmatpush2.msra.mxu0 0.0
    %2207 = vmatprep.subr.mxu0 0.0
    %2208 = vmatpush2.msra.mxu0 0.0
    %2209 = vmatprep.subr.mxu0 0.0
    %2210 = vmatpush2.msra.mxu0 0.0
    %2211 = vmatprep.subr.mxu0 0.0
    %2212 = vmatpush2.msra.mxu0 0.0
    %2213 = vmatprep.subr.mxu0 0.0
    %2214 = vmatpush2.msra.mxu0 0.0
    %2215 = vmatprep.subr.mxu0 0.0
    %2216 = vmatpush2.msra.mxu0 0.0
    %2217 = vmatprep.subr.mxu0 0.0
    %2218 = vmatpush2.msra.mxu0 0.0
    %2219 = vmatprep.subr.mxu0 0.0
    %2220 = vmatpush2.msra.mxu0 0.0
    %2221 = vmatprep.subr.mxu0 0.0
    %2222 = vmatpush2.msra.mxu0 0.0
    %2223 = vmatprep.subr.mxu0 0.0
    %2224 = vmatpush2.msra.mxu0 0.0
    %2225 = vmatprep.subr.mxu0 0.0
    %2226 = vmatpush2.msra.mxu0 0.0
    %2227 = vmatprep.subr.mxu0 0.0
    %2228 = vmatpush2.msra.mxu0 0.0
    %2229 = vmatprep.mubr.f32.mxu0 0.0
    %2230 = vmatmul.mubr.f32.gmra.mxu0 %v1883
    %v2231 = vpop.f32.mrf.mxu0
    %v2232 = vadd.f32 0.0, %v2231
    %v2233 = vpop.f32.mrf.mxu0
    %2234 = vdwg.mxu0
    %2235 = vmatprep.subr.mxu0 0.0
    %2236 = vmatpush1.msra.mxu0 0.0
    %2237 = vmatprep.subr.mxu0 0.0
    %2238 = vmatpush1.msra.mxu0 0.0
    %2239 = vmatprep.subr.mxu0 0.0
    %2240 = vmatpush1.msra.mxu0 0.0
    %2241 = vmatprep.subr.mxu0 0.0
    %2242 = vmatpush1.msra.mxu0 0.0
    %2243 = vmatprep.subr.mxu0 0.0
    %2244 = vmatpush1.msra.mxu0 0.0
    %2245 = vmatprep.subr.mxu0 0.0
    %2246 = vmatpush1.msra.mxu0 0.0
    %2247 = vmatprep.subr.mxu0 0.0
    %2248 = vmatpush1.msra.mxu0 0.0
    %2249 = vmatprep.subr.mxu0 0.0
    %2250 = vmatpush1.msra.mxu0 0.0
    %2251 = vmatprep.subr.mxu0 0.0
    %2252 = vmatpush1.msra.mxu0 0.0
    %2253 = vmatprep.subr.mxu0 0.0
    %2254 = vmatpush1.msra.mxu0 0.0
    %2255 = vmatprep.subr.mxu0 0.0
    %2256 = vmatpush1.msra.mxu0 0.0
    %2257 = vmatprep.subr.mxu0 0.0
    %2258 = vmatpush1.msra.mxu0 0.0
    %2259 = vmatprep.subr.mxu0 0.0
    %2260 = vmatpush1.msra.mxu0 0.0
    %2261 = vmatprep.subr.mxu0 0.0
    %2262 = vmatpush1.msra.mxu0 0.0
    %2263 = vmatprep.subr.mxu0 0.0
    %2264 = vmatpush1.msra.mxu0 %v1877
    %2265 = vmatprep.subr.mxu0 0.0
    %2266 = vmatpush1.msra.mxu0 %v1876
    %2267 = vmatprep.subr.mxu0 0.0
    %2268 = vmatpush2.msra.mxu0 0.0
    %2269 = vmatprep.subr.mxu0 0.0
    %2270 = vmatpush2.msra.mxu0 0.0
    %2271 = vmatprep.subr.mxu0 0.0
    %2272 = vmatpush2.msra.mxu0 0.0
    %2273 = vmatprep.subr.mxu0 0.0
    %2274 = vmatpush2.msra.mxu0 0.0
    %2275 = vmatprep.subr.mxu0 0.0
    %2276 = vmatpush2.msra.mxu0 0.0
    %2277 = vmatprep.subr.mxu0 0.0
    %2278 = vmatpush2.msra.mxu0 0.0
    %2279 = vmatprep.subr.mxu0 0.0
    %2280 = vmatpush2.msra.mxu0 0.0
    %2281 = vmatprep.subr.mxu0 0.0
    %2282 = vmatpush2.msra.mxu0 0.0
    %2283 = vmatprep.subr.mxu0 0.0
    %2284 = vmatpush2.msra.mxu0 0.0
    %2285 = vmatprep.subr.mxu0 0.0
    %2286 = vmatpush2.msra.mxu0 0.0
    %2287 = vmatprep.subr.mxu0 0.0
    %2288 = vmatpush2.msra.mxu0 0.0
    %2289 = vmatprep.subr.mxu0 0.0
    %2290 = vmatpush2.msra.mxu0 0.0
    %2291 = vmatprep.subr.mxu0 0.0
    %2292 = vmatpush2.msra.mxu0 0.0
    %2293 = vmatprep.subr.mxu0 0.0
    %2294 = vmatpush2.msra.mxu0 0.0
    %2295 = vmatprep.subr.mxu0 0.0
    %2296 = vmatpush2.msra.mxu0 0.0
    %2297 = vmatprep.subr.mxu0 0.0
    %2298 = vmatpush2.msra.mxu0 0.0
    %2299 = vmatprep.mubr.f32.mxu0 0.0
    %2300 = vmatmul.mubr.f32.gmra.mxu0 %v1883
    %v2301 = vpop.f32.mrf.mxu0
    %v2302 = vadd.f32 0.0, %v2301
    %v2303 = vpop.f32.mrf.mxu0
    %2304 = vdwg.mxu0
    %2305 = vmatprep.subr.mxu0 0.0
    %2306 = vmatpush1.msra.mxu0 0.0
    %2307 = vmatprep.subr.mxu0 0.0
    %2308 = vmatpush1.msra.mxu0 0.0
    %2309 = vmatprep.subr.mxu0 0.0
    %2310 = vmatpush1.msra.mxu0 0.0
    %2311 = vmatprep.subr.mxu0 0.0
    %2312 = vmatpush1.msra.mxu0 0.0
    %2313 = vmatprep.subr.mxu0 0.0
    %2314 = vmatpush1.msra.mxu0 0.0
    %2315 = vmatprep.subr.mxu0 0.0
    %2316 = vmatpush1.msra.mxu0 0.0
    %2317 = vmatprep.subr.mxu0 0.0
    %2318 = vmatpush1.msra.mxu0 0.0
    %2319 = vmatprep.subr.mxu0 0.0
    %2320 = vmatpush1.msra.mxu0 0.0
    %2321 = vmatprep.subr.mxu0 0.0
    %2322 = vmatpush1.msra.mxu0 0.0
    %2323 = vmatprep.subr.mxu0 0.0
    %2324 = vmatpush1.msra.mxu0 0.0
    %2325 = vmatprep.subr.mxu0 0.0
    %2326 = vmatpush1.msra.mxu0 0.0
    %2327 = vmatprep.subr.mxu0 0.0
    %2328 = vmatpush1.msra.mxu0 0.0
    %2329 = vmatprep.subr.mxu0 0.0
    %2330 = vmatpush1.msra.mxu0 0.0
    %2331 = vmatprep.subr.mxu0 0.0
    %2332 = vmatpush1.msra.mxu0 0.0
    %2333 = vmatprep.subr.mxu0 0.0
    %2334 = vmatpush1.msra.mxu0 %v1879
    %2335 = vmatprep.subr.mxu0 0.0
    %2336 = vmatpush1.msra.mxu0 %v1878
    %2337 = vmatprep.subr.mxu0 0.0
    %2338 = vmatpush2.msra.mxu0 0.0
    %2339 = vmatprep.subr.mxu0 0.0
    %2340 = vmatpush2.msra.mxu0 0.0
    %2341 = vmatprep.subr.mxu0 0.0
    %2342 = vmatpush2.msra.mxu0 0.0
    %2343 = vmatprep.subr.mxu0 0.0
    %2344 = vmatpush2.msra.mxu0 0.0
    %2345 = vmatprep.subr.mxu0 0.0
    %2346 = vmatpush2.msra.mxu0 0.0
    %2347 = vmatprep.subr.mxu0 0.0
    %2348 = vmatpush2.msra.mxu0 0.0
    %2349 = vmatprep.subr.mxu0 0.0
    %2350 = vmatpush2.msra.mxu0 0.0
    %2351 = vmatprep.subr.mxu0 0.0
    %2352 = vmatpush2.msra.mxu0 0.0
    %2353 = vmatprep.subr.mxu0 0.0
    %2354 = vmatpush2.msra.mxu0 0.0
    %2355 = vmatprep.subr.mxu0 0.0
    %2356 = vmatpush2.msra.mxu0 0.0
    %2357 = vmatprep.subr.mxu0 0.0
    %2358 = vmatpush2.msra.mxu0 0.0
    %2359 = vmatprep.subr.mxu0 0.0
    %2360 = vmatpush2.msra.mxu0 0.0
    %2361 = vmatprep.subr.mxu0 0.0
    %2362 = vmatpush2.msra.mxu0 0.0
    %2363 = vmatprep.subr.mxu0 0.0
    %2364 = vmatpush2.msra.mxu0 0.0
    %2365 = vmatprep.subr.mxu0 0.0
    %2366 = vmatpush2.msra.mxu0 0.0
    %2367 = vmatprep.subr.mxu0 0.0
    %2368 = vmatpush2.msra.mxu0 0.0
    %2369 = vmatprep.mubr.f32.mxu0 0.0
    %2370 = vmatmul.mubr.f32.gmra.mxu0 %v1883
    %v2371 = vpop.f32.mrf.mxu0
    %v2372 = vadd.f32 0.0, %v2371
    %v2373 = vpop.f32.mrf.mxu0
    %2374 = vdwg.mxu0
    %2375 = vmatprep.subr.mxu0 0.0
    %2376 = vmatpush1.msra.mxu0 0.0
    %2377 = vmatprep.subr.mxu0 0.0
    %2378 = vmatpush1.msra.mxu0 0.0
    %2379 = vmatprep.subr.mxu0 0.0
    %2380 = vmatpush1.msra.mxu0 0.0
    %2381 = vmatprep.subr.mxu0 0.0
    %2382 = vmatpush1.msra.mxu0 0.0
    %2383 = vmatprep.subr.mxu0 0.0
    %2384 = vmatpush1.msra.mxu0 0.0
    %2385 = vmatprep.subr.mxu0 0.0
    %2386 = vmatpush1.msra.mxu0 0.0
    %2387 = vmatprep.subr.mxu0 0.0
    %2388 = vmatpush1.msra.mxu0 0.0
    %2389 = vmatprep.subr.mxu0 0.0
    %2390 = vmatpush1.msra.mxu0 0.0
    %2391 = vmatprep.subr.mxu0 0.0
    %2392 = vmatpush1.msra.mxu0 0.0
    %2393 = vmatprep.subr.mxu0 0.0
    %2394 = vmatpush1.msra.mxu0 0.0
    %2395 = vmatprep.subr.mxu0 0.0
    %2396 = vmatpush1.msra.mxu0 0.0
    %2397 = vmatprep.subr.mxu0 0.0
    %2398 = vmatpush1.msra.mxu0 0.0
    %2399 = vmatprep.subr.mxu0 0.0
    %2400 = vmatpush1.msra.mxu0 0.0
    %2401 = vmatprep.subr.mxu0 0.0
    %2402 = vmatpush1.msra.mxu0 0.0
    %2403 = vmatprep.subr.mxu0 0.0
    %2404 = vmatpush1.msra.mxu0 %v1881
    %2405 = vmatprep.subr.mxu0 0.0
    %2406 = vmatpush1.msra.mxu0 %v1880
    %2407 = vmatprep.subr.mxu0 0.0
    %2408 = vmatpush2.msra.mxu0 0.0
    %2409 = vmatprep.subr.mxu0 0.0
    %2410 = vmatpush2.msra.mxu0 0.0
    %2411 = vmatprep.subr.mxu0 0.0
    %2412 = vmatpush2.msra.mxu0 0.0
    %2413 = vmatprep.subr.mxu0 0.0
    %2414 = vmatpush2.msra.mxu0 0.0
    %2415 = vmatprep.subr.mxu0 0.0
    %2416 = vmatpush2.msra.mxu0 0.0
    %2417 = vmatprep.subr.mxu0 0.0
    %2418 = vmatpush2.msra.mxu0 0.0
    %2419 = vmatprep.subr.mxu0 0.0
    %2420 = vmatpush2.msra.mxu0 0.0
    %2421 = vmatprep.subr.mxu0 0.0
    %2422 = vmatpush2.msra.mxu0 0.0
    %2423 = vmatprep.subr.mxu0 0.0
    %2424 = vmatpush2.msra.mxu0 0.0
    %2425 = vmatprep.subr.mxu0 0.0
    %2426 = vmatpush2.msra.mxu0 0.0
    %2427 = vmatprep.subr.mxu0 0.0
    %2428 = vmatpush2.msra.mxu0 0.0
    %2429 = vmatprep.subr.mxu0 0.0
    %2430 = vmatpush2.msra.mxu0 0.0
    %2431 = vmatprep.subr.mxu0 0.0
    %2432 = vmatpush2.msra.mxu0 0.0
    %2433 = vmatprep.subr.mxu0 0.0
    %2434 = vmatpush2.msra.mxu0 0.0
    %2435 = vmatprep.subr.mxu0 0.0
    %2436 = vmatpush2.msra.mxu0 0.0
    %2437 = vmatprep.subr.mxu0 0.0
    %2438 = vmatpush2.msra.mxu0 0.0
    %2439 = vmatprep.mubr.f32.mxu0 0.0
    %2440 = vmatmul.mubr.f32.gmra.mxu0 %v1883
    %v2441 = vpop.f32.mrf.mxu0
    %v2442 = vadd.f32 0.0, %v2441
    %v2443 = vpop.f32.mrf.mxu0
    %2444 = vdwg.mxu0
    %v2446 = vrot.slane %v342, 1
    %v2447 = vrot.slane %v342, 2
    %v2448 = vrot.slane %v342, 3
    %v2449 = vrot.slane %v342, 4
    %v2450 = vrot.slane %v342, 5
    %v2451 = vrot.slane %v342, 6
    %v2452 = vrot.slane %v342, 7
    %v2461 = vadd.f32 %v1952, %v342
    %v2462 = vadd.f32 %v2022, %v2446
    %v2463 = vadd.f32 %v2092, %v2447
    %v2464 = vadd.f32 %v2162, %v2448
    %v2465 = vadd.f32 %v2232, %v2449
    %v2466 = vadd.f32 %v2302, %v2450
    %v2467 = vadd.f32 %v2372, %v2451
    %v2468 = vadd.f32 %v2442, %v2452
    %v2477 = vrot.slane %v2462, 7
    %v2478 = vsel %vm396, %v2477, %v2461
    %v2479 = vrot.slane %v2463, 6
    %v2480 = vsel %vm399, %v2479, %v2478
    %v2481 = vrot.slane %v2464, 5
    %v2482 = vsel %vm402, %v2481, %v2480
    %v2483 = vrot.slane %v2465, 4
    %v2484 = vsel %vm405, %v2483, %v2482
    %v2485 = vrot.slane %v2466, 3
    %v2486 = vsel %vm408, %v2485, %v2484
    %v2487 = vrot.slane %v2467, 2
    %v2488 = vsel %vm411, %v2487, %v2486
    %v2489 = vrot.slane %v2468, 1
    %v2490 = vsel %vm414, %v2489, %v2488
    %vm2492 = vcmask 64512
    %v2493 = vsel %vm2492, %v2490, -inf
    %2494 = vmax.xlane.f32.xlu0 %v2493
    %v2495 = vpop.xlane.xlu0 %2494
    %v2497 = vrot.slane %v2495, 1
    %v2498 = vrot.slane %v2495, 2
    %v2499 = vrot.slane %v2495, 3
    %v2500 = vrot.slane %v2495, 4
    %v2501 = vrot.slane %v2495, 5
    %v2502 = vrot.slane %v2495, 6
    %v2503 = vrot.slane %v2495, 7
    %v2512 = vsub.f32 %v2461, %v2495
    %v2513 = vsub.f32 %v2462, %v2497
    %v2514 = vsub.f32 %v2463, %v2498
    %v2515 = vsub.f32 %v2464, %v2499
    %v2516 = vsub.f32 %v2465, %v2500
    %v2517 = vsub.f32 %v2466, %v2501
    %v2518 = vsub.f32 %v2467, %v2502
    %v2519 = vsub.f32 %v2468, %v2503
    %v2520 = vmul.f32 %v2512, 1.442695
    %v2521 = vpow.pop %v2520
    %v2522 = vmul.f32 %v2513, 1.442695
    %v2523 = vpow.pop %v2522
    %v2524 = vmul.f32 %v2514, 1.442695
    %v2525 = vpow.pop %v2524
    %v2526 = vmul.f32 %v2515, 1.442695
    %v2527 = vpow.pop %v2526
    %v2528 = vmul.f32 %v2516, 1.442695
    %v2529 = vpow.pop %v2528
    %v2530 = vmul.f32 %v2517, 1.442695
    %v2531 = vpow.pop %v2530
    %v2532 = vmul.f32 %v2518, 1.442695
    %v2533 = vpow.pop %v2532
    %v2534 = vmul.f32 %v2519, 1.442695
    %v2535 = vpow.pop %v2534
    %v2544 = vrot.slane %v2523, 7
    %v2545 = vsel %vm396, %v2544, %v2521
    %v2546 = vrot.slane %v2525, 6
    %v2547 = vsel %vm399, %v2546, %v2545
    %v2548 = vrot.slane %v2527, 5
    %v2549 = vsel %vm402, %v2548, %v2547
    %v2550 = vrot.slane %v2529, 4
    %v2551 = vsel %vm405, %v2550, %v2549
    %v2552 = vrot.slane %v2531, 3
    %v2553 = vsel %vm408, %v2552, %v2551
    %v2554 = vrot.slane %v2533, 2
    %v2555 = vsel %vm411, %v2554, %v2553
    %v2556 = vrot.slane %v2535, 1
    %v2557 = vsel %vm414, %v2556, %v2555
    %v2559 = vsel %vm2492, %v2557, 0.0
    %2560 = vadd.xlane.f32.xlu0 %v2559
    %v2561 = vpop.xlane.xlu0 %2560
    %v2562 = vrcp.pop %v2561
    %v2564 = vrot.slane %v2562, 1
    %v2565 = vrot.slane %v2562, 2
    %v2566 = vrot.slane %v2562, 3
    %v2567 = vrot.slane %v2562, 4
    %v2568 = vrot.slane %v2562, 5
    %v2569 = vrot.slane %v2562, 6
    %v2570 = vrot.slane %v2562, 7
    %v2579 = vmul.f32 %v2521, %v2562
    %v2580 = vmul.f32 %v2523, %v2564
    %v2581 = vmul.f32 %v2525, %v2565
    %v2582 = vmul.f32 %v2527, %v2566
    %v2583 = vmul.f32 %v2529, %v2567
    %v2584 = vmul.f32 %v2531, %v2568
    %v2585 = vmul.f32 %v2533, %v2569
    %v2586 = vmul.f32 %v2535, %v2570
    %v2587 = vadd.f32 %v364, %v2579
    %v2588 = vadd.f32 %v365, %v2580
    %v2589 = vadd.f32 %v366, %v2581
    %v2590 = vadd.f32 %v367, %v2582
    %v2591 = vadd.f32 %v368, %v2583
    %v2592 = vadd.f32 %v369, %v2584
    %v2593 = vadd.f32 %v370, %v2585
    %v2594 = vadd.f32 %v371, %v2586
    %v2595 = vld [vmem:[%s1] sm:$0xff]
    %v2596 = vld [vmem:[%s1 + $0x8] sm:$0xff]
    %v2597 = vld [vmem:[%s1 + $0x10] sm:$0xff]
    %v2598 = vld [vmem:[%s1 + $0x18] sm:$0xff]
    %v2599 = vld [vmem:[%s1 + $0x20] sm:$0xff]
    %v2600 = vld [vmem:[%s1 + $0x28] sm:$0xff]
    %v2601 = vld [vmem:[%s1 + $0x30] sm:$0xff]
    %v2602 = vld [vmem:[%s1 + $0x38] sm:$0xff]
    %v2604 = vsel %vm2492, %v2579, 0
    %2606 = vmatprep.subr.mxu0 0.0
    %2607 = vmatpush1.msra.mxu0 0.0
    %2608 = vmatprep.subr.mxu0 0.0
    %2609 = vmatpush1.msra.mxu0 0.0
    %2610 = vmatprep.subr.mxu0 0.0
    %2611 = vmatpush1.msra.mxu0 0.0
    %2612 = vmatprep.subr.mxu0 0.0
    %2613 = vmatpush1.msra.mxu0 0.0
    %2614 = vmatprep.subr.mxu0 0.0
    %2615 = vmatpush1.msra.mxu0 0.0
    %2616 = vmatprep.subr.mxu0 0.0
    %2617 = vmatpush1.msra.mxu0 0.0
    %2618 = vmatprep.subr.mxu0 0.0
    %2619 = vmatpush1.msra.mxu0 0.0
    %2620 = vmatprep.subr.mxu0 0.0
    %2621 = vmatpush1.msra.mxu0 0.0
    %2622 = vmatprep.subr.mxu0 0.0
    %2623 = vmatpush1.msra.mxu0 0.0
    %2624 = vmatprep.subr.mxu0 0.0
    %2625 = vmatpush1.msra.mxu0 0.0
    %2626 = vmatprep.subr.mxu0 0.0
    %2627 = vmatpush1.msra.mxu0 0.0
    %2628 = vmatprep.subr.mxu0 0.0
    %2629 = vmatpush1.msra.mxu0 0.0
    %2630 = vmatprep.subr.mxu0 0.0
    %2631 = vmatpush1.msra.mxu0 0.0
    %2632 = vmatprep.subr.mxu0 0.0
    %2633 = vmatpush1.msra.mxu0 0.0
    %2634 = vmatprep.subr.mxu0 0.0
    %2635 = vmatpush1.msra.mxu0 0.0
    %2636 = vmatprep.subr.mxu0 0.0
    %2637 = vmatpush1.msra.mxu0 %v2595
    %2638 = vmatprep.subr.mxu0 0.0
    %2639 = vmatpush2.msra.mxu0 0.0
    %2640 = vmatprep.subr.mxu0 0.0
    %2641 = vmatpush2.msra.mxu0 0.0
    %2642 = vmatprep.subr.mxu0 0.0
    %2643 = vmatpush2.msra.mxu0 0.0
    %2644 = vmatprep.subr.mxu0 0.0
    %2645 = vmatpush2.msra.mxu0 0.0
    %2646 = vmatprep.subr.mxu0 0.0
    %2647 = vmatpush2.msra.mxu0 0.0
    %2648 = vmatprep.subr.mxu0 0.0
    %2649 = vmatpush2.msra.mxu0 0.0
    %2650 = vmatprep.subr.mxu0 0.0
    %2651 = vmatpush2.msra.mxu0 0.0
    %2652 = vmatprep.subr.mxu0 0.0
    %2653 = vmatpush2.msra.mxu0 0.0
    %2654 = vmatprep.subr.mxu0 0.0
    %2655 = vmatpush2.msra.mxu0 0.0
    %2656 = vmatprep.subr.mxu0 0.0
    %2657 = vmatpush2.msra.mxu0 0.0
    %2658 = vmatprep.subr.mxu0 0.0
    %2659 = vmatpush2.msra.mxu0 0.0
    %2660 = vmatprep.subr.mxu0 0.0
    %2661 = vmatpush2.msra.mxu0 0.0
    %2662 = vmatprep.subr.mxu0 0.0
    %2663 = vmatpush2.msra.mxu0 0.0
    %2664 = vmatprep.subr.mxu0 0.0
    %2665 = vmatpush2.msra.mxu0 0.0
    %2666 = vmatprep.subr.mxu0 0.0
    %2667 = vmatpush2.msra.mxu0 0.0
    %2668 = vmatprep.subr.mxu0 0.0
    %2669 = vmatpush2.msra.mxu0 0.0
    %2670 = vmatprep.mubr.f32.mxu0 0.0
    %2671 = vmatmul.mubr.f32.gmra.mxu0 %v2604
    %v2672 = vpop.f32.mrf.mxu0
    %v2673 = vadd.f32 0.0, %v2672
    %v2674 = vpop.f32.mrf.mxu0
    %2675 = vdwg.mxu0
    %v2677 = vsel %vm2492, %v2580, 0
    %2679 = vmatprep.subr.mxu0 0.0
    %2680 = vmatpush1.msra.mxu0 0.0
    %2681 = vmatprep.subr.mxu0 0.0
    %2682 = vmatpush1.msra.mxu0 0.0
    %2683 = vmatprep.subr.mxu0 0.0
    %2684 = vmatpush1.msra.mxu0 0.0
    %2685 = vmatprep.subr.mxu0 0.0
    %2686 = vmatpush1.msra.mxu0 0.0
    %2687 = vmatprep.subr.mxu0 0.0
    %2688 = vmatpush1.msra.mxu0 0.0
    %2689 = vmatprep.subr.mxu0 0.0
    %2690 = vmatpush1.msra.mxu0 0.0
    %2691 = vmatprep.subr.mxu0 0.0
    %2692 = vmatpush1.msra.mxu0 0.0
    %2693 = vmatprep.subr.mxu0 0.0
    %2694 = vmatpush1.msra.mxu0 0.0
    %2695 = vmatprep.subr.mxu0 0.0
    %2696 = vmatpush1.msra.mxu0 0.0
    %2697 = vmatprep.subr.mxu0 0.0
    %2698 = vmatpush1.msra.mxu0 0.0
    %2699 = vmatprep.subr.mxu0 0.0
    %2700 = vmatpush1.msra.mxu0 0.0
    %2701 = vmatprep.subr.mxu0 0.0
    %2702 = vmatpush1.msra.mxu0 0.0
    %2703 = vmatprep.subr.mxu0 0.0
    %2704 = vmatpush1.msra.mxu0 0.0
    %2705 = vmatprep.subr.mxu0 0.0
    %2706 = vmatpush1.msra.mxu0 0.0
    %2707 = vmatprep.subr.mxu0 0.0
    %2708 = vmatpush1.msra.mxu0 0.0
    %2709 = vmatprep.subr.mxu0 0.0
    %2710 = vmatpush1.msra.mxu0 %v2596
    %2711 = vmatprep.subr.mxu0 0.0
    %2712 = vmatpush2.msra.mxu0 0.0
    %2713 = vmatprep.subr.mxu0 0.0
    %2714 = vmatpush2.msra.mxu0 0.0
    %2715 = vmatprep.subr.mxu0 0.0
    %2716 = vmatpush2.msra.mxu0 0.0
    %2717 = vmatprep.subr.mxu0 0.0
    %2718 = vmatpush2.msra.mxu0 0.0
    %2719 = vmatprep.subr.mxu0 0.0
    %2720 = vmatpush2.msra.mxu0 0.0
    %2721 = vmatprep.subr.mxu0 0.0
    %2722 = vmatpush2.msra.mxu0 0.0
    %2723 = vmatprep.subr.mxu0 0.0
    %2724 = vmatpush2.msra.mxu0 0.0
    %2725 = vmatprep.subr.mxu0 0.0
    %2726 = vmatpush2.msra.mxu0 0.0
    %2727 = vmatprep.subr.mxu0 0.0
    %2728 = vmatpush2.msra.mxu0 0.0
    %2729 = vmatprep.subr.mxu0 0.0
    %2730 = vmatpush2.msra.mxu0 0.0
    %2731 = vmatprep.subr.mxu0 0.0
    %2732 = vmatpush2.msra.mxu0 0.0
    %2733 = vmatprep.subr.mxu0 0.0
    %2734 = vmatpush2.msra.mxu0 0.0
    %2735 = vmatprep.subr.mxu0 0.0
    %2736 = vmatpush2.msra.mxu0 0.0
    %2737 = vmatprep.subr.mxu0 0.0
    %2738 = vmatpush2.msra.mxu0 0.0
    %2739 = vmatprep.subr.mxu0 0.0
    %2740 = vmatpush2.msra.mxu0 0.0
    %2741 = vmatprep.subr.mxu0 0.0
    %2742 = vmatpush2.msra.mxu0 0.0
    %2743 = vmatprep.mubr.f32.mxu0 0.0
    %2744 = vmatmul.mubr.f32.gmra.mxu0 %v2677
    %v2745 = vpop.f32.mrf.mxu0
    %v2746 = vadd.f32 0.0, %v2745
    %v2747 = vpop.f32.mrf.mxu0
    %2748 = vdwg.mxu0
    %v2750 = vsel %vm2492, %v2581, 0
    %2752 = vmatprep.subr.mxu0 0.0
    %2753 = vmatpush1.msra.mxu0 0.0
    %2754 = vmatprep.subr.mxu0 0.0
    %2755 = vmatpush1.msra.mxu0 0.0
    %2756 = vmatprep.subr.mxu0 0.0
    %2757 = vmatpush1.msra.mxu0 0.0
    %2758 = vmatprep.subr.mxu0 0.0
    %2759 = vmatpush1.msra.mxu0 0.0
    %2760 = vmatprep.subr.mxu0 0.0
    %2761 = vmatpush1.msra.mxu0 0.0
    %2762 = vmatprep.subr.mxu0 0.0
    %2763 = vmatpush1.msra.mxu0 0.0
    %2764 = vmatprep.subr.mxu0 0.0
    %2765 = vmatpush1.msra.mxu0 0.0
    %2766 = vmatprep.subr.mxu0 0.0
    %2767 = vmatpush1.msra.mxu0 0.0
    %2768 = vmatprep.subr.mxu0 0.0
    %2769 = vmatpush1.msra.mxu0 0.0
    %2770 = vmatprep.subr.mxu0 0.0
    %2771 = vmatpush1.msra.mxu0 0.0
    %2772 = vmatprep.subr.mxu0 0.0
    %2773 = vmatpush1.msra.mxu0 0.0
    %2774 = vmatprep.subr.mxu0 0.0
    %2775 = vmatpush1.msra.mxu0 0.0
    %2776 = vmatprep.subr.mxu0 0.0
    %2777 = vmatpush1.msra.mxu0 0.0
    %2778 = vmatprep.subr.mxu0 0.0
    %2779 = vmatpush1.msra.mxu0 0.0
    %2780 = vmatprep.subr.mxu0 0.0
    %2781 = vmatpush1.msra.mxu0 0.0
    %2782 = vmatprep.subr.mxu0 0.0
    %2783 = vmatpush1.msra.mxu0 %v2597
    %2784 = vmatprep.subr.mxu0 0.0
    %2785 = vmatpush2.msra.mxu0 0.0
    %2786 = vmatprep.subr.mxu0 0.0
    %2787 = vmatpush2.msra.mxu0 0.0
    %2788 = vmatprep.subr.mxu0 0.0
    %2789 = vmatpush2.msra.mxu0 0.0
    %2790 = vmatprep.subr.mxu0 0.0
    %2791 = vmatpush2.msra.mxu0 0.0
    %2792 = vmatprep.subr.mxu0 0.0
    %2793 = vmatpush2.msra.mxu0 0.0
    %2794 = vmatprep.subr.mxu0 0.0
    %2795 = vmatpush2.msra.mxu0 0.0
    %2796 = vmatprep.subr.mxu0 0.0
    %2797 = vmatpush2.msra.mxu0 0.0
    %2798 = vmatprep.subr.mxu0 0.0
    %2799 = vmatpush2.msra.mxu0 0.0
    %2800 = vmatprep.subr.mxu0 0.0
    %2801 = vmatpush2.msra.mxu0 0.0
    %2802 = vmatprep.subr.mxu0 0.0
    %2803 = vmatpush2.msra.mxu0 0.0
    %2804 = vmatprep.subr.mxu0 0.0
    %2805 = vmatpush2.msra.mxu0 0.0
    %2806 = vmatprep.subr.mxu0 0.0
    %2807 = vmatpush2.msra.mxu0 0.0
    %2808 = vmatprep.subr.mxu0 0.0
    %2809 = vmatpush2.msra.mxu0 0.0
    %2810 = vmatprep.subr.mxu0 0.0
    %2811 = vmatpush2.msra.mxu0 0.0
    %2812 = vmatprep.subr.mxu0 0.0
    %2813 = vmatpush2.msra.mxu0 0.0
    %2814 = vmatprep.subr.mxu0 0.0
    %2815 = vmatpush2.msra.mxu0 0.0
    %2816 = vmatprep.mubr.f32.mxu0 0.0
    %2817 = vmatmul.mubr.f32.gmra.mxu0 %v2750
    %v2818 = vpop.f32.mrf.mxu0
    %v2819 = vadd.f32 0.0, %v2818
    %v2820 = vpop.f32.mrf.mxu0
    %2821 = vdwg.mxu0
    %v2823 = vsel %vm2492, %v2582, 0
    %2825 = vmatprep.subr.mxu0 0.0
    %2826 = vmatpush1.msra.mxu0 0.0
    %2827 = vmatprep.subr.mxu0 0.0
    %2828 = vmatpush1.msra.mxu0 0.0
    %2829 = vmatprep.subr.mxu0 0.0
    %2830 = vmatpush1.msra.mxu0 0.0
    %2831 = vmatprep.subr.mxu0 0.0
    %2832 = vmatpush1.msra.mxu0 0.0
    %2833 = vmatprep.subr.mxu0 0.0
    %2834 = vmatpush1.msra.mxu0 0.0
    %2835 = vmatprep.subr.mxu0 0.0
    %2836 = vmatpush1.msra.mxu0 0.0
    %2837 = vmatprep.subr.mxu0 0.0
    %2838 = vmatpush1.msra.mxu0 0.0
    %2839 = vmatprep.subr.mxu0 0.0
    %2840 = vmatpush1.msra.mxu0 0.0
    %2841 = vmatprep.subr.mxu0 0.0
    %2842 = vmatpush1.msra.mxu0 0.0
    %2843 = vmatprep.subr.mxu0 0.0
    %2844 = vmatpush1.msra.mxu0 0.0
    %2845 = vmatprep.subr.mxu0 0.0
    %2846 = vmatpush1.msra.mxu0 0.0
    %2847 = vmatprep.subr.mxu0 0.0
    %2848 = vmatpush1.msra.mxu0 0.0
    %2849 = vmatprep.subr.mxu0 0.0
    %2850 = vmatpush1.msra.mxu0 0.0
    %2851 = vmatprep.subr.mxu0 0.0
    %2852 = vmatpush1.msra.mxu0 0.0
    %2853 = vmatprep.subr.mxu0 0.0
    %2854 = vmatpush1.msra.mxu0 0.0
    %2855 = vmatprep.subr.mxu0 0.0
    %2856 = vmatpush1.msra.mxu0 %v2598
    %2857 = vmatprep.subr.mxu0 0.0
    %2858 = vmatpush2.msra.mxu0 0.0
    %2859 = vmatprep.subr.mxu0 0.0
    %2860 = vmatpush2.msra.mxu0 0.0
    %2861 = vmatprep.subr.mxu0 0.0
    %2862 = vmatpush2.msra.mxu0 0.0
    %2863 = vmatprep.subr.mxu0 0.0
    %2864 = vmatpush2.msra.mxu0 0.0
    %2865 = vmatprep.subr.mxu0 0.0
    %2866 = vmatpush2.msra.mxu0 0.0
    %2867 = vmatprep.subr.mxu0 0.0
    %2868 = vmatpush2.msra.mxu0 0.0
    %2869 = vmatprep.subr.mxu0 0.0
    %2870 = vmatpush2.msra.mxu0 0.0
    %2871 = vmatprep.subr.mxu0 0.0
    %2872 = vmatpush2.msra.mxu0 0.0
    %2873 = vmatprep.subr.mxu0 0.0
    %2874 = vmatpush2.msra.mxu0 0.0
    %2875 = vmatprep.subr.mxu0 0.0
    %2876 = vmatpush2.msra.mxu0 0.0
    %2877 = vmatprep.subr.mxu0 0.0
    %2878 = vmatpush2.msra.mxu0 0.0
    %2879 = vmatprep.subr.mxu0 0.0
    %2880 = vmatpush2.msra.mxu0 0.0
    %2881 = vmatprep.subr.mxu0 0.0
    %2882 = vmatpush2.msra.mxu0 0.0
    %2883 = vmatprep.subr.mxu0 0.0
    %2884 = vmatpush2.msra.mxu0 0.0
    %2885 = vmatprep.subr.mxu0 0.0
    %2886 = vmatpush2.msra.mxu0 0.0
    %2887 = vmatprep.subr.mxu0 0.0
    %2888 = vmatpush2.msra.mxu0 0.0
    %2889 = vmatprep.mubr.f32.mxu0 0.0
    %2890 = vmatmul.mubr.f32.gmra.mxu0 %v2823
    %v2891 = vpop.f32.mrf.mxu0
    %v2892 = vadd.f32 0.0, %v2891
    %v2893 = vpop.f32.mrf.mxu0
    %2894 = vdwg.mxu0
    %v2896 = vsel %vm2492, %v2583, 0
    %2898 = vmatprep.subr.mxu0 0.0
    %2899 = vmatpush1.msra.mxu0 0.0
    %2900 = vmatprep.subr.mxu0 0.0
    %2901 = vmatpush1.msra.mxu0 0.0
    %2902 = vmatprep.subr.mxu0 0.0
    %2903 = vmatpush1.msra.mxu0 0.0
    %2904 = vmatprep.subr.mxu0 0.0
    %2905 = vmatpush1.msra.mxu0 0.0
    %2906 = vmatprep.subr.mxu0 0.0
    %2907 = vmatpush1.msra.mxu0 0.0
    %2908 = vmatprep.subr.mxu0 0.0
    %2909 = vmatpush1.msra.mxu0 0.0
    %2910 = vmatprep.subr.mxu0 0.0
    %2911 = vmatpush1.msra.mxu0 0.0
    %2912 = vmatprep.subr.mxu0 0.0
    %2913 = vmatpush1.msra.mxu0 0.0
    %2914 = vmatprep.subr.mxu0 0.0
    %2915 = vmatpush1.msra.mxu0 0.0
    %2916 = vmatprep.subr.mxu0 0.0
    %2917 = vmatpush1.msra.mxu0 0.0
    %2918 = vmatprep.subr.mxu0 0.0
    %2919 = vmatpush1.msra.mxu0 0.0
    %2920 = vmatprep.subr.mxu0 0.0
    %2921 = vmatpush1.msra.mxu0 0.0
    %2922 = vmatprep.subr.mxu0 0.0
    %2923 = vmatpush1.msra.mxu0 0.0
    %2924 = vmatprep.subr.mxu0 0.0
    %2925 = vmatpush1.msra.mxu0 0.0
    %2926 = vmatprep.subr.mxu0 0.0
    %2927 = vmatpush1.msra.mxu0 0.0
    %2928 = vmatprep.subr.mxu0 0.0
    %2929 = vmatpush1.msra.mxu0 %v2599
    %2930 = vmatprep.subr.mxu0 0.0
    %2931 = vmatpush2.msra.mxu0 0.0
    %2932 = vmatprep.subr.mxu0 0.0
    %2933 = vmatpush2.msra.mxu0 0.0
    %2934 = vmatprep.subr.mxu0 0.0
    %2935 = vmatpush2.msra.mxu0 0.0
    %2936 = vmatprep.subr.mxu0 0.0
    %2937 = vmatpush2.msra.mxu0 0.0
    %2938 = vmatprep.subr.mxu0 0.0
    %2939 = vmatpush2.msra.mxu0 0.0
    %2940 = vmatprep.subr.mxu0 0.0
    %2941 = vmatpush2.msra.mxu0 0.0
    %2942 = vmatprep.subr.mxu0 0.0
    %2943 = vmatpush2.msra.mxu0 0.0
    %2944 = vmatprep.subr.mxu0 0.0
    %2945 = vmatpush2.msra.mxu0 0.0
    %2946 = vmatprep.subr.mxu0 0.0
    %2947 = vmatpush2.msra.mxu0 0.0
    %2948 = vmatprep.subr.mxu0 0.0
    %2949 = vmatpush2.msra.mxu0 0.0
    %2950 = vmatprep.subr.mxu0 0.0
    %2951 = vmatpush2.msra.mxu0 0.0
    %2952 = vmatprep.subr.mxu0 0.0
    %2953 = vmatpush2.msra.mxu0 0.0
    %2954 = vmatprep.subr.mxu0 0.0
    %2955 = vmatpush2.msra.mxu0 0.0
    %2956 = vmatprep.subr.mxu0 0.0
    %2957 = vmatpush2.msra.mxu0 0.0
    %2958 = vmatprep.subr.mxu0 0.0
    %2959 = vmatpush2.msra.mxu0 0.0
    %2960 = vmatprep.subr.mxu0 0.0
    %2961 = vmatpush2.msra.mxu0 0.0
    %2962 = vmatprep.mubr.f32.mxu0 0.0
    %2963 = vmatmul.mubr.f32.gmra.mxu0 %v2896
    %v2964 = vpop.f32.mrf.mxu0
    %v2965 = vadd.f32 0.0, %v2964
    %v2966 = vpop.f32.mrf.mxu0
    %2967 = vdwg.mxu0
    %v2969 = vsel %vm2492, %v2584, 0
    %2971 = vmatprep.subr.mxu0 0.0
    %2972 = vmatpush1.msra.mxu0 0.0
    %2973 = vmatprep.subr.mxu0 0.0
    %2974 = vmatpush1.msra.mxu0 0.0
    %2975 = vmatprep.subr.mxu0 0.0
    %2976 = vmatpush1.msra.mxu0 0.0
    %2977 = vmatprep.subr.mxu0 0.0
    %2978 = vmatpush1.msra.mxu0 0.0
    %2979 = vmatprep.subr.mxu0 0.0
    %2980 = vmatpush1.msra.mxu0 0.0
    %2981 = vmatprep.subr.mxu0 0.0
    %2982 = vmatpush1.msra.mxu0 0.0
    %2983 = vmatprep.subr.mxu0 0.0
    %2984 = vmatpush1.msra.mxu0 0.0
    %2985 = vmatprep.subr.mxu0 0.0
    %2986 = vmatpush1.msra.mxu0 0.0
    %2987 = vmatprep.subr.mxu0 0.0
    %2988 = vmatpush1.msra.mxu0 0.0
    %2989 = vmatprep.subr.mxu0 0.0
    %2990 = vmatpush1.msra.mxu0 0.0
    %2991 = vmatprep.subr.mxu0 0.0
    %2992 = vmatpush1.msra.mxu0 0.0
    %2993 = vmatprep.subr.mxu0 0.0
    %2994 = vmatpush1.msra.mxu0 0.0
    %2995 = vmatprep.subr.mxu0 0.0
    %2996 = vmatpush1.msra.mxu0 0.0
    %2997 = vmatprep.subr.mxu0 0.0
    %2998 = vmatpush1.msra.mxu0 0.0
    %2999 = vmatprep.subr.mxu0 0.0
    %3000 = vmatpush1.msra.mxu0 0.0
    %3001 = vmatprep.subr.mxu0 0.0
    %3002 = vmatpush1.msra.mxu0 %v2600
    %3003 = vmatprep.subr.mxu0 0.0
    %3004 = vmatpush2.msra.mxu0 0.0
    %3005 = vmatprep.subr.mxu0 0.0
    %3006 = vmatpush2.msra.mxu0 0.0
    %3007 = vmatprep.subr.mxu0 0.0
    %3008 = vmatpush2.msra.mxu0 0.0
    %3009 = vmatprep.subr.mxu0 0.0
    %3010 = vmatpush2.msra.mxu0 0.0
    %3011 = vmatprep.subr.mxu0 0.0
    %3012 = vmatpush2.msra.mxu0 0.0
    %3013 = vmatprep.subr.mxu0 0.0
    %3014 = vmatpush2.msra.mxu0 0.0
    %3015 = vmatprep.subr.mxu0 0.0
    %3016 = vmatpush2.msra.mxu0 0.0
    %3017 = vmatprep.subr.mxu0 0.0
    %3018 = vmatpush2.msra.mxu0 0.0
    %3019 = vmatprep.subr.mxu0 0.0
    %3020 = vmatpush2.msra.mxu0 0.0
    %3021 = vmatprep.subr.mxu0 0.0
    %3022 = vmatpush2.msra.mxu0 0.0
    %3023 = vmatprep.subr.mxu0 0.0
    %3024 = vmatpush2.msra.mxu0 0.0
    %3025 = vmatprep.subr.mxu0 0.0
    %3026 = vmatpush2.msra.mxu0 0.0
    %3027 = vmatprep.subr.mxu0 0.0
    %3028 = vmatpush2.msra.mxu0 0.0
    %3029 = vmatprep.subr.mxu0 0.0
    %3030 = vmatpush2.msra.mxu0 0.0
    %3031 = vmatprep.subr.mxu0 0.0
    %3032 = vmatpush2.msra.mxu0 0.0
    %3033 = vmatprep.subr.mxu0 0.0
    %3034 = vmatpush2.msra.mxu0 0.0
    %3035 = vmatprep.mubr.f32.mxu0 0.0
    %3036 = vmatmul.mubr.f32.gmra.mxu0 %v2969
    %v3037 = vpop.f32.mrf.mxu0
    %v3038 = vadd.f32 0.0, %v3037
    %v3039 = vpop.f32.mrf.mxu0
    %3040 = vdwg.mxu0
    %v3042 = vsel %vm2492, %v2585, 0
    %3044 = vmatprep.subr.mxu0 0.0
    %3045 = vmatpush1.msra.mxu0 0.0
    %3046 = vmatprep.subr.mxu0 0.0
    %3047 = vmatpush1.msra.mxu0 0.0
    %3048 = vmatprep.subr.mxu0 0.0
    %3049 = vmatpush1.msra.mxu0 0.0
    %3050 = vmatprep.subr.mxu0 0.0
    %3051 = vmatpush1.msra.mxu0 0.0
    %3052 = vmatprep.subr.mxu0 0.0
    %3053 = vmatpush1.msra.mxu0 0.0
    %3054 = vmatprep.subr.mxu0 0.0
    %3055 = vmatpush1.msra.mxu0 0.0
    %3056 = vmatprep.subr.mxu0 0.0
    %3057 = vmatpush1.msra.mxu0 0.0
    %3058 = vmatprep.subr.mxu0 0.0
    %3059 = vmatpush1.msra.mxu0 0.0
    %3060 = vmatprep.subr.mxu0 0.0
    %3061 = vmatpush1.msra.mxu0 0.0
    %3062 = vmatprep.subr.mxu0 0.0
    %3063 = vmatpush1.msra.mxu0 0.0
    %3064 = vmatprep.subr.mxu0 0.0
    %3065 = vmatpush1.msra.mxu0 0.0
    %3066 = vmatprep.subr.mxu0 0.0
    %3067 = vmatpush1.msra.mxu0 0.0
    %3068 = vmatprep.subr.mxu0 0.0
    %3069 = vmatpush1.msra.mxu0 0.0
    %3070 = vmatprep.subr.mxu0 0.0
    %3071 = vmatpush1.msra.mxu0 0.0
    %3072 = vmatprep.subr.mxu0 0.0
    %3073 = vmatpush1.msra.mxu0 0.0
    %3074 = vmatprep.subr.mxu0 0.0
    %3075 = vmatpush1.msra.mxu0 %v2601
    %3076 = vmatprep.subr.mxu0 0.0
    %3077 = vmatpush2.msra.mxu0 0.0
    %3078 = vmatprep.subr.mxu0 0.0
    %3079 = vmatpush2.msra.mxu0 0.0
    %3080 = vmatprep.subr.mxu0 0.0
    %3081 = vmatpush2.msra.mxu0 0.0
    %3082 = vmatprep.subr.mxu0 0.0
    %3083 = vmatpush2.msra.mxu0 0.0
    %3084 = vmatprep.subr.mxu0 0.0
    %3085 = vmatpush2.msra.mxu0 0.0
    %3086 = vmatprep.subr.mxu0 0.0
    %3087 = vmatpush2.msra.mxu0 0.0
    %3088 = vmatprep.subr.mxu0 0.0
    %3089 = vmatpush2.msra.mxu0 0.0
    %3090 = vmatprep.subr.mxu0 0.0
    %3091 = vmatpush2.msra.mxu0 0.0
    %3092 = vmatprep.subr.mxu0 0.0
    %3093 = vmatpush2.msra.mxu0 0.0
    %3094 = vmatprep.subr.mxu0 0.0
    %3095 = vmatpush2.msra.mxu0 0.0
    %3096 = vmatprep.subr.mxu0 0.0
    %3097 = vmatpush2.msra.mxu0 0.0
    %3098 = vmatprep.subr.mxu0 0.0
    %3099 = vmatpush2.msra.mxu0 0.0
    %3100 = vmatprep.subr.mxu0 0.0
    %3101 = vmatpush2.msra.mxu0 0.0
    %3102 = vmatprep.subr.mxu0 0.0
    %3103 = vmatpush2.msra.mxu0 0.0
    %3104 = vmatprep.subr.mxu0 0.0
    %3105 = vmatpush2.msra.mxu0 0.0
    %3106 = vmatprep.subr.mxu0 0.0
    %3107 = vmatpush2.msra.mxu0 0.0
    %3108 = vmatprep.mubr.f32.mxu0 0.0
    %3109 = vmatmul.mubr.f32.gmra.mxu0 %v3042
    %v3110 = vpop.f32.mrf.mxu0
    %v3111 = vadd.f32 0.0, %v3110
    %v3112 = vpop.f32.mrf.mxu0
    %3113 = vdwg.mxu0
    %v3115 = vsel %vm2492, %v2586, 0
    %3117 = vmatprep.subr.mxu0 0.0
    %3118 = vmatpush1.msra.mxu0 0.0
    %3119 = vmatprep.subr.mxu0 0.0
    %3120 = vmatpush1.msra.mxu0 0.0
    %3121 = vmatprep.subr.mxu0 0.0
    %3122 = vmatpush1.msra.mxu0 0.0
    %3123 = vmatprep.subr.mxu0 0.0
    %3124 = vmatpush1.msra.mxu0 0.0
    %3125 = vmatprep.subr.mxu0 0.0
    %3126 = vmatpush1.msra.mxu0 0.0
    %3127 = vmatprep.subr.mxu0 0.0
    %3128 = vmatpush1.msra.mxu0 0.0
    %3129 = vmatprep.subr.mxu0 0.0
    %3130 = vmatpush1.msra.mxu0 0.0
    %3131 = vmatprep.subr.mxu0 0.0
    %3132 = vmatpush1.msra.mxu0 0.0
    %3133 = vmatprep.subr.mxu0 0.0
    %3134 = vmatpush1.msra.mxu0 0.0
    %3135 = vmatprep.subr.mxu0 0.0
    %3136 = vmatpush1.msra.mxu0 0.0
    %3137 = vmatprep.subr.mxu0 0.0
    %3138 = vmatpush1.msra.mxu0 0.0
    %3139 = vmatprep.subr.mxu0 0.0
    %3140 = vmatpush1.msra.mxu0 0.0
    %3141 = vmatprep.subr.mxu0 0.0
    %3142 = vmatpush1.msra.mxu0 0.0
    %3143 = vmatprep.subr.mxu0 0.0
    %3144 = vmatpush1.msra.mxu0 0.0
    %3145 = vmatprep.subr.mxu0 0.0
    %3146 = vmatpush1.msra.mxu0 0.0
    %3147 = vmatprep.subr.mxu0 0.0
    %3148 = vmatpush1.msra.mxu0 %v2602
    %3149 = vmatprep.subr.mxu0 0.0
    %3150 = vmatpush2.msra.mxu0 0.0
    %3151 = vmatprep.subr.mxu0 0.0
    %3152 = vmatpush2.msra.mxu0 0.0
    %3153 = vmatprep.subr.mxu0 0.0
    %3154 = vmatpush2.msra.mxu0 0.0
    %3155 = vmatprep.subr.mxu0 0.0
    %3156 = vmatpush2.msra.mxu0 0.0
    %3157 = vmatprep.subr.mxu0 0.0
    %3158 = vmatpush2.msra.mxu0 0.0
    %3159 = vmatprep.subr.mxu0 0.0
    %3160 = vmatpush2.msra.mxu0 0.0
    %3161 = vmatprep.subr.mxu0 0.0
    %3162 = vmatpush2.msra.mxu0 0.0
    %3163 = vmatprep.subr.mxu0 0.0
    %3164 = vmatpush2.msra.mxu0 0.0
    %3165 = vmatprep.subr.mxu0 0.0
    %3166 = vmatpush2.msra.mxu0 0.0
    %3167 = vmatprep.subr.mxu0 0.0
    %3168 = vmatpush2.msra.mxu0 0.0
    %3169 = vmatprep.subr.mxu0 0.0
    %3170 = vmatpush2.msra.mxu0 0.0
    %3171 = vmatprep.subr.mxu0 0.0
    %3172 = vmatpush2.msra.mxu0 0.0
    %3173 = vmatprep.subr.mxu0 0.0
    %3174 = vmatpush2.msra.mxu0 0.0
    %3175 = vmatprep.subr.mxu0 0.0
    %3176 = vmatpush2.msra.mxu0 0.0
    %3177 = vmatprep.subr.mxu0 0.0
    %3178 = vmatpush2.msra.mxu0 0.0
    %3179 = vmatprep.subr.mxu0 0.0
    %3180 = vmatpush2.msra.mxu0 0.0
    %3181 = vmatprep.mubr.f32.mxu0 0.0
    %3182 = vmatmul.mubr.f32.gmra.mxu0 %v3115
    %v3183 = vpop.f32.mrf.mxu0
    %v3184 = vadd.f32 0.0, %v3183
    %v3185 = vpop.f32.mrf.mxu0
    %3186 = vdwg.mxu0
    %v3196 = vrot.slane %v2746, 7
    %v3197 = vsel %vm396, %v3196, %v2673
    %v3198 = vrot.slane %v2819, 6
    %v3199 = vsel %vm399, %v3198, %v3197
    %v3200 = vrot.slane %v2892, 5
    %v3201 = vsel %vm402, %v3200, %v3199
    %v3202 = vrot.slane %v2965, 4
    %v3203 = vsel %vm405, %v3202, %v3201
    %v3204 = vrot.slane %v3038, 3
    %v3205 = vsel %vm408, %v3204, %v3203
    %v3206 = vrot.slane %v3111, 2
    %v3207 = vsel %vm411, %v3206, %v3205
    %v3208 = vrot.slane %v3184, 1
    %v3209 = vsel %vm414, %v3208, %v3207
    %3210 = vrot.lane.b32.xlu0 %v3209, 32
    %v3211 = vpop.permute.xlu0 %3210
    %3214 = vrot.lane.b32.xlu0 %v354, 96
    %v3215 = vpop.permute.xlu0 %3214
    %v3217 = vsel %vm529, %v528, %v3211
    %vm3218 = vcmask 523264
    %v3219 = vsel %vm3218, %v3217, %v3215
    %v3221 = vlaneseq
    %v3222 = vshrl.u32 %v3221, 7
    %v3223 = vsub.s32 0, %v3222
    %v3224 = vrot.slane %v341, %v3223
    %vm3226 = vcmask 785408
    %v3228 = vsel %vm3226, %v3219, 0
    %3230 = vmatprep.subr.mxu0 0.0
    %3231 = vmatpush1.msra.mxu0 0.0
    %3232 = vmatprep.subr.mxu0 0.0
    %3233 = vmatpush1.msra.mxu0 0.0
    %3234 = vmatprep.subr.mxu0 0.0
    %3235 = vmatpush1.msra.mxu0 0.0
    %3236 = vmatprep.subr.mxu0 0.0
    %3237 = vmatpush1.msra.mxu0 0.0
    %3238 = vmatprep.subr.mxu0 0.0
    %3239 = vmatpush1.msra.mxu0 %v340
    %3240 = vmatprep.subr.mxu0 0.0
    %3241 = vmatpush1.msra.mxu0 %v339
    %3242 = vmatprep.subr.mxu0 0.0
    %3243 = vmatpush1.msra.mxu0 %v338
    %3244 = vmatprep.subr.mxu0 0.0
    %3245 = vmatpush1.msra.mxu0 %v337
    %3246 = vmatprep.subr.mxu0 0.0
    %3247 = vmatpush1.msra.mxu0 %v336
    %3248 = vmatprep.subr.mxu0 0.0
    %3249 = vmatpush1.msra.mxu0 %v335
    %3250 = vmatprep.subr.mxu0 0.0
    %3251 = vmatpush1.msra.mxu0 %v334
    %3252 = vmatprep.subr.mxu0 0.0
    %3253 = vmatpush1.msra.mxu0 %v333
    %3254 = vmatprep.subr.mxu0 0.0
    %3255 = vmatpush1.msra.mxu0 %v332
    %3256 = vmatprep.subr.mxu0 0.0
    %3257 = vmatpush1.msra.mxu0 %v331
    %3258 = vmatprep.subr.mxu0 0.0
    %3259 = vmatpush1.msra.mxu0 %v330
    %3260 = vmatprep.subr.mxu0 0.0
    %3261 = vmatpush1.msra.mxu0 %v329
    %3262 = vmatprep.subr.mxu0 0.0
    %3263 = vmatpush2.msra.mxu0 0.0
    %3264 = vmatprep.subr.mxu0 0.0
    %3265 = vmatpush2.msra.mxu0 0.0
    %3266 = vmatprep.subr.mxu0 0.0
    %3267 = vmatpush2.msra.mxu0 0.0
    %3268 = vmatprep.subr.mxu0 0.0
    %3269 = vmatpush2.msra.mxu0 0.0
    %3270 = vmatprep.subr.mxu0 0.0
    %3271 = vmatpush2.msra.mxu0 0.0
    %3272 = vmatprep.subr.mxu0 0.0
    %3273 = vmatpush2.msra.mxu0 0.0
    %3274 = vmatprep.subr.mxu0 0.0
    %3275 = vmatpush2.msra.mxu0 0.0
    %3276 = vmatprep.subr.mxu0 0.0
    %3277 = vmatpush2.msra.mxu0 0.0
    %3278 = vmatprep.subr.mxu0 0.0
    %3279 = vmatpush2.msra.mxu0 0.0
    %3280 = vmatprep.subr.mxu0 0.0
    %3281 = vmatpush2.msra.mxu0 0.0
    %3282 = vmatprep.subr.mxu0 0.0
    %3283 = vmatpush2.msra.mxu0 0.0
    %3284 = vmatprep.subr.mxu0 0.0
    %3285 = vmatpush2.msra.mxu0 0.0
    %3286 = vmatprep.subr.mxu0 0.0
    %3287 = vmatpush2.msra.mxu0 0.0
    %3288 = vmatprep.subr.mxu0 0.0
    %3289 = vmatpush2.msra.mxu0 0.0
    %3290 = vmatprep.subr.mxu0 0.0
    %3291 = vmatpush2.msra.mxu0 0.0
    %3292 = vmatprep.subr.mxu0 0.0
    %3293 = vmatpush2.msra.mxu0 0.0
    %3294 = vmatprep.mubr.f32.mxu0 0.0
    %3295 = vmatmul.mubr.f32.gmra.mxu0 %v3228
    %v3296 = vpop.f32.mrf.mxu0
    %v3297 = vadd.f32 %v3224, %v3296
    %v3298 = vpop.f32.mrf.mxu0
    %3299 = vdwg.mxu0
    %v3300 = vxor.u32 %v3297, 2147483648
    %v3301 = vmul.f32 %v3300, 1.442695
    %v3302 = vpow.pop %v3301
    %v3303 = vadd.f32 %v3302, 1.0
    %v3304 = vrcp.pop %v3303
    %v3305 = vmul.f32 1.0, %v3304
    %v3306 = vtanh.pop %v3297
    %v3307 = vmul.f32 %v3305, %v355
    %3309 = vrot.lane.b32.xlu0 %v3306, 64
    %v3310 = vpop.permute.xlu0 %3309
    %v3312 = vmul.f32 %v3305, %v3310
    %3314 = vrot.lane.b32.xlu0 %v3312, 32
    %v3315 = vpop.permute.xlu0 %3314
    %v3317 = vadd.f32 %v3307, %v3315
    %v3318 = vtanh.pop %v3317
    %3320 = vrot.lane.b32.xlu0 %v3318, 64
    %v3321 = vpop.permute.xlu0 %3320
    %v3323 = vmul.f32 %v3305, %v3321
    %3325 = vrot.lane.b32.xlu0 %v3323, 32
    %v3326 = vpop.permute.xlu0 %3325
    %s3328 = scalar_lea.vmem [#allocation3], %s380
    %3329 = vst.msk [vmem:[%s3328] sm:$0xff] %vm529, %v3326
    %s3331 = scalar_lea.vmem [#allocation4], %s380
    %3332 = vst.msk [vmem:[%s3331] sm:$0xff] %vm529, %v3209
  $region70: #{tpu_custom_call.1} parent=0 // loop_footer
    %s351 = sadd.s32 1, %s347
  $region71: #{tpu_custom_call.1} parent=0 // loop_footer_branch
    %346 = sbr.rel target = $region67
  $region72: #{tpu_custom_call.1} parent=0 // loop_exit
    _
  %v3333 = vld [vmem:[#allocation3] sm:$0xff]
  %v3334 = vld [vmem:[#allocation3 + $0x8] sm:$0xff]
  %v3335 = vld [vmem:[#allocation3 + $0x10] sm:$0xff]
  %v3336 = vld [vmem:[#allocation3 + $0x18] sm:$0xff]
  %v3337 = vld [vmem:[#allocation3 + $0x20] sm:$0xff]
  %v3338 = vld [vmem:[#allocation3 + $0x28] sm:$0xff]
  %v3339 = vld [vmem:[#allocation4] sm:$0xff]
  %v3340 = vld [vmem:[#allocation4 + $0x8] sm:$0xff]
  %v3341 = vld [vmem:[#allocation4 + $0x10] sm:$0xff]
  %v3342 = vld [vmem:[#allocation4 + $0x18] sm:$0xff]
  %v3343 = vld [vmem:[#allocation4 + $0x20] sm:$0xff]
  %v3344 = vld [vmem:[#allocation4 + $0x28] sm:$0xff]
  %v3345 = vld [vmem:[%s13] sm:$0xff]
  %v3346 = vld [vmem:[%s13 + $0x8] sm:$0xff]
  %v3347 = vld [vmem:[%s13 + $0x10] sm:$0xff]
  %v3348 = vld [vmem:[%s13 + $0x18] sm:$0xff]
  %v3349 = vld [vmem:[%s14] sm:$0xff]
  %v3350 = vld [vmem:[%s14 + $0x8] sm:$0xff]
  %v3351 = vld [vmem:[%s14 + $0x10] sm:$0xff]
  %v3352 = vld [vmem:[%s14 + $0x18] sm:$0xff]
  %vm3353 = vcmask 261120
  %v3355 = vsel %vm3353, %v3339, 0
  %v3358 = vsel %vm3353, %v3340, 0
  %v3361 = vsel %vm3353, %v3341, 0
  %v3364 = vsel %vm3353, %v3342, 0
  %v3367 = vsel %vm3353, %v3343, 0
  %v3370 = vsel %vm3353, %v3344, 0
  %3372 = vmatprep.subr.mxu0 0.0
  %3373 = vmatpush1.msra.mxu0 0.0
  %3374 = vmatprep.subr.mxu0 0.0
  %3375 = vmatpush1.msra.mxu0 0.0
  %3376 = vmatprep.subr.mxu0 0.0
  %3377 = vmatpush1.msra.mxu0 0.0
  %3378 = vmatprep.subr.mxu0 0.0
  %3379 = vmatpush1.msra.mxu0 0.0
  %3380 = vmatprep.subr.mxu0 0.0
  %3381 = vmatpush1.msra.mxu0 0.0
  %3382 = vmatprep.subr.mxu0 0.0
  %3383 = vmatpush1.msra.mxu0 0.0
  %3384 = vmatprep.subr.mxu0 0.0
  %3385 = vmatpush1.msra.mxu0 0.0
  %3386 = vmatprep.subr.mxu0 0.0
  %3387 = vmatpush1.msra.mxu0 0.0
  %3388 = vmatprep.subr.mxu0 0.0
  %3389 = vmatpush1.msra.mxu0 0.0
  %3390 = vmatprep.subr.mxu0 0.0
  %3391 = vmatpush1.msra.mxu0 0.0
  %3392 = vmatprep.subr.mxu0 0.0
  %3393 = vmatpush1.msra.mxu0 0.0
  %3394 = vmatprep.subr.mxu0 0.0
  %3395 = vmatpush1.msra.mxu0 0.0
  %3396 = vmatprep.subr.mxu0 0.0
  %3397 = vmatpush1.msra.mxu0 %v3352
  %3398 = vmatprep.subr.mxu0 0.0
  %3399 = vmatpush1.msra.mxu0 %v3351
  %3400 = vmatprep.subr.mxu0 0.0
  %3401 = vmatpush1.msra.mxu0 %v3350
  %3402 = vmatprep.subr.mxu0 0.0
  %3403 = vmatpush1.msra.mxu0 %v3349
  %3404 = vmatprep.subr.mxu0 0.0
  %3405 = vmatpush2.msra.mxu0 0.0
  %3406 = vmatprep.subr.mxu0 0.0
  %3407 = vmatpush2.msra.mxu0 0.0
  %3408 = vmatprep.subr.mxu0 0.0
  %3409 = vmatpush2.msra.mxu0 0.0
  %3410 = vmatprep.subr.mxu0 0.0
  %3411 = vmatpush2.msra.mxu0 0.0
  %3412 = vmatprep.subr.mxu0 0.0
  %3413 = vmatpush2.msra.mxu0 0.0
  %3414 = vmatprep.subr.mxu0 0.0
  %3415 = vmatpush2.msra.mxu0 0.0
  %3416 = vmatprep.subr.mxu0 0.0
  %3417 = vmatpush2.msra.mxu0 0.0
  %3418 = vmatprep.subr.mxu0 0.0
  %3419 = vmatpush2.msra.mxu0 0.0
  %3420 = vmatprep.subr.mxu0 0.0
  %3421 = vmatpush2.msra.mxu0 0.0
  %3422 = vmatprep.subr.mxu0 0.0
  %3423 = vmatpush2.msra.mxu0 0.0
  %3424 = vmatprep.subr.mxu0 0.0
  %3425 = vmatpush2.msra.mxu0 0.0
  %3426 = vmatprep.subr.mxu0 0.0
  %3427 = vmatpush2.msra.mxu0 0.0
  %3428 = vmatprep.subr.mxu0 0.0
  %3429 = vmatpush2.msra.mxu0 0.0
  %3430 = vmatprep.subr.mxu0 0.0
  %3431 = vmatpush2.msra.mxu0 0.0
  %3432 = vmatprep.subr.mxu0 0.0
  %3433 = vmatpush2.msra.mxu0 0.0
  %3434 = vmatprep.subr.mxu0 0.0
  %3435 = vmatpush2.msra.mxu0 0.0
  %3436 = vmatprep.mubr.f32.mxu0 0.0
  %3437 = vmatmul.mubr.f32.gmra.mxu0 %v3355
  %v3438 = vpop.f32.mrf.mxu0
  %v3439 = vadd.f32 0.0, %v3438
  %v3440 = vpop.f32.mrf.mxu0
  %3441 = vmatprep.mubr.f32.mxu0 0.0
  %3442 = vmatmul.mubr.f32.gmra.mxu0 %v3358
  %v3443 = vpop.f32.mrf.mxu0
  %v3444 = vadd.f32 0.0, %v3443
  %v3445 = vpop.f32.mrf.mxu0
  %3446 = vmatprep.mubr.f32.mxu0 0.0
  %3447 = vmatmul.mubr.f32.gmra.mxu0 %v3361
  %v3448 = vpop.f32.mrf.mxu0
  %v3449 = vadd.f32 0.0, %v3448
  %v3450 = vpop.f32.mrf.mxu0
  %3451 = vmatprep.mubr.f32.mxu0 0.0
  %3452 = vmatmul.mubr.f32.gmra.mxu0 %v3364
  %v3453 = vpop.f32.mrf.mxu0
  %v3454 = vadd.f32 0.0, %v3453
  %v3455 = vpop.f32.mrf.mxu0
  %3456 = vmatprep.mubr.f32.mxu0 0.0
  %3457 = vmatmul.mubr.f32.gmra.mxu0 %v3367
  %v3458 = vpop.f32.mrf.mxu0
  %v3459 = vadd.f32 0.0, %v3458
  %v3460 = vpop.f32.mrf.mxu0
  %3461 = vmatprep.mubr.f32.mxu0 0.0
  %3462 = vmatmul.mubr.f32.gmra.mxu0 %v3370
  %v3463 = vpop.f32.mrf.mxu0
  %v3464 = vadd.f32 0.0, %v3463
  %v3465 = vpop.f32.mrf.mxu0
  %3466 = vdwg.mxu0
  %v3468 = vsel %vm3353, %v3333, 0
  %v3471 = vsel %vm3353, %v3334, 0
  %v3474 = vsel %vm3353, %v3335, 0
  %v3477 = vsel %vm3353, %v3336, 0
  %v3480 = vsel %vm3353, %v3337, 0
  %v3483 = vsel %vm3353, %v3338, 0
  %3485 = vmatprep.subr.mxu0 0.0
  %3486 = vmatpush1.msra.mxu0 0.0
  %3487 = vmatprep.subr.mxu0 0.0
  %3488 = vmatpush1.msra.mxu0 0.0
  %3489 = vmatprep.subr.mxu0 0.0
  %3490 = vmatpush1.msra.mxu0 0.0
  %3491 = vmatprep.subr.mxu0 0.0
  %3492 = vmatpush1.msra.mxu0 0.0
  %3493 = vmatprep.subr.mxu0 0.0
  %3494 = vmatpush1.msra.mxu0 0.0
  %3495 = vmatprep.subr.mxu0 0.0
  %3496 = vmatpush1.msra.mxu0 0.0
  %3497 = vmatprep.subr.mxu0 0.0
  %3498 = vmatpush1.msra.mxu0 0.0
  %3499 = vmatprep.subr.mxu0 0.0
  %3500 = vmatpush1.msra.mxu0 0.0
  %3501 = vmatprep.subr.mxu0 0.0
  %3502 = vmatpush1.msra.mxu0 0.0
  %3503 = vmatprep.subr.mxu0 0.0
  %3504 = vmatpush1.msra.mxu0 0.0
  %3505 = vmatprep.subr.mxu0 0.0
  %3506 = vmatpush1.msra.mxu0 0.0
  %3507 = vmatprep.subr.mxu0 0.0
  %3508 = vmatpush1.msra.mxu0 0.0
  %3509 = vmatprep.subr.mxu0 0.0
  %3510 = vmatpush1.msra.mxu0 %v3348
  %3511 = vmatprep.subr.mxu0 0.0
  %3512 = vmatpush1.msra.mxu0 %v3347
  %3513 = vmatprep.subr.mxu0 0.0
  %3514 = vmatpush1.msra.mxu0 %v3346
  %3515 = vmatprep.subr.mxu0 0.0
  %3516 = vmatpush1.msra.mxu0 %v3345
  %3517 = vmatprep.subr.mxu0 0.0
  %3518 = vmatpush2.msra.mxu0 0.0
  %3519 = vmatprep.subr.mxu0 0.0
  %3520 = vmatpush2.msra.mxu0 0.0
  %3521 = vmatprep.subr.mxu0 0.0
  %3522 = vmatpush2.msra.mxu0 0.0
  %3523 = vmatprep.subr.mxu0 0.0
  %3524 = vmatpush2.msra.mxu0 0.0
  %3525 = vmatprep.subr.mxu0 0.0
  %3526 = vmatpush2.msra.mxu0 0.0
  %3527 = vmatprep.subr.mxu0 0.0
  %3528 = vmatpush2.msra.mxu0 0.0
  %3529 = vmatprep.subr.mxu0 0.0
  %3530 = vmatpush2.msra.mxu0 0.0
  %3531 = vmatprep.subr.mxu0 0.0
  %3532 = vmatpush2.msra.mxu0 0.0
  %3533 = vmatprep.subr.mxu0 0.0
  %3534 = vmatpush2.msra.mxu0 0.0
  %3535 = vmatprep.subr.mxu0 0.0
  %3536 = vmatpush2.msra.mxu0 0.0
  %3537 = vmatprep.subr.mxu0 0.0
  %3538 = vmatpush2.msra.mxu0 0.0
  %3539 = vmatprep.subr.mxu0 0.0
  %3540 = vmatpush2.msra.mxu0 0.0
  %3541 = vmatprep.subr.mxu0 0.0
  %3542 = vmatpush2.msra.mxu0 0.0
  %3543 = vmatprep.subr.mxu0 0.0
  %3544 = vmatpush2.msra.mxu0 0.0
  %3545 = vmatprep.subr.mxu0 0.0
  %3546 = vmatpush2.msra.mxu0 0.0
  %3547 = vmatprep.subr.mxu0 0.0
  %3548 = vmatpush2.msra.mxu0 0.0
  %3549 = vmatprep.mubr.f32.mxu0 0.0
  %3550 = vmatmul.mubr.f32.gmra.mxu0 %v3468
  %v3551 = vpop.f32.mrf.mxu0
  %v3552 = vadd.f32 %v3439, %v3551
  %v3553 = vpop.f32.mrf.mxu0
  %3554 = vmatprep.mubr.f32.mxu0 0.0
  %3555 = vmatmul.mubr.f32.gmra.mxu0 %v3471
  %v3556 = vpop.f32.mrf.mxu0
  %v3557 = vadd.f32 %v3444, %v3556
  %v3558 = vpop.f32.mrf.mxu0
  %3559 = vmatprep.mubr.f32.mxu0 0.0
  %3560 = vmatmul.mubr.f32.gmra.mxu0 %v3474
  %v3561 = vpop.f32.mrf.mxu0
  %v3562 = vadd.f32 %v3449, %v3561
  %v3563 = vpop.f32.mrf.mxu0
  %3564 = vmatprep.mubr.f32.mxu0 0.0
  %3565 = vmatmul.mubr.f32.gmra.mxu0 %v3477
  %v3566 = vpop.f32.mrf.mxu0
  %v3567 = vadd.f32 %v3454, %v3566
  %v3568 = vpop.f32.mrf.mxu0
  %3569 = vmatprep.mubr.f32.mxu0 0.0
  %3570 = vmatmul.mubr.f32.gmra.mxu0 %v3480
  %v3571 = vpop.f32.mrf.mxu0
  %v3572 = vadd.f32 %v3459, %v3571
  %v3573 = vpop.f32.mrf.mxu0
  %3574 = vmatprep.mubr.f32.mxu0 0.0
  %3575 = vmatmul.mubr.f32.gmra.mxu0 %v3483
  %v3576 = vpop.f32.mrf.mxu0
  %v3577 = vadd.f32 %v3464, %v3576
  %v3578 = vpop.f32.mrf.mxu0
  %3579 = vdwg.mxu0
  %v3580 = vld [vmem:[%s15] sm:$0x1]
  %v3582 = vlaneseq
  %v3583 = vshrl.u32 %v3582, 7
  %v3584 = vsub.s32 0, %v3583
  %v3585 = vrot.slane %v3580, %v3584
  %v3587 = vadd.f32 %v3552, %v3585
  %v3588 = vadd.f32 %v3557, %v3585
  %v3589 = vadd.f32 %v3562, %v3585
  %v3590 = vadd.f32 %v3567, %v3585
  %v3591 = vadd.f32 %v3572, %v3585
  %v3592 = vadd.f32 %v3577, %v3585
  %3593 = vst.msk [vmem:[%s16] sm:$0xff] %vm62, %v3587
  %3594 = vst.msk [vmem:[%s16 + $0x8] sm:$0xff] %vm62, %v3588
  %3595 = vst.msk [vmem:[%s16 + $0x10] sm:$0xff] %vm62, %v3589
  %3596 = vst.msk [vmem:[%s16 + $0x18] sm:$0xff] %vm62, %v3590
  %3597 = vst.msk [vmem:[%s16 + $0x20] sm:$0xff] %vm62, %v3591
  %3598 = vst.msk [vmem:[%s16 + $0x28] sm:$0xff] %vm62, %v3592
  %3605 = vrot.lane.b32.xlu0 %v3587, 124
  %v3606 = vpop.permute.xlu0 %3605
  %3607 = vrot.lane.b32.xlu0 %v3588, 124
  %v3608 = vpop.permute.xlu0 %3607
  %3609 = vrot.lane.b32.xlu0 %v3589, 124
  %v3610 = vpop.permute.xlu0 %3609
  %3611 = vrot.lane.b32.xlu0 %v3590, 124
  %v3612 = vpop.permute.xlu0 %3611
  %3613 = vrot.lane.b32.xlu0 %v3591, 124
  %v3614 = vpop.permute.xlu0 %3613
  %3615 = vrot.lane.b32.xlu0 %v3592, 124
  %v3616 = vpop.permute.xlu0 %3615
  %vm3623 = vcmask 7168
  %3624 = vst.msk [vmem:[%s17] sm:$0xff] %vm3623, %v3606
  %3625 = vst.msk [vmem:[%s17 + $0x8] sm:$0xff] %vm3623, %v3608
  %3626 = vst.msk [vmem:[%s17 + $0x10] sm:$0xff] %vm3623, %v3610
  %3627 = vst.msk [vmem:[%s17 + $0x18] sm:$0xff] %vm3623, %v3612
  %3628 = vst.msk [vmem:[%s17 + $0x20] sm:$0xff] %vm3623, %v3614
  %3629 = vst.msk [vmem:[%s17 + $0x28] sm:$0xff] %vm3623, %v3616
  // Predicated region
  $region73: #{tpu_custom_call.1} parent=0 // pred_check
    _
  $region74: #{tpu_custom_call.1} parent=0 // pred_check_branch
    %3631 = sbr.rel (0) target = $region76
  $region75: #{tpu_custom_call.1} parent=0 // pred_region
    _
  $region76: #{tpu_custom_call.1} parent=0 // pred_fallthru
    _
  // Predicated region
  $region77: #{tpu_custom_call.1} parent=0 // pred_check
    _
  $region78: #{tpu_custom_call.1} parent=0 // pred_check_branch
    %3633 = sbr.rel (0) target = $region80
  $region79: #{tpu_custom_call.1} parent=0 // pred_region
    _
  $region80: #{tpu_custom_call.1} parent=0 // pred_fallthru
    _
  // Predicated region
  $region81: #{tpu_custom_call.1} parent=0 // pred_check
    _
  $region82: #{tpu_custom_call.1} parent=0 // pred_check_branch
    %3635 = sbr.rel (0) target = $region84
  $region83: #{tpu_custom_call.1} parent=0 // pred_region
    _
  $region84: #{tpu_custom_call.1} parent=0 // pred_fallthru
    _
  // Predicated region
  $region85: #{tpu_custom_call.1} parent=0 // pred_check
    _
  $region86: #{tpu_custom_call.1} parent=0 // pred_check_branch
    %3637 = sbr.rel (0) target = $region88
  $region87: #{tpu_custom_call.1} parent=0 // pred_region
    _
  $region88: #{tpu_custom_call.1} parent=0 // pred_fallthru
    _

</llo_original>
